<compile_context>
chip_gen: v7x
topology: tpu7x:2x2x1
jax: 0.10.0
libtpu: 0.0.40
codegen_flags: <defaults>
</compile_context>

<pallas_src>
import functools

import jax
import jax.numpy as jnp
from jax.experimental import pallas as pl
from jax.experimental.pallas import tpu as pltpu


def _lstm_regressor_kernel(x_ref, wih_ref, whh_ref, b_ref, wfc_ref, bfc_ref,
                           out_ref, *, seq_len, hidden, matmul_dtype):
    """One grid step processes TB batch rows for the whole sequence.

    x_ref   : (S, TB, I)  time-major input block
    wih_ref : (I, 4H)     W_ih^T, gate order [i|f|o|g], sigmoid cols * 0.5
    whh_ref : (H, 4H)     W_hh^T, same column treatment
    b_ref   : (1, 4H)     b_ih + b_hh, same column treatment
    wfc_ref : (1, H)      fc weight row
    bfc_ref : (1,)        fc bias (SMEM scalar)
    out_ref : (TB, 1)
    """
    S = seq_len
    H = hidden
    TB = x_ref.shape[1]
    in_dim = x_ref.shape[2]

    x = x_ref[...].astype(matmul_dtype)          # (S, TB, I)
    wih = wih_ref[...].astype(matmul_dtype)      # (I, 4H)
    whh = whh_ref[...].astype(matmul_dtype)      # (H, 4H)
    bias = b_ref[...]                            # (1, 4H)  f32

    # Fused input projection for every (timestep, batch-row) pair at once:
    # one (S*TB, I) @ (I, 4H) MXU matmul with f32 accumulation.
    gx = jnp.dot(x.reshape(S * TB, in_dim), wih,
                 preferred_element_type=jnp.float32) + bias
    gx = gx.reshape(S, TB, 4 * H)                # time-major: gx[t] is a slab

    h = jnp.zeros((TB, H), jnp.float32)
    c = jnp.zeros((TB, H), jnp.float32)

    # The time recurrence is inherently sequential; S is small and static so
    # the Python loop is fully unrolled (LLO scheduler sees the whole chain).
    # NOTE: a weight-stationary W_hh (pltpu.matmul_push_rhs/acc_lhs/pop) could
    # additionally avoid re-staging the RHS every step; kept on jnp.dot here
    # for lowering robustness.
    for t in range(S):
        gates = gx[t] + jnp.dot(h.astype(matmul_dtype), whh,
                                preferred_element_type=jnp.float32)
        # Columns [0:3H] were pre-scaled by 0.5 host-side, so one full-width
        # tanh yields tanh(z/2) for the sigmoid gates (i, f, o) and tanh(z)
        # for the candidate gate g:  sigmoid(z) = 0.5 * (tanh(z/2) + 1).
        t_all = jnp.tanh(gates)
        sig = 0.5 * (t_all[:, :3 * H] + 1.0)
        i_g = sig[:, 0 * H:1 * H]
        f_g = sig[:, 1 * H:2 * H]
        o_g = sig[:, 2 * H:3 * H]
        g_g = t_all[:, 3 * H:]
        c = f_g * c + i_g * g_g
        h = o_g * jnp.tanh(c)

    # Regression head on the last hidden state as a VPU multiply + lane
    # reduce (a (TB,H)@(H,1) matmul would use 1 of 256 MXU output columns).
    out_ref[...] = (jnp.sum(h * wfc_ref[...], axis=-1, keepdims=True)
                    + bfc_ref[0])
    # TODO(synk): num_layers > 1 stacking / inter-layer dropout not
    # implemented (module defaults: num_layers=1, dropout=0.0 -> no-op).


def _default_batch_tile(B):
    """Largest sublane-aligned divisor of B that fills the MXU M dimension
    (target 256 rows = v6e/v7x MXU; v5e's 128 is a subset) while keeping at
    least 2 grid steps so v7x's two TensorCores both get work."""
    if B <= 8:
        return B
    target = min(256, B // 2)
    tb = 0
    for d in range(8, target + 1, 8):
        if B % d == 0:
            tb = d
    return tb if tb else B


def lstm_regressor(x, w_ih, w_hh, b_ih, b_hh, w_fc, b_fc, *,
                   batch_tile=None, matmul_dtype=jnp.bfloat16):
    """Forward pass of LSTMRegressor.

    x     : (B, S, I) batch-first input.
    w_ih  : (4H, I), w_hh: (4H, H), b_ih/b_hh: (4H,)  -- PyTorch nn.LSTM
            layout, gate order [i|f|g|o].
    w_fc  : (1, H), b_fc: (1,)                        -- nn.Linear(H, 1).
    matmul_dtype: dtype of MXU operands (bf16 fast path; accumulation and all
            elementwise/state math stay f32).
    Returns (B, 1) float32.
    """
    B, S, I = x.shape
    H = w_hh.shape[1]
    assert w_ih.shape == (4 * H, I)
    assert w_hh.shape == (4 * H, H)

    TB = _default_batch_tile(B) if batch_tile is None else batch_tile
    assert B % TB == 0, "batch must be divisible by batch_tile"
    assert TB % 8 == 0 or TB == B, "batch_tile must be sublane-aligned"

    # ---- Host-side layout plumbing (one-time, outside the kernel) ----------
    # 1) Permute gate blocks [i|f|g|o] -> [i|f|o|g] so the sigmoid gates are
    #    the contiguous first 3H columns.
    # 2) Pre-scale sigmoid-gate columns by 0.5 so the kernel needs a single
    #    tanh per step (sigmoid(z) = 0.5*(tanh(z/2)+1)).
    # 3) Pre-transpose weights so the kernel computes y = x @ W + b with no
    #    in-kernel transposes; fuse b_ih + b_hh.
    # 4) Time-major x so gx[t] is a whole leading-axis slab each step.
    perm = jnp.concatenate([jnp.arange(0, H), jnp.arange(H, 2 * H),
                            jnp.arange(3 * H, 4 * H),
                            jnp.arange(2 * H, 3 * H)])
    col_scale = jnp.concatenate([jnp.full((3 * H,), 0.5, jnp.float32),
                                 jnp.ones((H,), jnp.float32)])
    w_ih_t = jnp.transpose(w_ih[perm], (1, 0)) * col_scale        # (I, 4H)
    w_hh_t = jnp.transpose(w_hh[perm], (1, 0)) * col_scale        # (H, 4H)
    bias = ((b_ih + b_hh)[perm] * col_scale)[None, :]             # (1, 4H)
    w_fc_row = w_fc.reshape(1, H).astype(jnp.float32)             # (1, H)
    b_fc_s = b_fc.reshape(1).astype(jnp.float32)                  # (1,) SMEM
    x_tm = jnp.transpose(x, (1, 0, 2))                            # (S, B, I)

    kernel = functools.partial(_lstm_regressor_kernel, seq_len=S, hidden=H,
                               matmul_dtype=matmul_dtype)

    return pl.pallas_call(
        kernel,
        out_shape=jax.ShapeDtypeStruct((B, 1), jnp.float32),
        grid_spec=pltpu.PrefetchScalarGridSpec(
            num_scalar_prefetch=0,
            grid=(B // TB,),
            in_specs=[
                pl.BlockSpec((S, TB, I), lambda b: (0, b, 0)),      # x (t-major)
                pl.BlockSpec((I, 4 * H), lambda b: (0, 0)),         # W_ih^T
                pl.BlockSpec((H, 4 * H), lambda b: (0, 0)),         # W_hh^T
                pl.BlockSpec((1, 4 * H), lambda b: (0, 0)),         # fused bias
                pl.BlockSpec((1, H), lambda b: (0, 0)),             # W_fc row
                pl.BlockSpec(memory_space=pltpu.MemorySpace.SMEM),  # b_fc
            ],
            out_specs=pl.BlockSpec((TB, 1), lambda b: (b, 0)),
        ),
        compiler_params=pltpu.CompilerParams(
            # Batch axis splits across v7x's two TensorCores.
            dimension_semantics=("parallel",),
            # Working set per step at TB=256: 2 double-buffered (S,TB,I) x
            # blocks + (S,TB,4H) f32 gx + weights ~= 2 MiB << 64 MiB (v7x).
            vmem_limit_bytes=32 * 1024 * 1024),
    )(x_tm, w_ih_t, w_hh_t, bias, w_fc_row, b_fc_s)


if __name__ == "__main__":
    B, S, I, H = 256, 8, 16, 32     # batch, seq, input_size, hidden_size
    # -> default TB = 128, grid = (2,)

    key = jax.random.PRNGKey(0)
    kx, k1, k2, k3, k4, k5, k6 = jax.random.split(key, 7)

    x = jax.random.normal(kx, (B, S, I), dtype=jnp.float32)

    # nn.LSTM / nn.Linear style init: U(-1/sqrt(H), 1/sqrt(H)), PyTorch
    # layouts and gate order [i|f|g|o].
    bound = 1.0 / (H ** 0.5)
    w_ih = jax.random.uniform(k1, (4 * H, I), jnp.float32, -bound, bound)
    w_hh = jax.random.uniform(k2, (4 * H, H), jnp.float32, -bound, bound)
    b_ih = jax.random.uniform(k3, (4 * H,), jnp.float32, -bound, bound)
    b_hh = jax.random.uniform(k4, (4 * H,), jnp.float32, -bound, bound)
    w_fc = jax.random.uniform(k5, (1, H), jnp.float32, -bound, bound)
    b_fc = jax.random.uniform(k6, (1,), jnp.float32, -bound, bound)

    # Pure-JAX reference (direct translation of the PyTorch LSTM equations,
    # f32 HIGHEST, original gate order).
    def ref(x):
        hi = jax.lax.Precision.HIGHEST
        h = jnp.zeros((B, H), jnp.float32)
        c = jnp.zeros((B, H), jnp.float32)
        for t in range(S):
            gates = (jnp.dot(x[:, t, :], w_ih.T, precision=hi)
                     + jnp.dot(h, w_hh.T, precision=hi) + b_ih + b_hh)
            i_g = jax.nn.sigmoid(gates[:, 0 * H:1 * H])
            f_g = jax.nn.sigmoid(gates[:, 1 * H:2 * H])
            g_g = jnp.tanh(gates[:, 2 * H:3 * H])
            o_g = jax.nn.sigmoid(gates[:, 3 * H:4 * H])
            c = f_g * c + i_g * g_g
            h = o_g * jnp.tanh(c)
        return jnp.dot(h, w_fc.T, precision=hi) + b_fc

    expected = ref(x)

    # Strict check: f32 MXU operands (same numerics as the reference path).
    out_f32 = jax.block_until_ready(
        lstm_regressor(x, w_ih, w_hh, b_ih, b_hh, w_fc, b_fc,
                       matmul_dtype=jnp.float32))
    assert out_f32.shape == (B, 1)
    assert jnp.allclose(out_f32, expected, atol=5e-4, rtol=5e-4), (
        float(jnp.max(jnp.abs(out_f32 - expected))))

    # Fast path: bf16 MXU operands, f32 accumulation/state.  Looser tolerance:
    # the recurrence amplifies bf16 input rounding.
    out_bf16 = jax.block_until_ready(
        lstm_regressor(x, w_ih, w_hh, b_ih, b_hh, w_fc, b_fc,
                       matmul_dtype=jnp.bfloat16))
    assert out_bf16.shape == (B, 1)
    assert jnp.allclose(out_bf16, expected, atol=5e-2, rtol=5e-2), (
        float(jnp.max(jnp.abs(out_bf16 - expected))))

    print("KERNEL_OK")
</pallas_src>

<mosaic_0001>
module attributes {stable_mosaic.version = 11 : i64} {
  func.func @_lstm_regressor_kernel(%arg0: i32, %arg1: memref<8x128x16xf32, #tpu.memory_space<vmem>>, %arg2: memref<16x128xf32, #tpu.memory_space<vmem>>, %arg3: memref<32x128xf32, #tpu.memory_space<vmem>>, %arg4: memref<1x128xf32, #tpu.memory_space<vmem>>, %arg5: memref<1x32xf32, #tpu.memory_space<vmem>>, %arg6: memref<1xf32, #tpu.memory_space<smem>>, %arg7: memref<128x1xf32, #tpu.memory_space<vmem>>) attributes {dimension_semantics = [#tpu.dimension_semantics<parallel>], iteration_bounds = array<i64: 2>, scalar_prefetch = 0 : i64, scratch_operands = 0 : i64, tpu.core_type = #tpu.core_type<tc>, window_params = [{transform_indices = @transform_0, window_bounds = array<i64: 8, 128, 16>}, {pipeline_mode = #tpu.pipeline_mode<synchronous>, transform_indices = @transform_1, window_bounds = array<i64: 16, 128>}, {pipeline_mode = #tpu.pipeline_mode<synchronous>, transform_indices = @transform_2, window_bounds = array<i64: 32, 128>}, {pipeline_mode = #tpu.pipeline_mode<synchronous>, transform_indices = @transform_3, window_bounds = array<i64: 1, 128>}, {pipeline_mode = #tpu.pipeline_mode<synchronous>, transform_indices = @transform_4, window_bounds = array<i64: 1, 32>}, {transform_indices = @transform_5, window_bounds = array<i64: 1>}, {transform_indices = @transform_6, window_bounds = array<i64: 128, 1>}]} {
    %c0 = arith.constant 0 : index
    %c0_0 = arith.constant 0 : index
    %c0_1 = arith.constant 0 : index
    %0 = vector.load %arg1[%c0, %c0_0, %c0_1] : memref<8x128x16xf32, #tpu.memory_space<vmem>>, vector<8x128x16xf32>
    %c0_2 = arith.constant 0 : index
    %c0_3 = arith.constant 0 : index
    %1 = vector.load %arg2[%c0_2, %c0_3] : memref<16x128xf32, #tpu.memory_space<vmem>>, vector<16x128xf32>
    %c0_4 = arith.constant 0 : index
    %c0_5 = arith.constant 0 : index
    %2 = vector.load %arg3[%c0_4, %c0_5] : memref<32x128xf32, #tpu.memory_space<vmem>>, vector<32x128xf32>
    %c0_6 = arith.constant 0 : index
    %c0_7 = arith.constant 0 : index
    %3 = vector.load %arg4[%c0_6, %c0_7] : memref<1x128xf32, #tpu.memory_space<vmem>>, vector<1x128xf32>
    %4 = vector.shape_cast %0 : vector<8x128x16xf32> to vector<1024x16xf32>
    %cst = arith.constant dense<0.000000e+00> : vector<1024x128xf32>
    %5 = tpu.matmul %4, %1, %cst {dimension_numbers = #tpu.dot_dimension_numbers<[1], [0], [0], [1], [0, 0, 1, 1], [], []>} : vector<1024x16xf32>, vector<16x128xf32>, vector<1024x128xf32> -> vector<1024x128xf32>
    %6 = vector.broadcast %3 : vector<1x128xf32> to vector<1024x128xf32>
    %7 = arith.addf %5, %6 : vector<1024x128xf32>
    %8 = vector.shape_cast %7 : vector<1024x128xf32> to vector<8x128x128xf32>
    %cst_8 = arith.constant 0.000000e+00 : f32
    %9 = vector.broadcast %cst_8 : f32 to vector<128x32xf32>
    %cst_9 = arith.constant 0.000000e+00 : f32
    %10 = vector.broadcast %cst_9 : f32 to vector<128x32xf32>
    %11 = vector.extract_strided_slice %8 {offsets = [0, 0, 0], sizes = [1, 128, 128], strides = [1, 1, 1]} : vector<8x128x128xf32> to vector<1x128x128xf32>
    %12 = vector.shape_cast %11 : vector<1x128x128xf32> to vector<128x128xf32>
    %cst_10 = arith.constant dense<0.000000e+00> : vector<128x128xf32>
    %13 = tpu.matmul %9, %2, %cst_10 {dimension_numbers = #tpu.dot_dimension_numbers<[1], [0], [0], [1], [0, 0, 1, 1], [], []>} : vector<128x32xf32>, vector<32x128xf32>, vector<128x128xf32> -> vector<128x128xf32>
    %14 = arith.addf %12, %13 : vector<128x128xf32>
    %15 = math.tanh %14 : vector<128x128xf32>
    %16 = vector.extract_strided_slice %15 {offsets = [0, 0], sizes = [128, 96], strides = [1, 1]} : vector<128x128xf32> to vector<128x96xf32>
    %cst_11 = arith.constant 1.000000e+00 : f32
    %17 = vector.broadcast %cst_11 : f32 to vector<128x96xf32>
    %18 = arith.addf %16, %17 : vector<128x96xf32>
    %cst_12 = arith.constant 5.000000e-01 : f32
    %19 = vector.broadcast %cst_12 : f32 to vector<128x96xf32>
    %20 = arith.mulf %19, %18 : vector<128x96xf32>
    %21 = vector.extract_strided_slice %20 {offsets = [0, 0], sizes = [128, 32], strides = [1, 1]} : vector<128x96xf32> to vector<128x32xf32>
    %22 = vector.extract_strided_slice %20 {offsets = [0, 32], sizes = [128, 32], strides = [1, 1]} : vector<128x96xf32> to vector<128x32xf32>
    %23 = vector.extract_strided_slice %20 {offsets = [0, 64], sizes = [128, 32], strides = [1, 1]} : vector<128x96xf32> to vector<128x32xf32>
    %24 = vector.extract_strided_slice %15 {offsets = [0, 96], sizes = [128, 32], strides = [1, 1]} : vector<128x128xf32> to vector<128x32xf32>
    %25 = arith.mulf %22, %10 : vector<128x32xf32>
    %26 = arith.mulf %21, %24 : vector<128x32xf32>
    %27 = arith.addf %25, %26 : vector<128x32xf32>
    %28 = math.tanh %27 : vector<128x32xf32>
    %29 = arith.mulf %23, %28 : vector<128x32xf32>
    %30 = vector.extract_strided_slice %8 {offsets = [1, 0, 0], sizes = [1, 128, 128], strides = [1, 1, 1]} : vector<8x128x128xf32> to vector<1x128x128xf32>
    %31 = vector.shape_cast %30 : vector<1x128x128xf32> to vector<128x128xf32>
    %cst_13 = arith.constant dense<0.000000e+00> : vector<128x128xf32>
    %32 = tpu.matmul %29, %2, %cst_13 {dimension_numbers = #tpu.dot_dimension_numbers<[1], [0], [0], [1], [0, 0, 1, 1], [], []>} : vector<128x32xf32>, vector<32x128xf32>, vector<128x128xf32> -> vector<128x128xf32>
    %33 = arith.addf %31, %32 : vector<128x128xf32>
    %34 = math.tanh %33 : vector<128x128xf32>
    %35 = vector.extract_strided_slice %34 {offsets = [0, 0], sizes = [128, 96], strides = [1, 1]} : vector<128x128xf32> to vector<128x96xf32>
    %cst_14 = arith.constant 1.000000e+00 : f32
    %36 = vector.broadcast %cst_14 : f32 to vector<128x96xf32>
    %37 = arith.addf %35, %36 : vector<128x96xf32>
    %cst_15 = arith.constant 5.000000e-01 : f32
    %38 = vector.broadcast %cst_15 : f32 to vector<128x96xf32>
    %39 = arith.mulf %38, %37 : vector<128x96xf32>
    %40 = vector.extract_strided_slice %39 {offsets = [0, 0], sizes = [128, 32], strides = [1, 1]} : vector<128x96xf32> to vector<128x32xf32>
    %41 = vector.extract_strided_slice %39 {offsets = [0, 32], sizes = [128, 32], strides = [1, 1]} : vector<128x96xf32> to vector<128x32xf32>
    %42 = vector.extract_strided_slice %39 {offsets = [0, 64], sizes = [128, 32], strides = [1, 1]} : vector<128x96xf32> to vector<128x32xf32>
    %43 = vector.extract_strided_slice %34 {offsets = [0, 96], sizes = [128, 32], strides = [1, 1]} : vector<128x128xf32> to vector<128x32xf32>
    %44 = arith.mulf %41, %27 : vector<128x32xf32>
    %45 = arith.mulf %40, %43 : vector<128x32xf32>
    %46 = arith.addf %44, %45 : vector<128x32xf32>
    %47 = math.tanh %46 : vector<128x32xf32>
    %48 = arith.mulf %42, %47 : vector<128x32xf32>
    %49 = vector.extract_strided_slice %8 {offsets = [2, 0, 0], sizes = [1, 128, 128], strides = [1, 1, 1]} : vector<8x128x128xf32> to vector<1x128x128xf32>
    %50 = vector.shape_cast %49 : vector<1x128x128xf32> to vector<128x128xf32>
    %cst_16 = arith.constant dense<0.000000e+00> : vector<128x128xf32>
    %51 = tpu.matmul %48, %2, %cst_16 {dimension_numbers = #tpu.dot_dimension_numbers<[1], [0], [0], [1], [0, 0, 1, 1], [], []>} : vector<128x32xf32>, vector<32x128xf32>, vector<128x128xf32> -> vector<128x128xf32>
    %52 = arith.addf %50, %51 : vector<128x128xf32>
    %53 = math.tanh %52 : vector<128x128xf32>
    %54 = vector.extract_strided_slice %53 {offsets = [0, 0], sizes = [128, 96], strides = [1, 1]} : vector<128x128xf32> to vector<128x96xf32>
    %cst_17 = arith.constant 1.000000e+00 : f32
    %55 = vector.broadcast %cst_17 : f32 to vector<128x96xf32>
    %56 = arith.addf %54, %55 : vector<128x96xf32>
    %cst_18 = arith.constant 5.000000e-01 : f32
    %57 = vector.broadcast %cst_18 : f32 to vector<128x96xf32>
    %58 = arith.mulf %57, %56 : vector<128x96xf32>
    %59 = vector.extract_strided_slice %58 {offsets = [0, 0], sizes = [128, 32], strides = [1, 1]} : vector<128x96xf32> to vector<128x32xf32>
    %60 = vector.extract_strided_slice %58 {offsets = [0, 32], sizes = [128, 32], strides = [1, 1]} : vector<128x96xf32> to vector<128x32xf32>
    %61 = vector.extract_strided_slice %58 {offsets = [0, 64], sizes = [128, 32], strides = [1, 1]} : vector<128x96xf32> to vector<128x32xf32>
    %62 = vector.extract_strided_slice %53 {offsets = [0, 96], sizes = [128, 32], strides = [1, 1]} : vector<128x128xf32> to vector<128x32xf32>
    %63 = arith.mulf %60, %46 : vector<128x32xf32>
    %64 = arith.mulf %59, %62 : vector<128x32xf32>
    %65 = arith.addf %63, %64 : vector<128x32xf32>
    %66 = math.tanh %65 : vector<128x32xf32>
    %67 = arith.mulf %61, %66 : vector<128x32xf32>
    %68 = vector.extract_strided_slice %8 {offsets = [3, 0, 0], sizes = [1, 128, 128], strides = [1, 1, 1]} : vector<8x128x128xf32> to vector<1x128x128xf32>
    %69 = vector.shape_cast %68 : vector<1x128x128xf32> to vector<128x128xf32>
    %cst_19 = arith.constant dense<0.000000e+00> : vector<128x128xf32>
    %70 = tpu.matmul %67, %2, %cst_19 {dimension_numbers = #tpu.dot_dimension_numbers<[1], [0], [0], [1], [0, 0, 1, 1], [], []>} : vector<128x32xf32>, vector<32x128xf32>, vector<128x128xf32> -> vector<128x128xf32>
    %71 = arith.addf %69, %70 : vector<128x128xf32>
    %72 = math.tanh %71 : vector<128x128xf32>
    %73 = vector.extract_strided_slice %72 {offsets = [0, 0], sizes = [128, 96], strides = [1, 1]} : vector<128x128xf32> to vector<128x96xf32>
    %cst_20 = arith.constant 1.000000e+00 : f32
    %74 = vector.broadcast %cst_20 : f32 to vector<128x96xf32>
    %75 = arith.addf %73, %74 : vector<128x96xf32>
    %cst_21 = arith.constant 5.000000e-01 : f32
    %76 = vector.broadcast %cst_21 : f32 to vector<128x96xf32>
    %77 = arith.mulf %76, %75 : vector<128x96xf32>
    %78 = vector.extract_strided_slice %77 {offsets = [0, 0], sizes = [128, 32], strides = [1, 1]} : vector<128x96xf32> to vector<128x32xf32>
    %79 = vector.extract_strided_slice %77 {offsets = [0, 32], sizes = [128, 32], strides = [1, 1]} : vector<128x96xf32> to vector<128x32xf32>
    %80 = vector.extract_strided_slice %77 {offsets = [0, 64], sizes = [128, 32], strides = [1, 1]} : vector<128x96xf32> to vector<128x32xf32>
    %81 = vector.extract_strided_slice %72 {offsets = [0, 96], sizes = [128, 32], strides = [1, 1]} : vector<128x128xf32> to vector<128x32xf32>
    %82 = arith.mulf %79, %65 : vector<128x32xf32>
    %83 = arith.mulf %78, %81 : vector<128x32xf32>
    %84 = arith.addf %82, %83 : vector<128x32xf32>
    %85 = math.tanh %84 : vector<128x32xf32>
    %86 = arith.mulf %80, %85 : vector<128x32xf32>
    %87 = vector.extract_strided_slice %8 {offsets = [4, 0, 0], sizes = [1, 128, 128], strides = [1, 1, 1]} : vector<8x128x128xf32> to vector<1x128x128xf32>
    %88 = vector.shape_cast %87 : vector<1x128x128xf32> to vector<128x128xf32>
    %cst_22 = arith.constant dense<0.000000e+00> : vector<128x128xf32>
    %89 = tpu.matmul %86, %2, %cst_22 {dimension_numbers = #tpu.dot_dimension_numbers<[1], [0], [0], [1], [0, 0, 1, 1], [], []>} : vector<128x32xf32>, vector<32x128xf32>, vector<128x128xf32> -> vector<128x128xf32>
    %90 = arith.addf %88, %89 : vector<128x128xf32>
    %91 = math.tanh %90 : vector<128x128xf32>
    %92 = vector.extract_strided_slice %91 {offsets = [0, 0], sizes = [128, 96], strides = [1, 1]} : vector<128x128xf32> to vector<128x96xf32>
    %cst_23 = arith.constant 1.000000e+00 : f32
    %93 = vector.broadcast %cst_23 : f32 to vector<128x96xf32>
    %94 = arith.addf %92, %93 : vector<128x96xf32>
    %cst_24 = arith.constant 5.000000e-01 : f32
    %95 = vector.broadcast %cst_24 : f32 to vector<128x96xf32>
    %96 = arith.mulf %95, %94 : vector<128x96xf32>
    %97 = vector.extract_strided_slice %96 {offsets = [0, 0], sizes = [128, 32], strides = [1, 1]} : vector<128x96xf32> to vector<128x32xf32>
    %98 = vector.extract_strided_slice %96 {offsets = [0, 32], sizes = [128, 32], strides = [1, 1]} : vector<128x96xf32> to vector<128x32xf32>
    %99 = vector.extract_strided_slice %96 {offsets = [0, 64], sizes = [128, 32], strides = [1, 1]} : vector<128x96xf32> to vector<128x32xf32>
    %100 = vector.extract_strided_slice %91 {offsets = [0, 96], sizes = [128, 32], strides = [1, 1]} : vector<128x128xf32> to vector<128x32xf32>
    %101 = arith.mulf %98, %84 : vector<128x32xf32>
    %102 = arith.mulf %97, %100 : vector<128x32xf32>
    %103 = arith.addf %101, %102 : vector<128x32xf32>
    %104 = math.tanh %103 : vector<128x32xf32>
    %105 = arith.mulf %99, %104 : vector<128x32xf32>
    %106 = vector.extract_strided_slice %8 {offsets = [5, 0, 0], sizes = [1, 128, 128], strides = [1, 1, 1]} : vector<8x128x128xf32> to vector<1x128x128xf32>
    %107 = vector.shape_cast %106 : vector<1x128x128xf32> to vector<128x128xf32>
    %cst_25 = arith.constant dense<0.000000e+00> : vector<128x128xf32>
    %108 = tpu.matmul %105, %2, %cst_25 {dimension_numbers = #tpu.dot_dimension_numbers<[1], [0], [0], [1], [0, 0, 1, 1], [], []>} : vector<128x32xf32>, vector<32x128xf32>, vector<128x128xf32> -> vector<128x128xf32>
    %109 = arith.addf %107, %108 : vector<128x128xf32>
    %110 = math.tanh %109 : vector<128x128xf32>
    %111 = vector.extract_strided_slice %110 {offsets = [0, 0], sizes = [128, 96], strides = [1, 1]} : vector<128x128xf32> to vector<128x96xf32>
    %cst_26 = arith.constant 1.000000e+00 : f32
    %112 = vector.broadcast %cst_26 : f32 to vector<128x96xf32>
    %113 = arith.addf %111, %112 : vector<128x96xf32>
    %cst_27 = arith.constant 5.000000e-01 : f32
    %114 = vector.broadcast %cst_27 : f32 to vector<128x96xf32>
    %115 = arith.mulf %114, %113 : vector<128x96xf32>
    %116 = vector.extract_strided_slice %115 {offsets = [0, 0], sizes = [128, 32], strides = [1, 1]} : vector<128x96xf32> to vector<128x32xf32>
    %117 = vector.extract_strided_slice %115 {offsets = [0, 32], sizes = [128, 32], strides = [1, 1]} : vector<128x96xf32> to vector<128x32xf32>
    %118 = vector.extract_strided_slice %115 {offsets = [0, 64], sizes = [128, 32], strides = [1, 1]} : vector<128x96xf32> to vector<128x32xf32>
    %119 = vector.extract_strided_slice %110 {offsets = [0, 96], sizes = [128, 32], strides = [1, 1]} : vector<128x128xf32> to vector<128x32xf32>
    %120 = arith.mulf %117, %103 : vector<128x32xf32>
    %121 = arith.mulf %116, %119 : vector<128x32xf32>
    %122 = arith.addf %120, %121 : vector<128x32xf32>
    %123 = math.tanh %122 : vector<128x32xf32>
    %124 = arith.mulf %118, %123 : vector<128x32xf32>
    %125 = vector.extract_strided_slice %8 {offsets = [6, 0, 0], sizes = [1, 128, 128], strides = [1, 1, 1]} : vector<8x128x128xf32> to vector<1x128x128xf32>
    %126 = vector.shape_cast %125 : vector<1x128x128xf32> to vector<128x128xf32>
    %cst_28 = arith.constant dense<0.000000e+00> : vector<128x128xf32>
    %127 = tpu.matmul %124, %2, %cst_28 {dimension_numbers = #tpu.dot_dimension_numbers<[1], [0], [0], [1], [0, 0, 1, 1], [], []>} : vector<128x32xf32>, vector<32x128xf32>, vector<128x128xf32> -> vector<128x128xf32>
    %128 = arith.addf %126, %127 : vector<128x128xf32>
    %129 = math.tanh %128 : vector<128x128xf32>
    %130 = vector.extract_strided_slice %129 {offsets = [0, 0], sizes = [128, 96], strides = [1, 1]} : vector<128x128xf32> to vector<128x96xf32>
    %cst_29 = arith.constant 1.000000e+00 : f32
    %131 = vector.broadcast %cst_29 : f32 to vector<128x96xf32>
    %132 = arith.addf %130, %131 : vector<128x96xf32>
    %cst_30 = arith.constant 5.000000e-01 : f32
    %133 = vector.broadcast %cst_30 : f32 to vector<128x96xf32>
    %134 = arith.mulf %133, %132 : vector<128x96xf32>
    %135 = vector.extract_strided_slice %134 {offsets = [0, 0], sizes = [128, 32], strides = [1, 1]} : vector<128x96xf32> to vector<128x32xf32>
    %136 = vector.extract_strided_slice %134 {offsets = [0, 32], sizes = [128, 32], strides = [1, 1]} : vector<128x96xf32> to vector<128x32xf32>
    %137 = vector.extract_strided_slice %134 {offsets = [0, 64], sizes = [128, 32], strides = [1, 1]} : vector<128x96xf32> to vector<128x32xf32>
    %138 = vector.extract_strided_slice %129 {offsets = [0, 96], sizes = [128, 32], strides = [1, 1]} : vector<128x128xf32> to vector<128x32xf32>
    %139 = arith.mulf %136, %122 : vector<128x32xf32>
    %140 = arith.mulf %135, %138 : vector<128x32xf32>
    %141 = arith.addf %139, %140 : vector<128x32xf32>
    %142 = math.tanh %141 : vector<128x32xf32>
    %143 = arith.mulf %137, %142 : vector<128x32xf32>
    %144 = vector.extract_strided_slice %8 {offsets = [7, 0, 0], sizes = [1, 128, 128], strides = [1, 1, 1]} : vector<8x128x128xf32> to vector<1x128x128xf32>
    %145 = vector.shape_cast %144 : vector<1x128x128xf32> to vector<128x128xf32>
    %cst_31 = arith.constant dense<0.000000e+00> : vector<128x128xf32>
    %146 = tpu.matmul %143, %2, %cst_31 {dimension_numbers = #tpu.dot_dimension_numbers<[1], [0], [0], [1], [0, 0, 1, 1], [], []>} : vector<128x32xf32>, vector<32x128xf32>, vector<128x128xf32> -> vector<128x128xf32>
    %147 = arith.addf %145, %146 : vector<128x128xf32>
    %148 = math.tanh %147 : vector<128x128xf32>
    %149 = vector.extract_strided_slice %148 {offsets = [0, 0], sizes = [128, 96], strides = [1, 1]} : vector<128x128xf32> to vector<128x96xf32>
    %cst_32 = arith.constant 1.000000e+00 : f32
    %150 = vector.broadcast %cst_32 : f32 to vector<128x96xf32>
    %151 = arith.addf %149, %150 : vector<128x96xf32>
    %cst_33 = arith.constant 5.000000e-01 : f32
    %152 = vector.broadcast %cst_33 : f32 to vector<128x96xf32>
    %153 = arith.mulf %152, %151 : vector<128x96xf32>
    %154 = vector.extract_strided_slice %153 {offsets = [0, 0], sizes = [128, 32], strides = [1, 1]} : vector<128x96xf32> to vector<128x32xf32>
    %155 = vector.extract_strided_slice %153 {offsets = [0, 32], sizes = [128, 32], strides = [1, 1]} : vector<128x96xf32> to vector<128x32xf32>
    %156 = vector.extract_strided_slice %153 {offsets = [0, 64], sizes = [128, 32], strides = [1, 1]} : vector<128x96xf32> to vector<128x32xf32>
    %157 = vector.extract_strided_slice %148 {offsets = [0, 96], sizes = [128, 32], strides = [1, 1]} : vector<128x128xf32> to vector<128x32xf32>
    %158 = arith.mulf %155, %141 : vector<128x32xf32>
    %159 = arith.mulf %154, %157 : vector<128x32xf32>
    %160 = arith.addf %158, %159 : vector<128x32xf32>
    %161 = math.tanh %160 : vector<128x32xf32>
    %162 = arith.mulf %156, %161 : vector<128x32xf32>
    %c0_34 = arith.constant 0 : index
    %c0_35 = arith.constant 0 : index
    %163 = vector.load %arg5[%c0_34, %c0_35] : memref<1x32xf32, #tpu.memory_space<vmem>>, vector<1x32xf32>
    %164 = vector.broadcast %163 : vector<1x32xf32> to vector<128x32xf32>
    %165 = arith.mulf %162, %164 : vector<128x32xf32>
    %cst_36 = arith.constant dense<0.000000e+00> : vector<128xf32>
    %166 = vector.multi_reduction <add>, %165, %cst_36 [1] : vector<128x32xf32> to vector<128xf32>
    %167 = vector.shape_cast %166 : vector<128xf32> to vector<128x1xf32>
    %c0_37 = arith.constant 0 : index
    %168 = memref.load %arg6[%c0_37] : memref<1xf32, #tpu.memory_space<smem>>
    %169 = vector.broadcast %168 : f32 to vector<128x1xf32>
    %170 = arith.addf %167, %169 : vector<128x1xf32>
    %c0_38 = arith.constant 0 : index
    %c0_39 = arith.constant 0 : index
    %171 = vector.load %arg7[%c0_38, %c0_39] : memref<128x1xf32, #tpu.memory_space<vmem>>, vector<128x1xf32>
    tpu.vector_store %arg7[%c0_38, %c0_39], %170 {strides = array<i32>} : memref<128x1xf32, #tpu.memory_space<vmem>>, vector<128x1xf32>,
    return
  }
  func.func @transform_0(%arg0: i32) -> (i32, i32, i32) {
    %c0_i32 = arith.constant 0 : i32
    %c0_i32_0 = arith.constant 0 : i32
    %c0_i32_1 = arith.constant 0 : i32
    return %c0_i32, %arg0, %c0_i32_0 : i32, i32, i32
  }
  func.func @transform_1(%arg0: i32) -> (i32, i32) {
    %c0_i32 = arith.constant 0 : i32
    %c0_i32_0 = arith.constant 0 : i32
    %c0_i32_1 = arith.constant 0 : i32
    return %c0_i32, %c0_i32_0 : i32, i32
  }
  func.func @transform_2(%arg0: i32) -> (i32, i32) {
    %c0_i32 = arith.constant 0 : i32
    %c0_i32_0 = arith.constant 0 : i32
    %c0_i32_1 = arith.constant 0 : i32
    return %c0_i32, %c0_i32_0 : i32, i32
  }
  func.func @transform_3(%arg0: i32) -> (i32, i32) {
    %c0_i32 = arith.constant 0 : i32
    %c0_i32_0 = arith.constant 0 : i32
    %c0_i32_1 = arith.constant 0 : i32
    return %c0_i32, %c0_i32_0 : i32, i32
  }
  func.func @transform_4(%arg0: i32) -> (i32, i32) {
    %c0_i32 = arith.constant 0 : i32
    %c0_i32_0 = arith.constant 0 : i32
    %c0_i32_1 = arith.constant 0 : i32
    return %c0_i32, %c0_i32_0 : i32, i32
  }
  func.func @transform_5(%arg0: i32) -> i32 {
    %c0_i32 = arith.constant 0 : i32
    %c0_i32_0 = arith.constant 0 : i32
    return %c0_i32 : i32
  }
  func.func @transform_6(%arg0: i32) -> (i32, i32) {
    %c0_i32 = arith.constant 0 : i32
    %c0_i32_0 = arith.constant 0 : i32
    return %arg0, %c0_i32 : i32, i32
  }
}

</mosaic_0001>

<llo_original>
// kernel: tpu_custom_call.1
$region0: #{tpu_custom_call.1}
  #allocation0 [shape = 'u32[]', space=smem, size = 0x4, offset = 0x4, fixed_abs, tag = 'smem constant byte address 0x4 - core index']
  #allocation1 [shape = 'u32[144,128]{1,0:T(1,128)}', space=vmem, size = 0x12000, scoped, tag = 'internal scratch']
  #allocation2 [shape = 'f32[1]{0:T(128)S(6)}', space=smem, size = 0x200, scoped, tag = 'scoped memory for tpu_custom_call.1']
  %s0 = inlined_call_operand.vmem [shape: f32[8,256,16], index: 0, kind: input, shape index: {}]
  %s1 = inlined_call_operand.vmem [shape: f32[16,128], index: 1, kind: input, shape index: {}]
  %s2 = inlined_call_operand.vmem [shape: f32[32,128], index: 2, kind: input, shape index: {}]
  %s3 = inlined_call_operand.vmem [shape: f32[1,128], index: 3, kind: input, shape index: {}]
  %s4 = inlined_call_operand.vmem [shape: f32[1,32], index: 4, kind: input, shape index: {}]
  %s5 = inlined_call_operand.<no memory space> [shape: f32[1], index: 5, kind: input, shape index: {}]
  %s6 = inlined_call_operand.vmem [shape: f32[256,1], index: 6, kind: output, shape index: {}]
  %s7 = sld [smem:[#allocation0]]
  $region95: #{tpu_custom_call.1} parent=0
    _
  %s9 = ssub.s32 1, %s7
  %s10 = scalar_select 0, %s9, %s7
  %11 = sst [smem:[#allocation2]] %s5
  $region1: #{tpu_custom_call.1} parent=0
    #allocation3 [shape = 'u8[1048576]{0}', space=vmem, size = 0x100000, scoped, tag = 'input window, operand 0']
    loop: start=0, step=1, limit=4
    $region2: #{tpu_custom_call.1} parent=1 // loop_pre_header
      _
    $region3: #{tpu_custom_call.1} parent=1 // loop_header
      %s13 = sphi 0, %s17
      %p14 = scmp.ge.s32.totalorder %s13, 4
      %s23 = sphi 0, %s25
      %s26 = sphi 0, %s23
      %s27 = sphi 0, %s26
      %s43 = sphi 0, %s27
      %s47 = sphi 0, %s47
      %s49 = sphi 0, %s47
      %s50 = sphi 0, %s49
      %s64 = sphi 0, %s50
      %s68 = sphi 0, %s68
      %s70 = sphi 0, %s68
      %s71 = sphi 0, %s70
      %s85 = sphi 0, %s71
      %s89 = sphi 0, %s89
      %s91 = sphi 0, %s89
      %s92 = sphi 0, %s91
      %s106 = sphi 0, %s92
      %s110 = sphi 0, %s110
      %s112 = sphi 0, %s110
      %s113 = sphi 0, %s112
      %s127 = sphi 0, %s113
      %s131 = sphi 0, %s131
      %s133 = sphi 0, %s131
      %s134 = sphi 0, %s133
      %s148 = sphi 0, %s134
      %s154 = sphi 0, %s156
      %s157 = sphi 0, %s154
      %s158 = sphi 0, %s157
      %s174 = sphi 0, %s158
    $region4: #{tpu_custom_call.1} parent=1 // loop_header_branch
      %16 = sbr.rel (%p14) target = $region8
    $region5: #{tpu_custom_call.1} parent=1 // loop_body
      %s18 = ssub.s32 %s13, 1
      %s19 = ssub.s32 %s13, 2
      %s20 = sadd.s32 %s13, 1
      %s21 = ssub.s32 %s13, %s20
      %p22 = scmp.eq.s32.totalorder %s21, 0
      %s24 = sadd.s32 %s23, 1
      %s25 = scalar_select %p22, %s23, %s24
      %p28 = pneg %p22
      %p29 = scmp.eq.s32.totalorder %s13, 1
      %p30 = por %p28, %p29
      %p31 = scmp.ne.s32.totalorder %s23, %s26
      %p32 = scmp.eq.s32.totalorder %s13, 0
      %p33 = por %p31, %p32
      %p34 = scmp.ne.s32.totalorder %s23, %s26
      %p35 = scmp.eq.s32.totalorder %s18, 1
      %p36 = por %p34, %p35
      %p37 = scmp.ne.s32.totalorder %s26, %s27
      %p38 = scmp.eq.s32.totalorder %s18, 0
      %p39 = por %p37, %p38
      %p40 = scmp.ne.s32.totalorder %s26, %s27
      %p41 = scmp.eq.s32.totalorder %s19, 1
      %p42 = por %p40, %p41
      %p44 = scmp.ne.s32.totalorder %s27, %s43
      %p45 = scmp.eq.s32.totalorder %s19, 0
      %p46 = por %p44, %p45
      %s48 = sadd.s32 %s47, 1
      %p51 = scmp.eq.s32.totalorder %s13, 1
      %p52 = scmp.ne.s32.totalorder %s47, %s49
      %p53 = scmp.eq.s32.totalorder %s13, 0
      %p54 = por %p52, %p53
      %p55 = scmp.ne.s32.totalorder %s47, %s49
      %p56 = scmp.eq.s32.totalorder %s18, 1
      %p57 = por %p55, %p56
      %p58 = scmp.ne.s32.totalorder %s49, %s50
      %p59 = scmp.eq.s32.totalorder %s18, 0
      %p60 = por %p58, %p59
      %p61 = scmp.ne.s32.totalorder %s49, %s50
      %p62 = scmp.eq.s32.totalorder %s19, 1
      %p63 = por %p61, %p62
      %p65 = scmp.ne.s32.totalorder %s50, %s64
      %p66 = scmp.eq.s32.totalorder %s19, 0
      %p67 = por %p65, %p66
      %s69 = sadd.s32 %s68, 1
      %p72 = scmp.eq.s32.totalorder %s13, 1
      %p73 = scmp.ne.s32.totalorder %s68, %s70
      %p74 = scmp.eq.s32.totalorder %s13, 0
      %p75 = por %p73, %p74
      %p76 = scmp.ne.s32.totalorder %s68, %s70
      %p77 = scmp.eq.s32.totalorder %s18, 1
      %p78 = por %p76, %p77
      %p79 = scmp.ne.s32.totalorder %s70, %s71
      %p80 = scmp.eq.s32.totalorder %s18, 0
      %p81 = por %p79, %p80
      %p82 = scmp.ne.s32.totalorder %s70, %s71
      %p83 = scmp.eq.s32.totalorder %s19, 1
      %p84 = por %p82, %p83
      %p86 = scmp.ne.s32.totalorder %s71, %s85
      %p87 = scmp.eq.s32.totalorder %s19, 0
      %p88 = por %p86, %p87
      %s90 = sadd.s32 %s89, 1
      %p93 = scmp.eq.s32.totalorder %s13, 1
      %p94 = scmp.ne.s32.totalorder %s89, %s91
      %p95 = scmp.eq.s32.totalorder %s13, 0
      %p96 = por %p94, %p95
      %p97 = scmp.ne.s32.totalorder %s89, %s91
      %p98 = scmp.eq.s32.totalorder %s18, 1
      %p99 = por %p97, %p98
      %p100 = scmp.ne.s32.totalorder %s91, %s92
      %p101 = scmp.eq.s32.totalorder %s18, 0
      %p102 = por %p100, %p101
      %p103 = scmp.ne.s32.totalorder %s91, %s92
      %p104 = scmp.eq.s32.totalorder %s19, 1
      %p105 = por %p103, %p104
      %p107 = scmp.ne.s32.totalorder %s92, %s106
      %p108 = scmp.eq.s32.totalorder %s19, 0
      %p109 = por %p107, %p108
      %s111 = sadd.s32 %s110, 1
      %p114 = scmp.eq.s32.totalorder %s13, 1
      %p115 = scmp.ne.s32.totalorder %s110, %s112
      %p116 = scmp.eq.s32.totalorder %s13, 0
      %p117 = por %p115, %p116
      %p118 = scmp.ne.s32.totalorder %s110, %s112
      %p119 = scmp.eq.s32.totalorder %s18, 1
      %p120 = por %p118, %p119
      %p121 = scmp.ne.s32.totalorder %s112, %s113
      %p122 = scmp.eq.s32.totalorder %s18, 0
      %p123 = por %p121, %p122
      %p124 = scmp.ne.s32.totalorder %s112, %s113
      %p125 = scmp.eq.s32.totalorder %s19, 1
      %p126 = por %p124, %p125
      %p128 = scmp.ne.s32.totalorder %s113, %s127
      %p129 = scmp.eq.s32.totalorder %s19, 0
      %p130 = por %p128, %p129
      %s132 = sadd.s32 %s131, 1
      %p135 = scmp.eq.s32.totalorder %s13, 1
      %p136 = scmp.ne.s32.totalorder %s131, %s133
      %p137 = scmp.eq.s32.totalorder %s13, 0
      %p138 = por %p136, %p137
      %p139 = scmp.ne.s32.totalorder %s131, %s133
      %p140 = scmp.eq.s32.totalorder %s18, 1
      %p141 = por %p139, %p140
      %p142 = scmp.ne.s32.totalorder %s133, %s134
      %p143 = scmp.eq.s32.totalorder %s18, 0
      %p144 = por %p142, %p143
      %p145 = scmp.ne.s32.totalorder %s133, %s134
      %p146 = scmp.eq.s32.totalorder %s19, 1
      %p147 = por %p145, %p146
      %p149 = scmp.ne.s32.totalorder %s134, %s148
      %p150 = scmp.eq.s32.totalorder %s19, 0
      %p151 = por %p149, %p150
      %s152 = ssub.s32 %s13, %s20
      %p153 = scmp.eq.s32.totalorder %s152, 0
      %s155 = sadd.s32 %s154, 1
      %s156 = scalar_select %p153, %s154, %s155
      %p159 = pneg %p153
      %p160 = scmp.eq.s32.totalorder %s13, 1
      %p161 = por %p159, %p160
      %p162 = scmp.ne.s32.totalorder %s154, %s157
      %p163 = scmp.eq.s32.totalorder %s13, 0
      %p164 = por %p162, %p163
      %p165 = scmp.ne.s32.totalorder %s154, %s157
      %p166 = scmp.eq.s32.totalorder %s18, 1
      %p167 = por %p165, %p166
      %p168 = scmp.ne.s32.totalorder %s157, %s158
      %p169 = scmp.eq.s32.totalorder %s18, 0
      %p170 = por %p168, %p169
      %p171 = scmp.ne.s32.totalorder %s157, %s158
      %p172 = scmp.eq.s32.totalorder %s19, 1
      %p173 = por %p171, %p172
      %p175 = scmp.ne.s32.totalorder %s158, %s174
      %p176 = scmp.eq.s32.totalorder %s19, 0
      %p177 = por %p175, %p176
      %p178 = scmp.le.s32.totalorder 1, %s13
      %p179 = scmp.lt.s32.totalorder %s13, 3
      %p180 = pnand %p178, %p179
      %p181 = pneg %p180
      // Predicated region
      $region9: #{tpu_custom_call.1} parent=5 // pred_check
        _
      $region10: #{tpu_custom_call.1} parent=5 // pred_check_branch
        %183 = sbr.rel (%p180) target = $region12
      $region11: #{tpu_custom_call.1} parent=5 // pred_region
        %s184 = ssub.s32 %s13, 1
        // Predicated region
        $region13: #{tpu_custom_call.1} parent=11 // pred_check
          %p185 = pneg %p60
        $region14: #{tpu_custom_call.1} parent=11 // pred_check_branch
          %187 = sbr.rel (%p185) target = $region16
        $region15: #{tpu_custom_call.1} parent=11 // pred_region
          _
        $region16: #{tpu_custom_call.1} parent=11 // pred_fallthru
          _
        // Predicated region
        $region17: #{tpu_custom_call.1} parent=11 // pred_check
          %p188 = pneg %p81
        $region18: #{tpu_custom_call.1} parent=11 // pred_check_branch
          %190 = sbr.rel (%p188) target = $region20
        $region19: #{tpu_custom_call.1} parent=11 // pred_region
          _
        $region20: #{tpu_custom_call.1} parent=11 // pred_fallthru
          _
        // Predicated region
        $region21: #{tpu_custom_call.1} parent=11 // pred_check
          %p191 = pneg %p102
        $region22: #{tpu_custom_call.1} parent=11 // pred_check_branch
          %193 = sbr.rel (%p191) target = $region24
        $region23: #{tpu_custom_call.1} parent=11 // pred_region
          _
        $region24: #{tpu_custom_call.1} parent=11 // pred_fallthru
          _
        // Predicated region
        $region25: #{tpu_custom_call.1} parent=11 // pred_check
          %p194 = pneg %p123
        $region26: #{tpu_custom_call.1} parent=11 // pred_check_branch
          %196 = sbr.rel (%p194) target = $region28
        $region27: #{tpu_custom_call.1} parent=11 // pred_region
          _
        $region28: #{tpu_custom_call.1} parent=11 // pred_fallthru
          _
        // Predicated region
        $region29: #{tpu_custom_call.1} parent=11 // pred_check
          %p197 = pneg %p144
        $region30: #{tpu_custom_call.1} parent=11 // pred_check_branch
          %199 = sbr.rel (%p197) target = $region32
        $region31: #{tpu_custom_call.1} parent=11 // pred_region
          _
        $region32: #{tpu_custom_call.1} parent=11 // pred_fallthru
          _
      $region12: #{tpu_custom_call.1} parent=5 // pred_fallthru
        _
      %p200 = scmp.lt.s32.totalorder %s13, 2
      // Predicated region
      $region33: #{tpu_custom_call.1} parent=5 // pred_check
        %p201 = pneg %p200
      $region34: #{tpu_custom_call.1} parent=5 // pred_check_branch
        %203 = sbr.rel (%p201) target = $region36
      $region35: #{tpu_custom_call.1} parent=5 // pred_region
        // Predicated region
        $region37: #{tpu_custom_call.1} parent=35 // pred_check
          %p204 = pneg %p33
        $region38: #{tpu_custom_call.1} parent=35 // pred_check_branch
          %206 = sbr.rel (%p204) target = $region40
        $region39: #{tpu_custom_call.1} parent=35 // pred_region
          %s207 = sand.u32 %s23, 1
          %s208 = sand.u32 %s23, 1
          %s209 = smul.addr %s208, 1024
          %s210 = scalar_lea.vmem [#allocation3], %s209
          %s211 = smul.u32 16, %s13
          %s212 = smul.addr %s211, 8
          %s213 = scalar_lea.vmem %s0, %s212
          // Predicated region
          $region41: #{tpu_custom_call.1} parent=39 // pred_check
            _
          $region42: #{tpu_custom_call.1} parent=39 // pred_check_branch
            %215 = sbr.rel (0) target = $region44
          $region43: #{tpu_custom_call.1} parent=39 // pred_region
            // Predicated region
            $region45: #{tpu_custom_call.1} parent=43 // pred_check
              _
            $region46: #{tpu_custom_call.1} parent=43 // pred_check_branch
              %217 = sbr.rel (0) target = $region48
            $region47: #{tpu_custom_call.1} parent=43 // pred_region
              // Predicated region
              $region60: #{tpu_custom_call.1} parent=47 // pred_check
                _
              $region61: #{tpu_custom_call.1} parent=47 // pred_check_branch
                %486 = sbr.rel (0) target = $region63
              $region62: #{tpu_custom_call.1} parent=47 // pred_region
                loop: start=0, step=1, limit=1
                $region64: #{tpu_custom_call.1} parent=62 // loop_pre_header
                  _
                $region65: #{tpu_custom_call.1} parent=62 // loop_header
                  %s488 = sphi 0, %s492
                  %p489 = scmp.ge.s32.totalorder %s488, 1
                  %s493 = sphi %s213, %s213
                  %s494 = sphi %s210, %s210
                $region66: #{tpu_custom_call.1} parent=62 // loop_header_branch
                  %491 = sbr.rel (%p489) target = $region70
                $region67: #{tpu_custom_call.1} parent=62 // loop_body
                  %v495 = vld [vmem:[%s493] sm:$0xff]
                  %496 = vst [vmem:[%s494] sm:$0xff] %v495
                  %v497 = vld [vmem:[%s493 + $0x8] sm:$0xff]
                  %498 = vst [vmem:[%s494 + $0x8] sm:$0xff] %v497
                  %v499 = vld [vmem:[%s493 + $0x10] sm:$0xff]
                  %500 = vst [vmem:[%s494 + $0x10] sm:$0xff] %v499
                  %v501 = vld [vmem:[%s493 + $0x18] sm:$0xff]
                  %502 = vst [vmem:[%s494 + $0x18] sm:$0xff] %v501
                  %v503 = vld [vmem:[%s493 + $0x20] sm:$0xff]
                  %504 = vst [vmem:[%s494 + $0x20] sm:$0xff] %v503
                  %v505 = vld [vmem:[%s493 + $0x28] sm:$0xff]
                  %506 = vst [vmem:[%s494 + $0x28] sm:$0xff] %v505
                  %v507 = vld [vmem:[%s493 + $0x30] sm:$0xff]
                  %508 = vst [vmem:[%s494 + $0x30] sm:$0xff] %v507
                  %v509 = vld [vmem:[%s493 + $0x38] sm:$0xff]
                  %510 = vst [vmem:[%s494 + $0x38] sm:$0xff] %v509
                  %v511 = vld [vmem:[%s493 + $0x40] sm:$0xff]
                  %512 = vst [vmem:[%s494 + $0x40] sm:$0xff] %v511
                  %v513 = vld [vmem:[%s493 + $0x48] sm:$0xff]
                  %514 = vst [vmem:[%s494 + $0x48] sm:$0xff] %v513
                  %v515 = vld [vmem:[%s493 + $0x50] sm:$0xff]
                  %516 = vst [vmem:[%s494 + $0x50] sm:$0xff] %v515
                  %v517 = vld [vmem:[%s493 + $0x58] sm:$0xff]
                  %518 = vst [vmem:[%s494 + $0x58] sm:$0xff] %v517
                  %v519 = vld [vmem:[%s493 + $0x60] sm:$0xff]
                  %520 = vst [vmem:[%s494 + $0x60] sm:$0xff] %v519
                  %v521 = vld [vmem:[%s493 + $0x68] sm:$0xff]
                  %522 = vst [vmem:[%s494 + $0x68] sm:$0xff] %v521
                  %v523 = vld [vmem:[%s493 + $0x70] sm:$0xff]
                  %524 = vst [vmem:[%s494 + $0x70] sm:$0xff] %v523
                  %v525 = vld [vmem:[%s493 + $0x78] sm:$0xff]
                  %526 = vst [vmem:[%s494 + $0x78] sm:$0xff] %v525
                  %v527 = vld [vmem:[%s493 + $0x100] sm:$0xff]
                  %528 = vst [vmem:[%s494 + $0x80] sm:$0xff] %v527
                  %v529 = vld [vmem:[%s493 + $0x108] sm:$0xff]
                  %530 = vst [vmem:[%s494 + $0x88] sm:$0xff] %v529
                  %v531 = vld [vmem:[%s493 + $0x110] sm:$0xff]
                  %532 = vst [vmem:[%s494 + $0x90] sm:$0xff] %v531
                  %v533 = vld [vmem:[%s493 + $0x118] sm:$0xff]
                  %534 = vst [vmem:[%s494 + $0x98] sm:$0xff] %v533
                  %v535 = vld [vmem:[%s493 + $0x120] sm:$0xff]
                  %536 = vst [vmem:[%s494 + $0xa0] sm:$0xff] %v535
                  %v537 = vld [vmem:[%s493 + $0x128] sm:$0xff]
                  %538 = vst [vmem:[%s494 + $0xa8] sm:$0xff] %v537
                  %v539 = vld [vmem:[%s493 + $0x130] sm:$0xff]
                  %540 = vst [vmem:[%s494 + $0xb0] sm:$0xff] %v539
                  %v541 = vld [vmem:[%s493 + $0x138] sm:$0xff]
                  %542 = vst [vmem:[%s494 + $0xb8] sm:$0xff] %v541
                  %v543 = vld [vmem:[%s493 + $0x140] sm:$0xff]
                  %544 = vst [vmem:[%s494 + $0xc0] sm:$0xff] %v543
                  %v545 = vld [vmem:[%s493 + $0x148] sm:$0xff]
                  %546 = vst [vmem:[%s494 + $0xc8] sm:$0xff] %v545
                  %v547 = vld [vmem:[%s493 + $0x150] sm:$0xff]
                  %548 = vst [vmem:[%s494 + $0xd0] sm:$0xff] %v547
                  %v549 = vld [vmem:[%s493 + $0x158] sm:$0xff]
                  %550 = vst [vmem:[%s494 + $0xd8] sm:$0xff] %v549
                  %v551 = vld [vmem:[%s493 + $0x160] sm:$0xff]
                  %552 = vst [vmem:[%s494 + $0xe0] sm:$0xff] %v551
                  %v553 = vld [vmem:[%s493 + $0x168] sm:$0xff]
                  %554 = vst [vmem:[%s494 + $0xe8] sm:$0xff] %v553
                  %v555 = vld [vmem:[%s493 + $0x170] sm:$0xff]
                  %556 = vst [vmem:[%s494 + $0xf0] sm:$0xff] %v555
                  %v557 = vld [vmem:[%s493 + $0x178] sm:$0xff]
                  %558 = vst [vmem:[%s494 + $0xf8] sm:$0xff] %v557
                  %v559 = vld [vmem:[%s493 + $0x200] sm:$0xff]
                  %560 = vst [vmem:[%s494 + $0x100] sm:$0xff] %v559
                  %v561 = vld [vmem:[%s493 + $0x208] sm:$0xff]
                  %562 = vst [vmem:[%s494 + $0x108] sm:$0xff] %v561
                  %v563 = vld [vmem:[%s493 + $0x210] sm:$0xff]
                  %564 = vst [vmem:[%s494 + $0x110] sm:$0xff] %v563
                  %v565 = vld [vmem:[%s493 + $0x218] sm:$0xff]
                  %566 = vst [vmem:[%s494 + $0x118] sm:$0xff] %v565
                  %v567 = vld [vmem:[%s493 + $0x220] sm:$0xff]
                  %568 = vst [vmem:[%s494 + $0x120] sm:$0xff] %v567
                  %v569 = vld [vmem:[%s493 + $0x228] sm:$0xff]
                  %570 = vst [vmem:[%s494 + $0x128] sm:$0xff] %v569
                  %v571 = vld [vmem:[%s493 + $0x230] sm:$0xff]
                  %572 = vst [vmem:[%s494 + $0x130] sm:$0xff] %v571
                  %v573 = vld [vmem:[%s493 + $0x238] sm:$0xff]
                  %574 = vst [vmem:[%s494 + $0x138] sm:$0xff] %v573
                  %v575 = vld [vmem:[%s493 + $0x240] sm:$0xff]
                  %576 = vst [vmem:[%s494 + $0x140] sm:$0xff] %v575
                  %v577 = vld [vmem:[%s493 + $0x248] sm:$0xff]
                  %578 = vst [vmem:[%s494 + $0x148] sm:$0xff] %v577
                  %v579 = vld [vmem:[%s493 + $0x250] sm:$0xff]
                  %580 = vst [vmem:[%s494 + $0x150] sm:$0xff] %v579
                  %v581 = vld [vmem:[%s493 + $0x258] sm:$0xff]
                  %582 = vst [vmem:[%s494 + $0x158] sm:$0xff] %v581
                  %v583 = vld [vmem:[%s493 + $0x260] sm:$0xff]
                  %584 = vst [vmem:[%s494 + $0x160] sm:$0xff] %v583
                  %v585 = vld [vmem:[%s493 + $0x268] sm:$0xff]
                  %586 = vst [vmem:[%s494 + $0x168] sm:$0xff] %v585
                  %v587 = vld [vmem:[%s493 + $0x270] sm:$0xff]
                  %588 = vst [vmem:[%s494 + $0x170] sm:$0xff] %v587
                  %v589 = vld [vmem:[%s493 + $0x278] sm:$0xff]
                  %590 = vst [vmem:[%s494 + $0x178] sm:$0xff] %v589
                  %v591 = vld [vmem:[%s493 + $0x300] sm:$0xff]
                  %592 = vst [vmem:[%s494 + $0x180] sm:$0xff] %v591
                  %v593 = vld [vmem:[%s493 + $0x308] sm:$0xff]
                  %594 = vst [vmem:[%s494 + $0x188] sm:$0xff] %v593
                  %v595 = vld [vmem:[%s493 + $0x310] sm:$0xff]
                  %596 = vst [vmem:[%s494 + $0x190] sm:$0xff] %v595
                  %v597 = vld [vmem:[%s493 + $0x318] sm:$0xff]
                  %598 = vst [vmem:[%s494 + $0x198] sm:$0xff] %v597
                  %v599 = vld [vmem:[%s493 + $0x320] sm:$0xff]
                  %600 = vst [vmem:[%s494 + $0x1a0] sm:$0xff] %v599
                  %v601 = vld [vmem:[%s493 + $0x328] sm:$0xff]
                  %602 = vst [vmem:[%s494 + $0x1a8] sm:$0xff] %v601
                  %v603 = vld [vmem:[%s493 + $0x330] sm:$0xff]
                  %604 = vst [vmem:[%s494 + $0x1b0] sm:$0xff] %v603
                  %v605 = vld [vmem:[%s493 + $0x338] sm:$0xff]
                  %606 = vst [vmem:[%s494 + $0x1b8] sm:$0xff] %v605
                  %v607 = vld [vmem:[%s493 + $0x340] sm:$0xff]
                  %608 = vst [vmem:[%s494 + $0x1c0] sm:$0xff] %v607
                  %v609 = vld [vmem:[%s493 + $0x348] sm:$0xff]
                  %610 = vst [vmem:[%s494 + $0x1c8] sm:$0xff] %v609
                  %v611 = vld [vmem:[%s493 + $0x350] sm:$0xff]
                  %612 = vst [vmem:[%s494 + $0x1d0] sm:$0xff] %v611
                  %v613 = vld [vmem:[%s493 + $0x358] sm:$0xff]
                  %614 = vst [vmem:[%s494 + $0x1d8] sm:$0xff] %v613
                  %v615 = vld [vmem:[%s493 + $0x360] sm:$0xff]
                  %616 = vst [vmem:[%s494 + $0x1e0] sm:$0xff] %v615
                  %v617 = vld [vmem:[%s493 + $0x368] sm:$0xff]
                  %618 = vst [vmem:[%s494 + $0x1e8] sm:$0xff] %v617
                  %v619 = vld [vmem:[%s493 + $0x370] sm:$0xff]
                  %620 = vst [vmem:[%s494 + $0x1f0] sm:$0xff] %v619
                  %v621 = vld [vmem:[%s493 + $0x378] sm:$0xff]
                  %622 = vst [vmem:[%s494 + $0x1f8] sm:$0xff] %v621
                  %v623 = vld [vmem:[%s493 + $0x400] sm:$0xff]
                  %624 = vst [vmem:[%s494 + $0x200] sm:$0xff] %v623
                  %v625 = vld [vmem:[%s493 + $0x408] sm:$0xff]
                  %626 = vst [vmem:[%s494 + $0x208] sm:$0xff] %v625
                  %v627 = vld [vmem:[%s493 + $0x410] sm:$0xff]
                  %628 = vst [vmem:[%s494 + $0x210] sm:$0xff] %v627
                  %v629 = vld [vmem:[%s493 + $0x418] sm:$0xff]
                  %630 = vst [vmem:[%s494 + $0x218] sm:$0xff] %v629
                  %v631 = vld [vmem:[%s493 + $0x420] sm:$0xff]
                  %632 = vst [vmem:[%s494 + $0x220] sm:$0xff] %v631
                  %v633 = vld [vmem:[%s493 + $0x428] sm:$0xff]
                  %634 = vst [vmem:[%s494 + $0x228] sm:$0xff] %v633
                  %v635 = vld [vmem:[%s493 + $0x430] sm:$0xff]
                  %636 = vst [vmem:[%s494 + $0x230] sm:$0xff] %v635
                  %v637 = vld [vmem:[%s493 + $0x438] sm:$0xff]
                  %638 = vst [vmem:[%s494 + $0x238] sm:$0xff] %v637
                  %v639 = vld [vmem:[%s493 + $0x440] sm:$0xff]
                  %640 = vst [vmem:[%s494 + $0x240] sm:$0xff] %v639
                  %v641 = vld [vmem:[%s493 + $0x448] sm:$0xff]
                  %642 = vst [vmem:[%s494 + $0x248] sm:$0xff] %v641
                  %v643 = vld [vmem:[%s493 + $0x450] sm:$0xff]
                  %644 = vst [vmem:[%s494 + $0x250] sm:$0xff] %v643
                  %v645 = vld [vmem:[%s493 + $0x458] sm:$0xff]
                  %646 = vst [vmem:[%s494 + $0x258] sm:$0xff] %v645
                  %v647 = vld [vmem:[%s493 + $0x460] sm:$0xff]
                  %648 = vst [vmem:[%s494 + $0x260] sm:$0xff] %v647
                  %v649 = vld [vmem:[%s493 + $0x468] sm:$0xff]
                  %650 = vst [vmem:[%s494 + $0x268] sm:$0xff] %v649
                  %v651 = vld [vmem:[%s493 + $0x470] sm:$0xff]
                  %652 = vst [vmem:[%s494 + $0x270] sm:$0xff] %v651
                  %v653 = vld [vmem:[%s493 + $0x478] sm:$0xff]
                  %654 = vst [vmem:[%s494 + $0x278] sm:$0xff] %v653
                  %v655 = vld [vmem:[%s493 + $0x500] sm:$0xff]
                  %656 = vst [vmem:[%s494 + $0x280] sm:$0xff] %v655
                  %v657 = vld [vmem:[%s493 + $0x508] sm:$0xff]
                  %658 = vst [vmem:[%s494 + $0x288] sm:$0xff] %v657
                  %v659 = vld [vmem:[%s493 + $0x510] sm:$0xff]
                  %660 = vst [vmem:[%s494 + $0x290] sm:$0xff] %v659
                  %v661 = vld [vmem:[%s493 + $0x518] sm:$0xff]
                  %662 = vst [vmem:[%s494 + $0x298] sm:$0xff] %v661
                  %v663 = vld [vmem:[%s493 + $0x520] sm:$0xff]
                  %664 = vst [vmem:[%s494 + $0x2a0] sm:$0xff] %v663
                  %v665 = vld [vmem:[%s493 + $0x528] sm:$0xff]
                  %666 = vst [vmem:[%s494 + $0x2a8] sm:$0xff] %v665
                  %v667 = vld [vmem:[%s493 + $0x530] sm:$0xff]
                  %668 = vst [vmem:[%s494 + $0x2b0] sm:$0xff] %v667
                  %v669 = vld [vmem:[%s493 + $0x538] sm:$0xff]
                  %670 = vst [vmem:[%s494 + $0x2b8] sm:$0xff] %v669
                  %v671 = vld [vmem:[%s493 + $0x540] sm:$0xff]
                  %672 = vst [vmem:[%s494 + $0x2c0] sm:$0xff] %v671
                  %v673 = vld [vmem:[%s493 + $0x548] sm:$0xff]
                  %674 = vst [vmem:[%s494 + $0x2c8] sm:$0xff] %v673
                  %v675 = vld [vmem:[%s493 + $0x550] sm:$0xff]
                  %676 = vst [vmem:[%s494 + $0x2d0] sm:$0xff] %v675
                  %v677 = vld [vmem:[%s493 + $0x558] sm:$0xff]
                  %678 = vst [vmem:[%s494 + $0x2d8] sm:$0xff] %v677
                  %v679 = vld [vmem:[%s493 + $0x560] sm:$0xff]
                  %680 = vst [vmem:[%s494 + $0x2e0] sm:$0xff] %v679
                  %v681 = vld [vmem:[%s493 + $0x568] sm:$0xff]
                  %682 = vst [vmem:[%s494 + $0x2e8] sm:$0xff] %v681
                  %v683 = vld [vmem:[%s493 + $0x570] sm:$0xff]
                  %684 = vst [vmem:[%s494 + $0x2f0] sm:$0xff] %v683
                  %v685 = vld [vmem:[%s493 + $0x578] sm:$0xff]
                  %686 = vst [vmem:[%s494 + $0x2f8] sm:$0xff] %v685
                  %v687 = vld [vmem:[%s493 + $0x600] sm:$0xff]
                  %688 = vst [vmem:[%s494 + $0x300] sm:$0xff] %v687
                  %v689 = vld [vmem:[%s493 + $0x608] sm:$0xff]
                  %690 = vst [vmem:[%s494 + $0x308] sm:$0xff] %v689
                  %v691 = vld [vmem:[%s493 + $0x610] sm:$0xff]
                  %692 = vst [vmem:[%s494 + $0x310] sm:$0xff] %v691
                  %v693 = vld [vmem:[%s493 + $0x618] sm:$0xff]
                  %694 = vst [vmem:[%s494 + $0x318] sm:$0xff] %v693
                  %v695 = vld [vmem:[%s493 + $0x620] sm:$0xff]
                  %696 = vst [vmem:[%s494 + $0x320] sm:$0xff] %v695
                  %v697 = vld [vmem:[%s493 + $0x628] sm:$0xff]
                  %698 = vst [vmem:[%s494 + $0x328] sm:$0xff] %v697
                  %v699 = vld [vmem:[%s493 + $0x630] sm:$0xff]
                  %700 = vst [vmem:[%s494 + $0x330] sm:$0xff] %v699
                  %v701 = vld [vmem:[%s493 + $0x638] sm:$0xff]
                  %702 = vst [vmem:[%s494 + $0x338] sm:$0xff] %v701
                  %v703 = vld [vmem:[%s493 + $0x640] sm:$0xff]
                  %704 = vst [vmem:[%s494 + $0x340] sm:$0xff] %v703
                  %v705 = vld [vmem:[%s493 + $0x648] sm:$0xff]
                  %706 = vst [vmem:[%s494 + $0x348] sm:$0xff] %v705
                  %v707 = vld [vmem:[%s493 + $0x650] sm:$0xff]
                  %708 = vst [vmem:[%s494 + $0x350] sm:$0xff] %v707
                  %v709 = vld [vmem:[%s493 + $0x658] sm:$0xff]
                  %710 = vst [vmem:[%s494 + $0x358] sm:$0xff] %v709
                  %v711 = vld [vmem:[%s493 + $0x660] sm:$0xff]
                  %712 = vst [vmem:[%s494 + $0x360] sm:$0xff] %v711
                  %v713 = vld [vmem:[%s493 + $0x668] sm:$0xff]
                  %714 = vst [vmem:[%s494 + $0x368] sm:$0xff] %v713
                  %v715 = vld [vmem:[%s493 + $0x670] sm:$0xff]
                  %716 = vst [vmem:[%s494 + $0x370] sm:$0xff] %v715
                  %v717 = vld [vmem:[%s493 + $0x678] sm:$0xff]
                  %718 = vst [vmem:[%s494 + $0x378] sm:$0xff] %v717
                  %v719 = vld [vmem:[%s493 + $0x700] sm:$0xff]
                  %720 = vst [vmem:[%s494 + $0x380] sm:$0xff] %v719
                  %v721 = vld [vmem:[%s493 + $0x708] sm:$0xff]
                  %722 = vst [vmem:[%s494 + $0x388] sm:$0xff] %v721
                  %v723 = vld [vmem:[%s493 + $0x710] sm:$0xff]
                  %724 = vst [vmem:[%s494 + $0x390] sm:$0xff] %v723
                  %v725 = vld [vmem:[%s493 + $0x718] sm:$0xff]
                  %726 = vst [vmem:[%s494 + $0x398] sm:$0xff] %v725
                  %v727 = vld [vmem:[%s493 + $0x720] sm:$0xff]
                  %728 = vst [vmem:[%s494 + $0x3a0] sm:$0xff] %v727
                  %v729 = vld [vmem:[%s493 + $0x728] sm:$0xff]
                  %730 = vst [vmem:[%s494 + $0x3a8] sm:$0xff] %v729
                  %v731 = vld [vmem:[%s493 + $0x730] sm:$0xff]
                  %732 = vst [vmem:[%s494 + $0x3b0] sm:$0xff] %v731
                  %v733 = vld [vmem:[%s493 + $0x738] sm:$0xff]
                  %734 = vst [vmem:[%s494 + $0x3b8] sm:$0xff] %v733
                  %v735 = vld [vmem:[%s493 + $0x740] sm:$0xff]
                  %736 = vst [vmem:[%s494 + $0x3c0] sm:$0xff] %v735
                  %v737 = vld [vmem:[%s493 + $0x748] sm:$0xff]
                  %738 = vst [vmem:[%s494 + $0x3c8] sm:$0xff] %v737
                  %v739 = vld [vmem:[%s493 + $0x750] sm:$0xff]
                  %740 = vst [vmem:[%s494 + $0x3d0] sm:$0xff] %v739
                  %v741 = vld [vmem:[%s493 + $0x758] sm:$0xff]
                  %742 = vst [vmem:[%s494 + $0x3d8] sm:$0xff] %v741
                  %v743 = vld [vmem:[%s493 + $0x760] sm:$0xff]
                  %744 = vst [vmem:[%s494 + $0x3e0] sm:$0xff] %v743
                  %v745 = vld [vmem:[%s493 + $0x768] sm:$0xff]
                  %746 = vst [vmem:[%s494 + $0x3e8] sm:$0xff] %v745
                  %v747 = vld [vmem:[%s493 + $0x770] sm:$0xff]
                  %748 = vst [vmem:[%s494 + $0x3f0] sm:$0xff] %v747
                  %v749 = vld [vmem:[%s493 + $0x778] sm:$0xff]
                  %750 = vst [vmem:[%s494 + $0x3f8] sm:$0xff] %v749
                $region68: #{tpu_custom_call.1} parent=62 // loop_footer
                  %s492 = sadd.s32 1, %s488
                $region69: #{tpu_custom_call.1} parent=62 // loop_footer_branch
                  %487 = sbr.rel target = $region65
                $region70: #{tpu_custom_call.1} parent=62 // loop_exit
                  _
              $region63: #{tpu_custom_call.1} parent=47 // pred_fallthru
                _
              // Predicated region
              $region71: #{tpu_custom_call.1} parent=47 // pred_check
                _
              $region72: #{tpu_custom_call.1} parent=47 // pred_check_branch
                %752 = sbr.rel target = $region74
              $region73: #{tpu_custom_call.1} parent=47 // pred_region
                _
              $region74: #{tpu_custom_call.1} parent=47 // pred_fallthru
                _
            $region48: #{tpu_custom_call.1} parent=43 // pred_fallthru
              _
            // Predicated region
            $region49: #{tpu_custom_call.1} parent=43 // pred_check
              _
            $region50: #{tpu_custom_call.1} parent=43 // pred_check_branch
              %219 = sbr.rel target = $region52
            $region51: #{tpu_custom_call.1} parent=43 // pred_region
              loop: start=0, step=1, limit=1
              $region53: #{tpu_custom_call.1} parent=51 // loop_pre_header
                _
              $region54: #{tpu_custom_call.1} parent=51 // loop_header
                %s222 = sphi 0, %s226
                %p223 = scmp.ge.s32.totalorder %s222, 1
                %s227 = sphi %s213, %s213
                %s228 = sphi %s210, %s210
              $region55: #{tpu_custom_call.1} parent=51 // loop_header_branch
                %225 = sbr.rel (%p223) target = $region59
              $region56: #{tpu_custom_call.1} parent=51 // loop_body
                %v229 = vld [vmem:[%s227] sm:$0xff]
                %230 = vst [vmem:[%s228] sm:$0xff] %v229
                %v231 = vld [vmem:[%s227 + $0x8] sm:$0xff]
                %232 = vst [vmem:[%s228 + $0x8] sm:$0xff] %v231
                %v233 = vld [vmem:[%s227 + $0x10] sm:$0xff]
                %234 = vst [vmem:[%s228 + $0x10] sm:$0xff] %v233
                %v235 = vld [vmem:[%s227 + $0x18] sm:$0xff]
                %236 = vst [vmem:[%s228 + $0x18] sm:$0xff] %v235
                %v237 = vld [vmem:[%s227 + $0x20] sm:$0xff]
                %238 = vst [vmem:[%s228 + $0x20] sm:$0xff] %v237
                %v239 = vld [vmem:[%s227 + $0x28] sm:$0xff]
                %240 = vst [vmem:[%s228 + $0x28] sm:$0xff] %v239
                %v241 = vld [vmem:[%s227 + $0x30] sm:$0xff]
                %242 = vst [vmem:[%s228 + $0x30] sm:$0xff] %v241
                %v243 = vld [vmem:[%s227 + $0x38] sm:$0xff]
                %244 = vst [vmem:[%s228 + $0x38] sm:$0xff] %v243
                %v245 = vld [vmem:[%s227 + $0x40] sm:$0xff]
                %246 = vst [vmem:[%s228 + $0x40] sm:$0xff] %v245
                %v247 = vld [vmem:[%s227 + $0x48] sm:$0xff]
                %248 = vst [vmem:[%s228 + $0x48] sm:$0xff] %v247
                %v249 = vld [vmem:[%s227 + $0x50] sm:$0xff]
                %250 = vst [vmem:[%s228 + $0x50] sm:$0xff] %v249
                %v251 = vld [vmem:[%s227 + $0x58] sm:$0xff]
                %252 = vst [vmem:[%s228 + $0x58] sm:$0xff] %v251
                %v253 = vld [vmem:[%s227 + $0x60] sm:$0xff]
                %254 = vst [vmem:[%s228 + $0x60] sm:$0xff] %v253
                %v255 = vld [vmem:[%s227 + $0x68] sm:$0xff]
                %256 = vst [vmem:[%s228 + $0x68] sm:$0xff] %v255
                %v257 = vld [vmem:[%s227 + $0x70] sm:$0xff]
                %258 = vst [vmem:[%s228 + $0x70] sm:$0xff] %v257
                %v259 = vld [vmem:[%s227 + $0x78] sm:$0xff]
                %260 = vst [vmem:[%s228 + $0x78] sm:$0xff] %v259
                %v261 = vld [vmem:[%s227 + $0x100] sm:$0xff]
                %262 = vst [vmem:[%s228 + $0x80] sm:$0xff] %v261
                %v263 = vld [vmem:[%s227 + $0x108] sm:$0xff]
                %264 = vst [vmem:[%s228 + $0x88] sm:$0xff] %v263
                %v265 = vld [vmem:[%s227 + $0x110] sm:$0xff]
                %266 = vst [vmem:[%s228 + $0x90] sm:$0xff] %v265
                %v267 = vld [vmem:[%s227 + $0x118] sm:$0xff]
                %268 = vst [vmem:[%s228 + $0x98] sm:$0xff] %v267
                %v269 = vld [vmem:[%s227 + $0x120] sm:$0xff]
                %270 = vst [vmem:[%s228 + $0xa0] sm:$0xff] %v269
                %v271 = vld [vmem:[%s227 + $0x128] sm:$0xff]
                %272 = vst [vmem:[%s228 + $0xa8] sm:$0xff] %v271
                %v273 = vld [vmem:[%s227 + $0x130] sm:$0xff]
                %274 = vst [vmem:[%s228 + $0xb0] sm:$0xff] %v273
                %v275 = vld [vmem:[%s227 + $0x138] sm:$0xff]
                %276 = vst [vmem:[%s228 + $0xb8] sm:$0xff] %v275
                %v277 = vld [vmem:[%s227 + $0x140] sm:$0xff]
                %278 = vst [vmem:[%s228 + $0xc0] sm:$0xff] %v277
                %v279 = vld [vmem:[%s227 + $0x148] sm:$0xff]
                %280 = vst [vmem:[%s228 + $0xc8] sm:$0xff] %v279
                %v281 = vld [vmem:[%s227 + $0x150] sm:$0xff]
                %282 = vst [vmem:[%s228 + $0xd0] sm:$0xff] %v281
                %v283 = vld [vmem:[%s227 + $0x158] sm:$0xff]
                %284 = vst [vmem:[%s228 + $0xd8] sm:$0xff] %v283
                %v285 = vld [vmem:[%s227 + $0x160] sm:$0xff]
                %286 = vst [vmem:[%s228 + $0xe0] sm:$0xff] %v285
                %v287 = vld [vmem:[%s227 + $0x168] sm:$0xff]
                %288 = vst [vmem:[%s228 + $0xe8] sm:$0xff] %v287
                %v289 = vld [vmem:[%s227 + $0x170] sm:$0xff]
                %290 = vst [vmem:[%s228 + $0xf0] sm:$0xff] %v289
                %v291 = vld [vmem:[%s227 + $0x178] sm:$0xff]
                %292 = vst [vmem:[%s228 + $0xf8] sm:$0xff] %v291
                %v293 = vld [vmem:[%s227 + $0x200] sm:$0xff]
                %294 = vst [vmem:[%s228 + $0x100] sm:$0xff] %v293
                %v295 = vld [vmem:[%s227 + $0x208] sm:$0xff]
                %296 = vst [vmem:[%s228 + $0x108] sm:$0xff] %v295
                %v297 = vld [vmem:[%s227 + $0x210] sm:$0xff]
                %298 = vst [vmem:[%s228 + $0x110] sm:$0xff] %v297
                %v299 = vld [vmem:[%s227 + $0x218] sm:$0xff]
                %300 = vst [vmem:[%s228 + $0x118] sm:$0xff] %v299
                %v301 = vld [vmem:[%s227 + $0x220] sm:$0xff]
                %302 = vst [vmem:[%s228 + $0x120] sm:$0xff] %v301
                %v303 = vld [vmem:[%s227 + $0x228] sm:$0xff]
                %304 = vst [vmem:[%s228 + $0x128] sm:$0xff] %v303
                %v305 = vld [vmem:[%s227 + $0x230] sm:$0xff]
                %306 = vst [vmem:[%s228 + $0x130] sm:$0xff] %v305
                %v307 = vld [vmem:[%s227 + $0x238] sm:$0xff]
                %308 = vst [vmem:[%s228 + $0x138] sm:$0xff] %v307
                %v309 = vld [vmem:[%s227 + $0x240] sm:$0xff]
                %310 = vst [vmem:[%s228 + $0x140] sm:$0xff] %v309
                %v311 = vld [vmem:[%s227 + $0x248] sm:$0xff]
                %312 = vst [vmem:[%s228 + $0x148] sm:$0xff] %v311
                %v313 = vld [vmem:[%s227 + $0x250] sm:$0xff]
                %314 = vst [vmem:[%s228 + $0x150] sm:$0xff] %v313
                %v315 = vld [vmem:[%s227 + $0x258] sm:$0xff]
                %316 = vst [vmem:[%s228 + $0x158] sm:$0xff] %v315
                %v317 = vld [vmem:[%s227 + $0x260] sm:$0xff]
                %318 = vst [vmem:[%s228 + $0x160] sm:$0xff] %v317
                %v319 = vld [vmem:[%s227 + $0x268] sm:$0xff]
                %320 = vst [vmem:[%s228 + $0x168] sm:$0xff] %v319
                %v321 = vld [vmem:[%s227 + $0x270] sm:$0xff]
                %322 = vst [vmem:[%s228 + $0x170] sm:$0xff] %v321
                %v323 = vld [vmem:[%s227 + $0x278] sm:$0xff]
                %324 = vst [vmem:[%s228 + $0x178] sm:$0xff] %v323
                %v325 = vld [vmem:[%s227 + $0x300] sm:$0xff]
                %326 = vst [vmem:[%s228 + $0x180] sm:$0xff] %v325
                %v327 = vld [vmem:[%s227 + $0x308] sm:$0xff]
                %328 = vst [vmem:[%s228 + $0x188] sm:$0xff] %v327
                %v329 = vld [vmem:[%s227 + $0x310] sm:$0xff]
                %330 = vst [vmem:[%s228 + $0x190] sm:$0xff] %v329
                %v331 = vld [vmem:[%s227 + $0x318] sm:$0xff]
                %332 = vst [vmem:[%s228 + $0x198] sm:$0xff] %v331
                %v333 = vld [vmem:[%s227 + $0x320] sm:$0xff]
                %334 = vst [vmem:[%s228 + $0x1a0] sm:$0xff] %v333
                %v335 = vld [vmem:[%s227 + $0x328] sm:$0xff]
                %336 = vst [vmem:[%s228 + $0x1a8] sm:$0xff] %v335
                %v337 = vld [vmem:[%s227 + $0x330] sm:$0xff]
                %338 = vst [vmem:[%s228 + $0x1b0] sm:$0xff] %v337
                %v339 = vld [vmem:[%s227 + $0x338] sm:$0xff]
                %340 = vst [vmem:[%s228 + $0x1b8] sm:$0xff] %v339
                %v341 = vld [vmem:[%s227 + $0x340] sm:$0xff]
                %342 = vst [vmem:[%s228 + $0x1c0] sm:$0xff] %v341
                %v343 = vld [vmem:[%s227 + $0x348] sm:$0xff]
                %344 = vst [vmem:[%s228 + $0x1c8] sm:$0xff] %v343
                %v345 = vld [vmem:[%s227 + $0x350] sm:$0xff]
                %346 = vst [vmem:[%s228 + $0x1d0] sm:$0xff] %v345
                %v347 = vld [vmem:[%s227 + $0x358] sm:$0xff]
                %348 = vst [vmem:[%s228 + $0x1d8] sm:$0xff] %v347
                %v349 = vld [vmem:[%s227 + $0x360] sm:$0xff]
                %350 = vst [vmem:[%s228 + $0x1e0] sm:$0xff] %v349
                %v351 = vld [vmem:[%s227 + $0x368] sm:$0xff]
                %352 = vst [vmem:[%s228 + $0x1e8] sm:$0xff] %v351
                %v353 = vld [vmem:[%s227 + $0x370] sm:$0xff]
                %354 = vst [vmem:[%s228 + $0x1f0] sm:$0xff] %v353
                %v355 = vld [vmem:[%s227 + $0x378] sm:$0xff]
                %356 = vst [vmem:[%s228 + $0x1f8] sm:$0xff] %v355
                %v357 = vld [vmem:[%s227 + $0x400] sm:$0xff]
                %358 = vst [vmem:[%s228 + $0x200] sm:$0xff] %v357
                %v359 = vld [vmem:[%s227 + $0x408] sm:$0xff]
                %360 = vst [vmem:[%s228 + $0x208] sm:$0xff] %v359
                %v361 = vld [vmem:[%s227 + $0x410] sm:$0xff]
                %362 = vst [vmem:[%s228 + $0x210] sm:$0xff] %v361
                %v363 = vld [vmem:[%s227 + $0x418] sm:$0xff]
                %364 = vst [vmem:[%s228 + $0x218] sm:$0xff] %v363
                %v365 = vld [vmem:[%s227 + $0x420] sm:$0xff]
                %366 = vst [vmem:[%s228 + $0x220] sm:$0xff] %v365
                %v367 = vld [vmem:[%s227 + $0x428] sm:$0xff]
                %368 = vst [vmem:[%s228 + $0x228] sm:$0xff] %v367
                %v369 = vld [vmem:[%s227 + $0x430] sm:$0xff]
                %370 = vst [vmem:[%s228 + $0x230] sm:$0xff] %v369
                %v371 = vld [vmem:[%s227 + $0x438] sm:$0xff]
                %372 = vst [vmem:[%s228 + $0x238] sm:$0xff] %v371
                %v373 = vld [vmem:[%s227 + $0x440] sm:$0xff]
                %374 = vst [vmem:[%s228 + $0x240] sm:$0xff] %v373
                %v375 = vld [vmem:[%s227 + $0x448] sm:$0xff]
                %376 = vst [vmem:[%s228 + $0x248] sm:$0xff] %v375
                %v377 = vld [vmem:[%s227 + $0x450] sm:$0xff]
                %378 = vst [vmem:[%s228 + $0x250] sm:$0xff] %v377
                %v379 = vld [vmem:[%s227 + $0x458] sm:$0xff]
                %380 = vst [vmem:[%s228 + $0x258] sm:$0xff] %v379
                %v381 = vld [vmem:[%s227 + $0x460] sm:$0xff]
                %382 = vst [vmem:[%s228 + $0x260] sm:$0xff] %v381
                %v383 = vld [vmem:[%s227 + $0x468] sm:$0xff]
                %384 = vst [vmem:[%s228 + $0x268] sm:$0xff] %v383
                %v385 = vld [vmem:[%s227 + $0x470] sm:$0xff]
                %386 = vst [vmem:[%s228 + $0x270] sm:$0xff] %v385
                %v387 = vld [vmem:[%s227 + $0x478] sm:$0xff]
                %388 = vst [vmem:[%s228 + $0x278] sm:$0xff] %v387
                %v389 = vld [vmem:[%s227 + $0x500] sm:$0xff]
                %390 = vst [vmem:[%s228 + $0x280] sm:$0xff] %v389
                %v391 = vld [vmem:[%s227 + $0x508] sm:$0xff]
                %392 = vst [vmem:[%s228 + $0x288] sm:$0xff] %v391
                %v393 = vld [vmem:[%s227 + $0x510] sm:$0xff]
                %394 = vst [vmem:[%s228 + $0x290] sm:$0xff] %v393
                %v395 = vld [vmem:[%s227 + $0x518] sm:$0xff]
                %396 = vst [vmem:[%s228 + $0x298] sm:$0xff] %v395
                %v397 = vld [vmem:[%s227 + $0x520] sm:$0xff]
                %398 = vst [vmem:[%s228 + $0x2a0] sm:$0xff] %v397
                %v399 = vld [vmem:[%s227 + $0x528] sm:$0xff]
                %400 = vst [vmem:[%s228 + $0x2a8] sm:$0xff] %v399
                %v401 = vld [vmem:[%s227 + $0x530] sm:$0xff]
                %402 = vst [vmem:[%s228 + $0x2b0] sm:$0xff] %v401
                %v403 = vld [vmem:[%s227 + $0x538] sm:$0xff]
                %404 = vst [vmem:[%s228 + $0x2b8] sm:$0xff] %v403
                %v405 = vld [vmem:[%s227 + $0x540] sm:$0xff]
                %406 = vst [vmem:[%s228 + $0x2c0] sm:$0xff] %v405
                %v407 = vld [vmem:[%s227 + $0x548] sm:$0xff]
                %408 = vst [vmem:[%s228 + $0x2c8] sm:$0xff] %v407
                %v409 = vld [vmem:[%s227 + $0x550] sm:$0xff]
                %410 = vst [vmem:[%s228 + $0x2d0] sm:$0xff] %v409
                %v411 = vld [vmem:[%s227 + $0x558] sm:$0xff]
                %412 = vst [vmem:[%s228 + $0x2d8] sm:$0xff] %v411
                %v413 = vld [vmem:[%s227 + $0x560] sm:$0xff]
                %414 = vst [vmem:[%s228 + $0x2e0] sm:$0xff] %v413
                %v415 = vld [vmem:[%s227 + $0x568] sm:$0xff]
                %416 = vst [vmem:[%s228 + $0x2e8] sm:$0xff] %v415
                %v417 = vld [vmem:[%s227 + $0x570] sm:$0xff]
                %418 = vst [vmem:[%s228 + $0x2f0] sm:$0xff] %v417
                %v419 = vld [vmem:[%s227 + $0x578] sm:$0xff]
                %420 = vst [vmem:[%s228 + $0x2f8] sm:$0xff] %v419
                %v421 = vld [vmem:[%s227 + $0x600] sm:$0xff]
                %422 = vst [vmem:[%s228 + $0x300] sm:$0xff] %v421
                %v423 = vld [vmem:[%s227 + $0x608] sm:$0xff]
                %424 = vst [vmem:[%s228 + $0x308] sm:$0xff] %v423
                %v425 = vld [vmem:[%s227 + $0x610] sm:$0xff]
                %426 = vst [vmem:[%s228 + $0x310] sm:$0xff] %v425
                %v427 = vld [vmem:[%s227 + $0x618] sm:$0xff]
                %428 = vst [vmem:[%s228 + $0x318] sm:$0xff] %v427
                %v429 = vld [vmem:[%s227 + $0x620] sm:$0xff]
                %430 = vst [vmem:[%s228 + $0x320] sm:$0xff] %v429
                %v431 = vld [vmem:[%s227 + $0x628] sm:$0xff]
                %432 = vst [vmem:[%s228 + $0x328] sm:$0xff] %v431
                %v433 = vld [vmem:[%s227 + $0x630] sm:$0xff]
                %434 = vst [vmem:[%s228 + $0x330] sm:$0xff] %v433
                %v435 = vld [vmem:[%s227 + $0x638] sm:$0xff]
                %436 = vst [vmem:[%s228 + $0x338] sm:$0xff] %v435
                %v437 = vld [vmem:[%s227 + $0x640] sm:$0xff]
                %438 = vst [vmem:[%s228 + $0x340] sm:$0xff] %v437
                %v439 = vld [vmem:[%s227 + $0x648] sm:$0xff]
                %440 = vst [vmem:[%s228 + $0x348] sm:$0xff] %v439
                %v441 = vld [vmem:[%s227 + $0x650] sm:$0xff]
                %442 = vst [vmem:[%s228 + $0x350] sm:$0xff] %v441
                %v443 = vld [vmem:[%s227 + $0x658] sm:$0xff]
                %444 = vst [vmem:[%s228 + $0x358] sm:$0xff] %v443
                %v445 = vld [vmem:[%s227 + $0x660] sm:$0xff]
                %446 = vst [vmem:[%s228 + $0x360] sm:$0xff] %v445
                %v447 = vld [vmem:[%s227 + $0x668] sm:$0xff]
                %448 = vst [vmem:[%s228 + $0x368] sm:$0xff] %v447
                %v449 = vld [vmem:[%s227 + $0x670] sm:$0xff]
                %450 = vst [vmem:[%s228 + $0x370] sm:$0xff] %v449
                %v451 = vld [vmem:[%s227 + $0x678] sm:$0xff]
                %452 = vst [vmem:[%s228 + $0x378] sm:$0xff] %v451
                %v453 = vld [vmem:[%s227 + $0x700] sm:$0xff]
                %454 = vst [vmem:[%s228 + $0x380] sm:$0xff] %v453
                %v455 = vld [vmem:[%s227 + $0x708] sm:$0xff]
                %456 = vst [vmem:[%s228 + $0x388] sm:$0xff] %v455
                %v457 = vld [vmem:[%s227 + $0x710] sm:$0xff]
                %458 = vst [vmem:[%s228 + $0x390] sm:$0xff] %v457
                %v459 = vld [vmem:[%s227 + $0x718] sm:$0xff]
                %460 = vst [vmem:[%s228 + $0x398] sm:$0xff] %v459
                %v461 = vld [vmem:[%s227 + $0x720] sm:$0xff]
                %462 = vst [vmem:[%s228 + $0x3a0] sm:$0xff] %v461
                %v463 = vld [vmem:[%s227 + $0x728] sm:$0xff]
                %464 = vst [vmem:[%s228 + $0x3a8] sm:$0xff] %v463
                %v465 = vld [vmem:[%s227 + $0x730] sm:$0xff]
                %466 = vst [vmem:[%s228 + $0x3b0] sm:$0xff] %v465
                %v467 = vld [vmem:[%s227 + $0x738] sm:$0xff]
                %468 = vst [vmem:[%s228 + $0x3b8] sm:$0xff] %v467
                %v469 = vld [vmem:[%s227 + $0x740] sm:$0xff]
                %470 = vst [vmem:[%s228 + $0x3c0] sm:$0xff] %v469
                %v471 = vld [vmem:[%s227 + $0x748] sm:$0xff]
                %472 = vst [vmem:[%s228 + $0x3c8] sm:$0xff] %v471
                %v473 = vld [vmem:[%s227 + $0x750] sm:$0xff]
                %474 = vst [vmem:[%s228 + $0x3d0] sm:$0xff] %v473
                %v475 = vld [vmem:[%s227 + $0x758] sm:$0xff]
                %476 = vst [vmem:[%s228 + $0x3d8] sm:$0xff] %v475
                %v477 = vld [vmem:[%s227 + $0x760] sm:$0xff]
                %478 = vst [vmem:[%s228 + $0x3e0] sm:$0xff] %v477
                %v479 = vld [vmem:[%s227 + $0x768] sm:$0xff]
                %480 = vst [vmem:[%s228 + $0x3e8] sm:$0xff] %v479
                %v481 = vld [vmem:[%s227 + $0x770] sm:$0xff]
                %482 = vst [vmem:[%s228 + $0x3f0] sm:$0xff] %v481
                %v483 = vld [vmem:[%s227 + $0x778] sm:$0xff]
                %484 = vst [vmem:[%s228 + $0x3f8] sm:$0xff] %v483
              $region57: #{tpu_custom_call.1} parent=51 // loop_footer
                %s226 = sadd.s32 1, %s222
              $region58: #{tpu_custom_call.1} parent=51 // loop_footer_branch
                %221 = sbr.rel target = $region54
              $region59: #{tpu_custom_call.1} parent=51 // loop_exit
                _
            $region52: #{tpu_custom_call.1} parent=43 // pred_fallthru
              _
          $region44: #{tpu_custom_call.1} parent=39 // pred_fallthru
            _
          %753 = vnop
        $region40: #{tpu_custom_call.1} parent=35 // pred_fallthru
          _
      $region36: #{tpu_custom_call.1} parent=5 // pred_fallthru
        _
      %p754 = scmp.le.s32.totalorder 1, %s13
      %p755 = scmp.lt.s32.totalorder %s13, 3
      %p756 = pnand %p754, %p755
      %p757 = pneg %p756
      // Predicated region
      $region75: #{tpu_custom_call.1} parent=5 // pred_check
        _
      $region76: #{tpu_custom_call.1} parent=5 // pred_check_branch
        %759 = sbr.rel (%p756) target = $region78
      $region77: #{tpu_custom_call.1} parent=5 // pred_region
        %s760 = ssub.s32 %s13, 1
        %s761 = sand.u32 %s26, 1
        %s762 = sand.u32 %s26, 1
        %s763 = smul.addr %s762, 1024
        %s764 = scalar_lea.vmem [#allocation3], %s763
        // Predicated region
        $region79: #{tpu_custom_call.1} parent=77 // pred_check
          %p765 = pneg %p39
        $region80: #{tpu_custom_call.1} parent=77 // pred_check_branch
          %767 = sbr.rel (%p765) target = $region82
        $region81: #{tpu_custom_call.1} parent=77 // pred_region
          _
        $region82: #{tpu_custom_call.1} parent=77 // pred_fallthru
          _
        %s768 = sand.u32 %s26, 1
        %s769 = sand.u32 %s26, 1
        %s770 = smul.addr %s769, 1024
        %s771 = scalar_lea.vmem [#allocation3], %s770
        %p772 = pneg %p39
        %p773 = pneg %p36
        %p774 = pneg %p60
        %p775 = pneg %p57
        %p776 = pneg %p81
        %p777 = pneg %p78
        %p778 = pneg %p102
        %p779 = pneg %p99
        %p780 = pneg %p123
        %p781 = pneg %p120
        %p782 = pneg %p144
        %p783 = pneg %p141
        %p784 = pneg %p170
        %p785 = pneg %p167
        %s786 = smul.u32 16, %s18
        %p787 = scmp.lt.s32.totalorder %s786, 31
        %s788 = scalar_select %p787, %s786, 31
        %s789 = smul.addr %s788, 8
        %s790 = scalar_lea.vmem %s6, %s789
        %s791 = smul.u32 16, %s18
        %s792 = smul.u32 16, %s18
        %p793 = scmp.lt.s32.totalorder %s792, 31
        %s794 = scalar_select %p793, %s792, 31
        %s795 = smul.addr %s794, 8
        %s796 = scalar_lea.vmem %s6, %s795
        %s797 = smul.u32 16, %s18
        %v798 = vld [vmem:[%s764] sm:$0xff]
        %v799 = vld [vmem:[%s764 + $0x8] sm:$0xff]
        %v800 = vld [vmem:[%s764 + $0x10] sm:$0xff]
        %v801 = vld [vmem:[%s764 + $0x18] sm:$0xff]
        %v802 = vld [vmem:[%s764 + $0x20] sm:$0xff]
        %v803 = vld [vmem:[%s764 + $0x28] sm:$0xff]
        %v804 = vld [vmem:[%s764 + $0x30] sm:$0xff]
        %v805 = vld [vmem:[%s764 + $0x38] sm:$0xff]
        %v806 = vld [vmem:[%s764 + $0x40] sm:$0xff]
        %v807 = vld [vmem:[%s764 + $0x48] sm:$0xff]
        %v808 = vld [vmem:[%s764 + $0x50] sm:$0xff]
        %v809 = vld [vmem:[%s764 + $0x58] sm:$0xff]
        %v810 = vld [vmem:[%s764 + $0x60] sm:$0xff]
        %v811 = vld [vmem:[%s764 + $0x68] sm:$0xff]
        %v812 = vld [vmem:[%s764 + $0x70] sm:$0xff]
        %v813 = vld [vmem:[%s764 + $0x78] sm:$0xff]
        %v814 = vld [vmem:[%s764 + $0x80] sm:$0xff]
        %v815 = vld [vmem:[%s764 + $0x88] sm:$0xff]
        %v816 = vld [vmem:[%s764 + $0x90] sm:$0xff]
        %v817 = vld [vmem:[%s764 + $0x98] sm:$0xff]
        %v818 = vld [vmem:[%s764 + $0xa0] sm:$0xff]
        %v819 = vld [vmem:[%s764 + $0xa8] sm:$0xff]
        %v820 = vld [vmem:[%s764 + $0xb0] sm:$0xff]
        %v821 = vld [vmem:[%s764 + $0xb8] sm:$0xff]
        %v822 = vld [vmem:[%s764 + $0xc0] sm:$0xff]
        %v823 = vld [vmem:[%s764 + $0xc8] sm:$0xff]
        %v824 = vld [vmem:[%s764 + $0xd0] sm:$0xff]
        %v825 = vld [vmem:[%s764 + $0xd8] sm:$0xff]
        %v826 = vld [vmem:[%s764 + $0xe0] sm:$0xff]
        %v827 = vld [vmem:[%s764 + $0xe8] sm:$0xff]
        %v828 = vld [vmem:[%s764 + $0xf0] sm:$0xff]
        %v829 = vld [vmem:[%s764 + $0xf8] sm:$0xff]
        %v830 = vld [vmem:[%s764 + $0x100] sm:$0xff]
        %v831 = vld [vmem:[%s764 + $0x108] sm:$0xff]
        %v832 = vld [vmem:[%s764 + $0x110] sm:$0xff]
        %v833 = vld [vmem:[%s764 + $0x118] sm:$0xff]
        %v834 = vld [vmem:[%s764 + $0x120] sm:$0xff]
        %v835 = vld [vmem:[%s764 + $0x128] sm:$0xff]
        %v836 = vld [vmem:[%s764 + $0x130] sm:$0xff]
        %v837 = vld [vmem:[%s764 + $0x138] sm:$0xff]
        %v838 = vld [vmem:[%s764 + $0x140] sm:$0xff]
        %v839 = vld [vmem:[%s764 + $0x148] sm:$0xff]
        %v840 = vld [vmem:[%s764 + $0x150] sm:$0xff]
        %v841 = vld [vmem:[%s764 + $0x158] sm:$0xff]
        %v842 = vld [vmem:[%s764 + $0x160] sm:$0xff]
        %v843 = vld [vmem:[%s764 + $0x168] sm:$0xff]
        %v844 = vld [vmem:[%s764 + $0x170] sm:$0xff]
        %v845 = vld [vmem:[%s764 + $0x178] sm:$0xff]
        %v846 = vld [vmem:[%s764 + $0x180] sm:$0xff]
        %v847 = vld [vmem:[%s764 + $0x188] sm:$0xff]
        %v848 = vld [vmem:[%s764 + $0x190] sm:$0xff]
        %v849 = vld [vmem:[%s764 + $0x198] sm:$0xff]
        %v850 = vld [vmem:[%s764 + $0x1a0] sm:$0xff]
        %v851 = vld [vmem:[%s764 + $0x1a8] sm:$0xff]
        %v852 = vld [vmem:[%s764 + $0x1b0] sm:$0xff]
        %v853 = vld [vmem:[%s764 + $0x1b8] sm:$0xff]
        %v854 = vld [vmem:[%s764 + $0x1c0] sm:$0xff]
        %v855 = vld [vmem:[%s764 + $0x1c8] sm:$0xff]
        %v856 = vld [vmem:[%s764 + $0x1d0] sm:$0xff]
        %v857 = vld [vmem:[%s764 + $0x1d8] sm:$0xff]
        %v858 = vld [vmem:[%s764 + $0x1e0] sm:$0xff]
        %v859 = vld [vmem:[%s764 + $0x1e8] sm:$0xff]
        %v860 = vld [vmem:[%s764 + $0x1f0] sm:$0xff]
        %v861 = vld [vmem:[%s764 + $0x1f8] sm:$0xff]
        %v862 = vld [vmem:[%s764 + $0x200] sm:$0xff]
        %v863 = vld [vmem:[%s764 + $0x208] sm:$0xff]
        %v864 = vld [vmem:[%s764 + $0x210] sm:$0xff]
        %v865 = vld [vmem:[%s764 + $0x218] sm:$0xff]
        %v866 = vld [vmem:[%s764 + $0x220] sm:$0xff]
        %v867 = vld [vmem:[%s764 + $0x228] sm:$0xff]
        %v868 = vld [vmem:[%s764 + $0x230] sm:$0xff]
        %v869 = vld [vmem:[%s764 + $0x238] sm:$0xff]
        %v870 = vld [vmem:[%s764 + $0x240] sm:$0xff]
        %v871 = vld [vmem:[%s764 + $0x248] sm:$0xff]
        %v872 = vld [vmem:[%s764 + $0x250] sm:$0xff]
        %v873 = vld [vmem:[%s764 + $0x258] sm:$0xff]
        %v874 = vld [vmem:[%s764 + $0x260] sm:$0xff]
        %v875 = vld [vmem:[%s764 + $0x268] sm:$0xff]
        %v876 = vld [vmem:[%s764 + $0x270] sm:$0xff]
        %v877 = vld [vmem:[%s764 + $0x278] sm:$0xff]
        %v878 = vld [vmem:[%s764 + $0x280] sm:$0xff]
        %v879 = vld [vmem:[%s764 + $0x288] sm:$0xff]
        %v880 = vld [vmem:[%s764 + $0x290] sm:$0xff]
        %v881 = vld [vmem:[%s764 + $0x298] sm:$0xff]
        %v882 = vld [vmem:[%s764 + $0x2a0] sm:$0xff]
        %v883 = vld [vmem:[%s764 + $0x2a8] sm:$0xff]
        %v884 = vld [vmem:[%s764 + $0x2b0] sm:$0xff]
        %v885 = vld [vmem:[%s764 + $0x2b8] sm:$0xff]
        %v886 = vld [vmem:[%s764 + $0x2c0] sm:$0xff]
        %v887 = vld [vmem:[%s764 + $0x2c8] sm:$0xff]
        %v888 = vld [vmem:[%s764 + $0x2d0] sm:$0xff]
        %v889 = vld [vmem:[%s764 + $0x2d8] sm:$0xff]
        %v890 = vld [vmem:[%s764 + $0x2e0] sm:$0xff]
        %v891 = vld [vmem:[%s764 + $0x2e8] sm:$0xff]
        %v892 = vld [vmem:[%s764 + $0x2f0] sm:$0xff]
        %v893 = vld [vmem:[%s764 + $0x2f8] sm:$0xff]
        %v894 = vld [vmem:[%s764 + $0x300] sm:$0xff]
        %v895 = vld [vmem:[%s764 + $0x308] sm:$0xff]
        %v896 = vld [vmem:[%s764 + $0x310] sm:$0xff]
        %v897 = vld [vmem:[%s764 + $0x318] sm:$0xff]
        %v898 = vld [vmem:[%s764 + $0x320] sm:$0xff]
        %v899 = vld [vmem:[%s764 + $0x328] sm:$0xff]
        %v900 = vld [vmem:[%s764 + $0x330] sm:$0xff]
        %v901 = vld [vmem:[%s764 + $0x338] sm:$0xff]
        %v902 = vld [vmem:[%s764 + $0x340] sm:$0xff]
        %v903 = vld [vmem:[%s764 + $0x348] sm:$0xff]
        %v904 = vld [vmem:[%s764 + $0x350] sm:$0xff]
        %v905 = vld [vmem:[%s764 + $0x358] sm:$0xff]
        %v906 = vld [vmem:[%s764 + $0x360] sm:$0xff]
        %v907 = vld [vmem:[%s764 + $0x368] sm:$0xff]
        %v908 = vld [vmem:[%s764 + $0x370] sm:$0xff]
        %v909 = vld [vmem:[%s764 + $0x378] sm:$0xff]
        %v910 = vld [vmem:[%s764 + $0x380] sm:$0xff]
        %v911 = vld [vmem:[%s764 + $0x388] sm:$0xff]
        %v912 = vld [vmem:[%s764 + $0x390] sm:$0xff]
        %v913 = vld [vmem:[%s764 + $0x398] sm:$0xff]
        %v914 = vld [vmem:[%s764 + $0x3a0] sm:$0xff]
        %v915 = vld [vmem:[%s764 + $0x3a8] sm:$0xff]
        %v916 = vld [vmem:[%s764 + $0x3b0] sm:$0xff]
        %v917 = vld [vmem:[%s764 + $0x3b8] sm:$0xff]
        %v918 = vld [vmem:[%s764 + $0x3c0] sm:$0xff]
        %v919 = vld [vmem:[%s764 + $0x3c8] sm:$0xff]
        %v920 = vld [vmem:[%s764 + $0x3d0] sm:$0xff]
        %v921 = vld [vmem:[%s764 + $0x3d8] sm:$0xff]
        %v922 = vld [vmem:[%s764 + $0x3e0] sm:$0xff]
        %v923 = vld [vmem:[%s764 + $0x3e8] sm:$0xff]
        %v924 = vld [vmem:[%s764 + $0x3f0] sm:$0xff]
        %v925 = vld [vmem:[%s764 + $0x3f8] sm:$0xff]
        %v926 = vld [vmem:[%s1] sm:$0xff]
        %v927 = vld [vmem:[%s1 + $0x8] sm:$0xff]
        %v928 = vld [vmem:[%s2] sm:$0xff]
        %v929 = vld [vmem:[%s2 + $0x8] sm:$0xff]
        %v930 = vld [vmem:[%s2 + $0x10] sm:$0xff]
        %v931 = vld [vmem:[%s2 + $0x18] sm:$0xff]
        %v932 = vld [vmem:[%s3] sm:$0x1]
        %v934 = vlaneseq
        %v935 = vshrl.u32 %v934, 7
        %v936 = vsub.s32 0, %v935
        %v937 = vrot.slane %v932, %v936
        %vm939 = vcmask 130048
        %v941 = vsel %vm939, %v798, 0
        %v944 = vsel %vm939, %v799, 0
        %v947 = vsel %vm939, %v800, 0
        %v950 = vsel %vm939, %v801, 0
        %v953 = vsel %vm939, %v802, 0
        %v956 = vsel %vm939, %v803, 0
        %v959 = vsel %vm939, %v804, 0
        %v962 = vsel %vm939, %v805, 0
        %v965 = vsel %vm939, %v806, 0
        %v968 = vsel %vm939, %v807, 0
        %v971 = vsel %vm939, %v808, 0
        %v974 = vsel %vm939, %v809, 0
        %v977 = vsel %vm939, %v810, 0
        %v980 = vsel %vm939, %v811, 0
        %v983 = vsel %vm939, %v812, 0
        %v986 = vsel %vm939, %v813, 0
        %v989 = vsel %vm939, %v814, 0
        %v992 = vsel %vm939, %v815, 0
        %v995 = vsel %vm939, %v816, 0
        %v998 = vsel %vm939, %v817, 0
        %v1001 = vsel %vm939, %v818, 0
        %v1004 = vsel %vm939, %v819, 0
        %v1007 = vsel %vm939, %v820, 0
        %v1010 = vsel %vm939, %v821, 0
        %v1013 = vsel %vm939, %v822, 0
        %v1016 = vsel %vm939, %v823, 0
        %v1019 = vsel %vm939, %v824, 0
        %v1022 = vsel %vm939, %v825, 0
        %v1025 = vsel %vm939, %v826, 0
        %v1028 = vsel %vm939, %v827, 0
        %v1031 = vsel %vm939, %v828, 0
        %v1034 = vsel %vm939, %v829, 0
        %v1037 = vsel %vm939, %v830, 0
        %v1040 = vsel %vm939, %v831, 0
        %v1043 = vsel %vm939, %v832, 0
        %v1046 = vsel %vm939, %v833, 0
        %v1049 = vsel %vm939, %v834, 0
        %v1052 = vsel %vm939, %v835, 0
        %v1055 = vsel %vm939, %v836, 0
        %v1058 = vsel %vm939, %v837, 0
        %v1061 = vsel %vm939, %v838, 0
        %v1064 = vsel %vm939, %v839, 0
        %v1067 = vsel %vm939, %v840, 0
        %v1070 = vsel %vm939, %v841, 0
        %v1073 = vsel %vm939, %v842, 0
        %v1076 = vsel %vm939, %v843, 0
        %v1079 = vsel %vm939, %v844, 0
        %v1082 = vsel %vm939, %v845, 0
        %v1085 = vsel %vm939, %v846, 0
        %v1088 = vsel %vm939, %v847, 0
        %v1091 = vsel %vm939, %v848, 0
        %v1094 = vsel %vm939, %v849, 0
        %v1097 = vsel %vm939, %v850, 0
        %v1100 = vsel %vm939, %v851, 0
        %v1103 = vsel %vm939, %v852, 0
        %v1106 = vsel %vm939, %v853, 0
        %v1109 = vsel %vm939, %v854, 0
        %v1112 = vsel %vm939, %v855, 0
        %v1115 = vsel %vm939, %v856, 0
        %v1118 = vsel %vm939, %v857, 0
        %v1121 = vsel %vm939, %v858, 0
        %v1124 = vsel %vm939, %v859, 0
        %v1127 = vsel %vm939, %v860, 0
        %v1130 = vsel %vm939, %v861, 0
        %v1133 = vsel %vm939, %v862, 0
        %v1136 = vsel %vm939, %v863, 0
        %v1139 = vsel %vm939, %v864, 0
        %v1142 = vsel %vm939, %v865, 0
        %v1145 = vsel %vm939, %v866, 0
        %v1148 = vsel %vm939, %v867, 0
        %v1151 = vsel %vm939, %v868, 0
        %v1154 = vsel %vm939, %v869, 0
        %v1157 = vsel %vm939, %v870, 0
        %v1160 = vsel %vm939, %v871, 0
        %v1163 = vsel %vm939, %v872, 0
        %v1166 = vsel %vm939, %v873, 0
        %v1169 = vsel %vm939, %v874, 0
        %v1172 = vsel %vm939, %v875, 0
        %v1175 = vsel %vm939, %v876, 0
        %v1178 = vsel %vm939, %v877, 0
        %v1181 = vsel %vm939, %v878, 0
        %v1184 = vsel %vm939, %v879, 0
        %v1187 = vsel %vm939, %v880, 0
        %v1190 = vsel %vm939, %v881, 0
        %v1193 = vsel %vm939, %v882, 0
        %v1196 = vsel %vm939, %v883, 0
        %v1199 = vsel %vm939, %v884, 0
        %v1202 = vsel %vm939, %v885, 0
        %v1205 = vsel %vm939, %v886, 0
        %v1208 = vsel %vm939, %v887, 0
        %v1211 = vsel %vm939, %v888, 0
        %v1214 = vsel %vm939, %v889, 0
        %v1217 = vsel %vm939, %v890, 0
        %v1220 = vsel %vm939, %v891, 0
        %v1223 = vsel %vm939, %v892, 0
        %v1226 = vsel %vm939, %v893, 0
        %v1229 = vsel %vm939, %v894, 0
        %v1232 = vsel %vm939, %v895, 0
        %v1235 = vsel %vm939, %v896, 0
        %v1238 = vsel %vm939, %v897, 0
        %v1241 = vsel %vm939, %v898, 0
        %v1244 = vsel %vm939, %v899, 0
        %v1247 = vsel %vm939, %v900, 0
        %v1250 = vsel %vm939, %v901, 0
        %v1253 = vsel %vm939, %v902, 0
        %v1256 = vsel %vm939, %v903, 0
        %v1259 = vsel %vm939, %v904, 0
        %v1262 = vsel %vm939, %v905, 0
        %v1265 = vsel %vm939, %v906, 0
        %v1268 = vsel %vm939, %v907, 0
        %v1271 = vsel %vm939, %v908, 0
        %v1274 = vsel %vm939, %v909, 0
        %v1277 = vsel %vm939, %v910, 0
        %v1280 = vsel %vm939, %v911, 0
        %v1283 = vsel %vm939, %v912, 0
        %v1286 = vsel %vm939, %v913, 0
        %v1289 = vsel %vm939, %v914, 0
        %v1292 = vsel %vm939, %v915, 0
        %v1295 = vsel %vm939, %v916, 0
        %v1298 = vsel %vm939, %v917, 0
        %v1301 = vsel %vm939, %v918, 0
        %v1304 = vsel %vm939, %v919, 0
        %v1307 = vsel %vm939, %v920, 0
        %v1310 = vsel %vm939, %v921, 0
        %v1313 = vsel %vm939, %v922, 0
        %v1316 = vsel %vm939, %v923, 0
        %v1319 = vsel %vm939, %v924, 0
        %v1322 = vsel %vm939, %v925, 0
        %1324 = vmatprep.subr.mxu0 0.0
        %1325 = vmatpush1.msra.mxu0 %v926
        %1326 = vmatprep.subr.mxu0 0.0
        %1327 = vmatpush1.msra.mxu0 %v927
        %1328 = vmatprep.subr.mxu0 0.0
        %1329 = vmatpush1.msra.mxu0 0.0
        %1330 = vmatprep.subr.mxu0 0.0
        %1331 = vmatpush1.msra.mxu0 0.0
        %1332 = vmatprep.subr.mxu0 0.0
        %1333 = vmatpush1.msra.mxu0 0.0
        %1334 = vmatprep.subr.mxu0 0.0
        %1335 = vmatpush1.msra.mxu0 0.0
        %1336 = vmatprep.subr.mxu0 0.0
        %1337 = vmatpush1.msra.mxu0 0.0
        %1338 = vmatprep.subr.mxu0 0.0
        %1339 = vmatpush1.msra.mxu0 0.0
        %1340 = vmatprep.subr.mxu0 0.0
        %1341 = vmatpush1.msra.mxu0 0.0
        %1342 = vmatprep.subr.mxu0 0.0
        %1343 = vmatpush1.msra.mxu0 0.0
        %1344 = vmatprep.subr.mxu0 0.0
        %1345 = vmatpush1.msra.mxu0 0.0
        %1346 = vmatprep.subr.mxu0 0.0
        %1347 = vmatpush1.msra.mxu0 0.0
        %1348 = vmatprep.subr.mxu0 0.0
        %1349 = vmatpush1.msra.mxu0 0.0
        %1350 = vmatprep.subr.mxu0 0.0
        %1351 = vmatpush1.msra.mxu0 0.0
        %1352 = vmatprep.subr.mxu0 0.0
        %1353 = vmatpush1.msra.mxu0 0.0
        %1354 = vmatprep.subr.mxu0 0.0
        %1355 = vmatpush1.msra.mxu0 0.0
        %1356 = vmatprep.subr.mxu0 0.0
        %1357 = vmatpush1.msra.mxu0 0.0
        %1358 = vmatprep.subr.mxu0 0.0
        %1359 = vmatpush1.msra.mxu0 0.0
        %1360 = vmatprep.subr.mxu0 0.0
        %1361 = vmatpush1.msra.mxu0 0.0
        %1362 = vmatprep.subr.mxu0 0.0
        %1363 = vmatpush1.msra.mxu0 0.0
        %1364 = vmatprep.subr.mxu0 0.0
        %1365 = vmatpush1.msra.mxu0 0.0
        %1366 = vmatprep.subr.mxu0 0.0
        %1367 = vmatpush1.msra.mxu0 0.0
        %1368 = vmatprep.subr.mxu0 0.0
        %1369 = vmatpush1.msra.mxu0 0.0
        %1370 = vmatprep.subr.mxu0 0.0
        %1371 = vmatpush1.msra.mxu0 0.0
        %1372 = vmatprep.subr.mxu0 0.0
        %1373 = vmatpush1.msra.mxu0 0.0
        %1374 = vmatprep.subr.mxu0 0.0
        %1375 = vmatpush1.msra.mxu0 0.0
        %1376 = vmatprep.subr.mxu0 0.0
        %1377 = vmatpush1.msra.mxu0 0.0
        %1378 = vmatprep.subr.mxu0 0.0
        %1379 = vmatpush1.msra.mxu0 0.0
        %1380 = vmatprep.subr.mxu0 0.0
        %1381 = vmatpush1.msra.mxu0 0.0
        %1382 = vmatprep.subr.mxu0 0.0
        %1383 = vmatpush1.msra.mxu0 0.0
        %1384 = vmatprep.subr.mxu0 0.0
        %1385 = vmatpush1.msra.mxu0 0.0
        %1386 = vmatprep.subr.mxu0 0.0
        %1387 = vmatpush1.msra.mxu0 0.0
        %1388 = vmatprep.mubr.f32.mxu0 0.0
        %1389 = vmatmul.mubr.f32.gmra.mrb[0].mxu0 %v941
        %v1390 = vpop.f32.mrb[0].mxu0
        %v1391 = vadd.f32 %v937, %v1390
        %v1392 = vpop.f32.mrb[0].mxu0
        %1393 = vmatprep.mubr.f32.mxu0 0.0
        %1394 = vmatmul.mubr.f32.gmra.mrb[0].mxu0 %v944
        %v1395 = vpop.f32.mrb[0].mxu0
        %v1396 = vadd.f32 %v937, %v1395
        %v1397 = vpop.f32.mrb[0].mxu0
        %1398 = vmatprep.mubr.f32.mxu0 0.0
        %1399 = vmatmul.mubr.f32.gmra.mrb[0].mxu0 %v947
        %v1400 = vpop.f32.mrb[0].mxu0
        %v1401 = vadd.f32 %v937, %v1400
        %v1402 = vpop.f32.mrb[0].mxu0
        %1403 = vmatprep.mubr.f32.mxu0 0.0
        %1404 = vmatmul.mubr.f32.gmra.mrb[0].mxu0 %v950
        %v1405 = vpop.f32.mrb[0].mxu0
        %v1406 = vadd.f32 %v937, %v1405
        %v1407 = vpop.f32.mrb[0].mxu0
        %1408 = vmatprep.mubr.f32.mxu0 0.0
        %1409 = vmatmul.mubr.f32.gmra.mrb[0].mxu0 %v953
        %v1410 = vpop.f32.mrb[0].mxu0
        %v1411 = vadd.f32 %v937, %v1410
        %v1412 = vpop.f32.mrb[0].mxu0
        %1413 = vmatprep.mubr.f32.mxu0 0.0
        %1414 = vmatmul.mubr.f32.gmra.mrb[0].mxu0 %v956
        %v1415 = vpop.f32.mrb[0].mxu0
        %v1416 = vadd.f32 %v937, %v1415
        %v1417 = vpop.f32.mrb[0].mxu0
        %1418 = vmatprep.mubr.f32.mxu0 0.0
        %1419 = vmatmul.mubr.f32.gmra.mrb[0].mxu0 %v959
        %v1420 = vpop.f32.mrb[0].mxu0
        %v1421 = vadd.f32 %v937, %v1420
        %v1422 = vpop.f32.mrb[0].mxu0
        %1423 = vmatprep.mubr.f32.mxu0 0.0
        %1424 = vmatmul.mubr.f32.gmra.mrb[0].mxu0 %v962
        %v1425 = vpop.f32.mrb[0].mxu0
        %v1426 = vadd.f32 %v937, %v1425
        %v1427 = vpop.f32.mrb[0].mxu0
        %1428 = vmatprep.mubr.f32.mxu0 0.0
        %1429 = vmatmul.mubr.f32.gmra.mrb[0].mxu0 %v965
        %v1430 = vpop.f32.mrb[0].mxu0
        %v1431 = vadd.f32 %v937, %v1430
        %v1432 = vpop.f32.mrb[0].mxu0
        %1433 = vmatprep.mubr.f32.mxu0 0.0
        %1434 = vmatmul.mubr.f32.gmra.mrb[0].mxu0 %v968
        %v1435 = vpop.f32.mrb[0].mxu0
        %v1436 = vadd.f32 %v937, %v1435
        %v1437 = vpop.f32.mrb[0].mxu0
        %1438 = vmatprep.mubr.f32.mxu0 0.0
        %1439 = vmatmul.mubr.f32.gmra.mrb[0].mxu0 %v971
        %v1440 = vpop.f32.mrb[0].mxu0
        %v1441 = vadd.f32 %v937, %v1440
        %v1442 = vpop.f32.mrb[0].mxu0
        %1443 = vmatprep.mubr.f32.mxu0 0.0
        %1444 = vmatmul.mubr.f32.gmra.mrb[0].mxu0 %v974
        %v1445 = vpop.f32.mrb[0].mxu0
        %v1446 = vadd.f32 %v937, %v1445
        %v1447 = vpop.f32.mrb[0].mxu0
        %1448 = vmatprep.mubr.f32.mxu0 0.0
        %1449 = vmatmul.mubr.f32.gmra.mrb[0].mxu0 %v977
        %v1450 = vpop.f32.mrb[0].mxu0
        %v1451 = vadd.f32 %v937, %v1450
        %v1452 = vpop.f32.mrb[0].mxu0
        %1453 = vmatprep.mubr.f32.mxu0 0.0
        %1454 = vmatmul.mubr.f32.gmra.mrb[0].mxu0 %v980
        %v1455 = vpop.f32.mrb[0].mxu0
        %v1456 = vadd.f32 %v937, %v1455
        %v1457 = vpop.f32.mrb[0].mxu0
        %1458 = vmatprep.mubr.f32.mxu0 0.0
        %1459 = vmatmul.mubr.f32.gmra.mrb[0].mxu0 %v983
        %v1460 = vpop.f32.mrb[0].mxu0
        %v1461 = vadd.f32 %v937, %v1460
        %v1462 = vpop.f32.mrb[0].mxu0
        %1463 = vmatprep.mubr.f32.mxu0 0.0
        %1464 = vmatmul.mubr.f32.gmra.mrb[0].mxu0 %v986
        %v1465 = vpop.f32.mrb[0].mxu0
        %v1466 = vadd.f32 %v937, %v1465
        %v1467 = vpop.f32.mrb[0].mxu0
        %1468 = vmatprep.mubr.f32.mxu0 0.0
        %1469 = vmatmul.mubr.f32.gmra.mrb[0].mxu0 %v989
        %v1470 = vpop.f32.mrb[0].mxu0
        %v1471 = vadd.f32 %v937, %v1470
        %v1472 = vpop.f32.mrb[0].mxu0
        %1473 = vmatprep.mubr.f32.mxu0 0.0
        %1474 = vmatmul.mubr.f32.gmra.mrb[0].mxu0 %v992
        %v1475 = vpop.f32.mrb[0].mxu0
        %v1476 = vadd.f32 %v937, %v1475
        %v1477 = vpop.f32.mrb[0].mxu0
        %1478 = vmatprep.mubr.f32.mxu0 0.0
        %1479 = vmatmul.mubr.f32.gmra.mrb[0].mxu0 %v995
        %v1480 = vpop.f32.mrb[0].mxu0
        %v1481 = vadd.f32 %v937, %v1480
        %v1482 = vpop.f32.mrb[0].mxu0
        %1483 = vmatprep.mubr.f32.mxu0 0.0
        %1484 = vmatmul.mubr.f32.gmra.mrb[0].mxu0 %v998
        %v1485 = vpop.f32.mrb[0].mxu0
        %v1486 = vadd.f32 %v937, %v1485
        %v1487 = vpop.f32.mrb[0].mxu0
        %1488 = vmatprep.mubr.f32.mxu0 0.0
        %1489 = vmatmul.mubr.f32.gmra.mrb[0].mxu0 %v1001
        %v1490 = vpop.f32.mrb[0].mxu0
        %v1491 = vadd.f32 %v937, %v1490
        %v1492 = vpop.f32.mrb[0].mxu0
        %1493 = vmatprep.mubr.f32.mxu0 0.0
        %1494 = vmatmul.mubr.f32.gmra.mrb[0].mxu0 %v1004
        %v1495 = vpop.f32.mrb[0].mxu0
        %v1496 = vadd.f32 %v937, %v1495
        %v1497 = vpop.f32.mrb[0].mxu0
        %1498 = vmatprep.mubr.f32.mxu0 0.0
        %1499 = vmatmul.mubr.f32.gmra.mrb[0].mxu0 %v1007
        %v1500 = vpop.f32.mrb[0].mxu0
        %v1501 = vadd.f32 %v937, %v1500
        %v1502 = vpop.f32.mrb[0].mxu0
        %1503 = vmatprep.mubr.f32.mxu0 0.0
        %1504 = vmatmul.mubr.f32.gmra.mrb[0].mxu0 %v1010
        %v1505 = vpop.f32.mrb[0].mxu0
        %v1506 = vadd.f32 %v937, %v1505
        %v1507 = vpop.f32.mrb[0].mxu0
        %1508 = vmatprep.mubr.f32.mxu0 0.0
        %1509 = vmatmul.mubr.f32.gmra.mrb[0].mxu0 %v1013
        %v1510 = vpop.f32.mrb[0].mxu0
        %v1511 = vadd.f32 %v937, %v1510
        %v1512 = vpop.f32.mrb[0].mxu0
        %1513 = vmatprep.mubr.f32.mxu0 0.0
        %1514 = vmatmul.mubr.f32.gmra.mrb[0].mxu0 %v1016
        %v1515 = vpop.f32.mrb[0].mxu0
        %v1516 = vadd.f32 %v937, %v1515
        %v1517 = vpop.f32.mrb[0].mxu0
        %1518 = vmatprep.mubr.f32.mxu0 0.0
        %1519 = vmatmul.mubr.f32.gmra.mrb[0].mxu0 %v1019
        %v1520 = vpop.f32.mrb[0].mxu0
        %v1521 = vadd.f32 %v937, %v1520
        %v1522 = vpop.f32.mrb[0].mxu0
        %1523 = vmatprep.mubr.f32.mxu0 0.0
        %1524 = vmatmul.mubr.f32.gmra.mrb[0].mxu0 %v1022
        %v1525 = vpop.f32.mrb[0].mxu0
        %v1526 = vadd.f32 %v937, %v1525
        %v1527 = vpop.f32.mrb[0].mxu0
        %1528 = vmatprep.mubr.f32.mxu0 0.0
        %1529 = vmatmul.mubr.f32.gmra.mrb[0].mxu0 %v1025
        %v1530 = vpop.f32.mrb[0].mxu0
        %v1531 = vadd.f32 %v937, %v1530
        %v1532 = vpop.f32.mrb[0].mxu0
        %1533 = vmatprep.mubr.f32.mxu0 0.0
        %1534 = vmatmul.mubr.f32.gmra.mrb[0].mxu0 %v1028
        %v1535 = vpop.f32.mrb[0].mxu0
        %v1536 = vadd.f32 %v937, %v1535
        %v1537 = vpop.f32.mrb[0].mxu0
        %1538 = vmatprep.mubr.f32.mxu0 0.0
        %1539 = vmatmul.mubr.f32.gmra.mrb[0].mxu0 %v1031
        %v1540 = vpop.f32.mrb[0].mxu0
        %v1541 = vadd.f32 %v937, %v1540
        %v1542 = vpop.f32.mrb[0].mxu0
        %1543 = vmatprep.mubr.f32.mxu0 0.0
        %1544 = vmatmul.mubr.f32.gmra.mrb[0].mxu0 %v1034
        %v1545 = vpop.f32.mrb[0].mxu0
        %v1546 = vadd.f32 %v937, %v1545
        %v1547 = vpop.f32.mrb[0].mxu0
        %1548 = vmatprep.mubr.f32.mxu0 0.0
        %1549 = vmatmul.mubr.f32.gmra.mrb[0].mxu0 %v1037
        %v1550 = vpop.f32.mrb[0].mxu0
        %v1551 = vadd.f32 %v937, %v1550
        %v1552 = vpop.f32.mrb[0].mxu0
        %1553 = vmatprep.mubr.f32.mxu0 0.0
        %1554 = vmatmul.mubr.f32.gmra.mrb[0].mxu0 %v1040
        %v1555 = vpop.f32.mrb[0].mxu0
        %v1556 = vadd.f32 %v937, %v1555
        %v1557 = vpop.f32.mrb[0].mxu0
        %1558 = vmatprep.mubr.f32.mxu0 0.0
        %1559 = vmatmul.mubr.f32.gmra.mrb[0].mxu0 %v1043
        %v1560 = vpop.f32.mrb[0].mxu0
        %v1561 = vadd.f32 %v937, %v1560
        %v1562 = vpop.f32.mrb[0].mxu0
        %1563 = vmatprep.mubr.f32.mxu0 0.0
        %1564 = vmatmul.mubr.f32.gmra.mrb[0].mxu0 %v1046
        %v1565 = vpop.f32.mrb[0].mxu0
        %v1566 = vadd.f32 %v937, %v1565
        %v1567 = vpop.f32.mrb[0].mxu0
        %1568 = vmatprep.mubr.f32.mxu0 0.0
        %1569 = vmatmul.mubr.f32.gmra.mrb[0].mxu0 %v1049
        %v1570 = vpop.f32.mrb[0].mxu0
        %v1571 = vadd.f32 %v937, %v1570
        %v1572 = vpop.f32.mrb[0].mxu0
        %1573 = vmatprep.mubr.f32.mxu0 0.0
        %1574 = vmatmul.mubr.f32.gmra.mrb[0].mxu0 %v1052
        %v1575 = vpop.f32.mrb[0].mxu0
        %v1576 = vadd.f32 %v937, %v1575
        %v1577 = vpop.f32.mrb[0].mxu0
        %1578 = vmatprep.mubr.f32.mxu0 0.0
        %1579 = vmatmul.mubr.f32.gmra.mrb[0].mxu0 %v1055
        %v1580 = vpop.f32.mrb[0].mxu0
        %v1581 = vadd.f32 %v937, %v1580
        %v1582 = vpop.f32.mrb[0].mxu0
        %1583 = vmatprep.mubr.f32.mxu0 0.0
        %1584 = vmatmul.mubr.f32.gmra.mrb[0].mxu0 %v1058
        %v1585 = vpop.f32.mrb[0].mxu0
        %v1586 = vadd.f32 %v937, %v1585
        %v1587 = vpop.f32.mrb[0].mxu0
        %1588 = vmatprep.mubr.f32.mxu0 0.0
        %1589 = vmatmul.mubr.f32.gmra.mrb[0].mxu0 %v1061
        %v1590 = vpop.f32.mrb[0].mxu0
        %v1591 = vadd.f32 %v937, %v1590
        %v1592 = vpop.f32.mrb[0].mxu0
        %1593 = vmatprep.mubr.f32.mxu0 0.0
        %1594 = vmatmul.mubr.f32.gmra.mrb[0].mxu0 %v1064
        %v1595 = vpop.f32.mrb[0].mxu0
        %v1596 = vadd.f32 %v937, %v1595
        %v1597 = vpop.f32.mrb[0].mxu0
        %1598 = vmatprep.mubr.f32.mxu0 0.0
        %1599 = vmatmul.mubr.f32.gmra.mrb[0].mxu0 %v1067
        %v1600 = vpop.f32.mrb[0].mxu0
        %v1601 = vadd.f32 %v937, %v1600
        %v1602 = vpop.f32.mrb[0].mxu0
        %1603 = vmatprep.mubr.f32.mxu0 0.0
        %1604 = vmatmul.mubr.f32.gmra.mrb[0].mxu0 %v1070
        %v1605 = vpop.f32.mrb[0].mxu0
        %v1606 = vadd.f32 %v937, %v1605
        %v1607 = vpop.f32.mrb[0].mxu0
        %1608 = vmatprep.mubr.f32.mxu0 0.0
        %1609 = vmatmul.mubr.f32.gmra.mrb[0].mxu0 %v1073
        %v1610 = vpop.f32.mrb[0].mxu0
        %v1611 = vadd.f32 %v937, %v1610
        %v1612 = vpop.f32.mrb[0].mxu0
        %1613 = vmatprep.mubr.f32.mxu0 0.0
        %1614 = vmatmul.mubr.f32.gmra.mrb[0].mxu0 %v1076
        %v1615 = vpop.f32.mrb[0].mxu0
        %v1616 = vadd.f32 %v937, %v1615
        %v1617 = vpop.f32.mrb[0].mxu0
        %1618 = vmatprep.mubr.f32.mxu0 0.0
        %1619 = vmatmul.mubr.f32.gmra.mrb[0].mxu0 %v1079
        %v1620 = vpop.f32.mrb[0].mxu0
        %v1621 = vadd.f32 %v937, %v1620
        %v1622 = vpop.f32.mrb[0].mxu0
        %1623 = vmatprep.mubr.f32.mxu0 0.0
        %1624 = vmatmul.mubr.f32.gmra.mrb[0].mxu0 %v1082
        %v1625 = vpop.f32.mrb[0].mxu0
        %v1626 = vadd.f32 %v937, %v1625
        %v1627 = vpop.f32.mrb[0].mxu0
        %1628 = vmatprep.mubr.f32.mxu0 0.0
        %1629 = vmatmul.mubr.f32.gmra.mrb[0].mxu0 %v1085
        %v1630 = vpop.f32.mrb[0].mxu0
        %v1631 = vadd.f32 %v937, %v1630
        %v1632 = vpop.f32.mrb[0].mxu0
        %1633 = vmatprep.mubr.f32.mxu0 0.0
        %1634 = vmatmul.mubr.f32.gmra.mrb[0].mxu0 %v1088
        %v1635 = vpop.f32.mrb[0].mxu0
        %v1636 = vadd.f32 %v937, %v1635
        %v1637 = vpop.f32.mrb[0].mxu0
        %1638 = vmatprep.mubr.f32.mxu0 0.0
        %1639 = vmatmul.mubr.f32.gmra.mrb[0].mxu0 %v1091
        %v1640 = vpop.f32.mrb[0].mxu0
        %v1641 = vadd.f32 %v937, %v1640
        %v1642 = vpop.f32.mrb[0].mxu0
        %1643 = vmatprep.mubr.f32.mxu0 0.0
        %1644 = vmatmul.mubr.f32.gmra.mrb[0].mxu0 %v1094
        %v1645 = vpop.f32.mrb[0].mxu0
        %v1646 = vadd.f32 %v937, %v1645
        %v1647 = vpop.f32.mrb[0].mxu0
        %1648 = vmatprep.mubr.f32.mxu0 0.0
        %1649 = vmatmul.mubr.f32.gmra.mrb[0].mxu0 %v1097
        %v1650 = vpop.f32.mrb[0].mxu0
        %v1651 = vadd.f32 %v937, %v1650
        %v1652 = vpop.f32.mrb[0].mxu0
        %1653 = vmatprep.mubr.f32.mxu0 0.0
        %1654 = vmatmul.mubr.f32.gmra.mrb[0].mxu0 %v1100
        %v1655 = vpop.f32.mrb[0].mxu0
        %v1656 = vadd.f32 %v937, %v1655
        %v1657 = vpop.f32.mrb[0].mxu0
        %1658 = vmatprep.mubr.f32.mxu0 0.0
        %1659 = vmatmul.mubr.f32.gmra.mrb[0].mxu0 %v1103
        %v1660 = vpop.f32.mrb[0].mxu0
        %v1661 = vadd.f32 %v937, %v1660
        %v1662 = vpop.f32.mrb[0].mxu0
        %1663 = vmatprep.mubr.f32.mxu0 0.0
        %1664 = vmatmul.mubr.f32.gmra.mrb[0].mxu0 %v1106
        %v1665 = vpop.f32.mrb[0].mxu0
        %v1666 = vadd.f32 %v937, %v1665
        %v1667 = vpop.f32.mrb[0].mxu0
        %1668 = vmatprep.mubr.f32.mxu0 0.0
        %1669 = vmatmul.mubr.f32.gmra.mrb[0].mxu0 %v1109
        %v1670 = vpop.f32.mrb[0].mxu0
        %v1671 = vadd.f32 %v937, %v1670
        %v1672 = vpop.f32.mrb[0].mxu0
        %1673 = vmatprep.mubr.f32.mxu0 0.0
        %1674 = vmatmul.mubr.f32.gmra.mrb[0].mxu0 %v1112
        %v1675 = vpop.f32.mrb[0].mxu0
        %v1676 = vadd.f32 %v937, %v1675
        %v1677 = vpop.f32.mrb[0].mxu0
        %1678 = vmatprep.mubr.f32.mxu0 0.0
        %1679 = vmatmul.mubr.f32.gmra.mrb[0].mxu0 %v1115
        %v1680 = vpop.f32.mrb[0].mxu0
        %v1681 = vadd.f32 %v937, %v1680
        %v1682 = vpop.f32.mrb[0].mxu0
        %1683 = vmatprep.mubr.f32.mxu0 0.0
        %1684 = vmatmul.mubr.f32.gmra.mrb[0].mxu0 %v1118
        %v1685 = vpop.f32.mrb[0].mxu0
        %v1686 = vadd.f32 %v937, %v1685
        %v1687 = vpop.f32.mrb[0].mxu0
        %1688 = vmatprep.mubr.f32.mxu0 0.0
        %1689 = vmatmul.mubr.f32.gmra.mrb[0].mxu0 %v1121
        %v1690 = vpop.f32.mrb[0].mxu0
        %v1691 = vadd.f32 %v937, %v1690
        %v1692 = vpop.f32.mrb[0].mxu0
        %1693 = vmatprep.mubr.f32.mxu0 0.0
        %1694 = vmatmul.mubr.f32.gmra.mrb[0].mxu0 %v1124
        %v1695 = vpop.f32.mrb[0].mxu0
        %v1696 = vadd.f32 %v937, %v1695
        %v1697 = vpop.f32.mrb[0].mxu0
        %1698 = vmatprep.mubr.f32.mxu0 0.0
        %1699 = vmatmul.mubr.f32.gmra.mrb[0].mxu0 %v1127
        %v1700 = vpop.f32.mrb[0].mxu0
        %v1701 = vadd.f32 %v937, %v1700
        %v1702 = vpop.f32.mrb[0].mxu0
        %1703 = vmatprep.mubr.f32.mxu0 0.0
        %1704 = vmatmul.mubr.f32.gmra.mrb[0].mxu0 %v1130
        %v1705 = vpop.f32.mrb[0].mxu0
        %v1706 = vadd.f32 %v937, %v1705
        %v1707 = vpop.f32.mrb[0].mxu0
        %1708 = vmatprep.mubr.f32.mxu0 0.0
        %1709 = vmatmul.mubr.f32.gmra.mrb[0].mxu0 %v1133
        %v1710 = vpop.f32.mrb[0].mxu0
        %v1711 = vadd.f32 %v937, %v1710
        %v1712 = vpop.f32.mrb[0].mxu0
        %1713 = vmatprep.mubr.f32.mxu0 0.0
        %1714 = vmatmul.mubr.f32.gmra.mrb[0].mxu0 %v1136
        %v1715 = vpop.f32.mrb[0].mxu0
        %v1716 = vadd.f32 %v937, %v1715
        %v1717 = vpop.f32.mrb[0].mxu0
        %1718 = vmatprep.mubr.f32.mxu0 0.0
        %1719 = vmatmul.mubr.f32.gmra.mrb[0].mxu0 %v1139
        %v1720 = vpop.f32.mrb[0].mxu0
        %v1721 = vadd.f32 %v937, %v1720
        %v1722 = vpop.f32.mrb[0].mxu0
        %1723 = vmatprep.mubr.f32.mxu0 0.0
        %1724 = vmatmul.mubr.f32.gmra.mrb[0].mxu0 %v1142
        %v1725 = vpop.f32.mrb[0].mxu0
        %v1726 = vadd.f32 %v937, %v1725
        %v1727 = vpop.f32.mrb[0].mxu0
        %1728 = vmatprep.mubr.f32.mxu0 0.0
        %1729 = vmatmul.mubr.f32.gmra.mrb[0].mxu0 %v1145
        %v1730 = vpop.f32.mrb[0].mxu0
        %v1731 = vadd.f32 %v937, %v1730
        %v1732 = vpop.f32.mrb[0].mxu0
        %1733 = vmatprep.mubr.f32.mxu0 0.0
        %1734 = vmatmul.mubr.f32.gmra.mrb[0].mxu0 %v1148
        %v1735 = vpop.f32.mrb[0].mxu0
        %v1736 = vadd.f32 %v937, %v1735
        %v1737 = vpop.f32.mrb[0].mxu0
        %1738 = vmatprep.mubr.f32.mxu0 0.0
        %1739 = vmatmul.mubr.f32.gmra.mrb[0].mxu0 %v1151
        %v1740 = vpop.f32.mrb[0].mxu0
        %v1741 = vadd.f32 %v937, %v1740
        %v1742 = vpop.f32.mrb[0].mxu0
        %1743 = vmatprep.mubr.f32.mxu0 0.0
        %1744 = vmatmul.mubr.f32.gmra.mrb[0].mxu0 %v1154
        %v1745 = vpop.f32.mrb[0].mxu0
        %v1746 = vadd.f32 %v937, %v1745
        %v1747 = vpop.f32.mrb[0].mxu0
        %1748 = vmatprep.mubr.f32.mxu0 0.0
        %1749 = vmatmul.mubr.f32.gmra.mrb[0].mxu0 %v1157
        %v1750 = vpop.f32.mrb[0].mxu0
        %v1751 = vadd.f32 %v937, %v1750
        %v1752 = vpop.f32.mrb[0].mxu0
        %1753 = vmatprep.mubr.f32.mxu0 0.0
        %1754 = vmatmul.mubr.f32.gmra.mrb[0].mxu0 %v1160
        %v1755 = vpop.f32.mrb[0].mxu0
        %v1756 = vadd.f32 %v937, %v1755
        %v1757 = vpop.f32.mrb[0].mxu0
        %1758 = vmatprep.mubr.f32.mxu0 0.0
        %1759 = vmatmul.mubr.f32.gmra.mrb[0].mxu0 %v1163
        %v1760 = vpop.f32.mrb[0].mxu0
        %v1761 = vadd.f32 %v937, %v1760
        %v1762 = vpop.f32.mrb[0].mxu0
        %1763 = vmatprep.mubr.f32.mxu0 0.0
        %1764 = vmatmul.mubr.f32.gmra.mrb[0].mxu0 %v1166
        %v1765 = vpop.f32.mrb[0].mxu0
        %v1766 = vadd.f32 %v937, %v1765
        %v1767 = vpop.f32.mrb[0].mxu0
        %1768 = vmatprep.mubr.f32.mxu0 0.0
        %1769 = vmatmul.mubr.f32.gmra.mrb[0].mxu0 %v1169
        %v1770 = vpop.f32.mrb[0].mxu0
        %v1771 = vadd.f32 %v937, %v1770
        %v1772 = vpop.f32.mrb[0].mxu0
        %1773 = vmatprep.mubr.f32.mxu0 0.0
        %1774 = vmatmul.mubr.f32.gmra.mrb[0].mxu0 %v1172
        %v1775 = vpop.f32.mrb[0].mxu0
        %v1776 = vadd.f32 %v937, %v1775
        %v1777 = vpop.f32.mrb[0].mxu0
        %1778 = vmatprep.mubr.f32.mxu0 0.0
        %1779 = vmatmul.mubr.f32.gmra.mrb[0].mxu0 %v1175
        %v1780 = vpop.f32.mrb[0].mxu0
        %v1781 = vadd.f32 %v937, %v1780
        %v1782 = vpop.f32.mrb[0].mxu0
        %1783 = vmatprep.mubr.f32.mxu0 0.0
        %1784 = vmatmul.mubr.f32.gmra.mrb[0].mxu0 %v1178
        %v1785 = vpop.f32.mrb[0].mxu0
        %v1786 = vadd.f32 %v937, %v1785
        %v1787 = vpop.f32.mrb[0].mxu0
        %1788 = vmatprep.mubr.f32.mxu0 0.0
        %1789 = vmatmul.mubr.f32.gmra.mrb[0].mxu0 %v1181
        %v1790 = vpop.f32.mrb[0].mxu0
        %v1791 = vadd.f32 %v937, %v1790
        %v1792 = vpop.f32.mrb[0].mxu0
        %1793 = vmatprep.mubr.f32.mxu0 0.0
        %1794 = vmatmul.mubr.f32.gmra.mrb[0].mxu0 %v1184
        %v1795 = vpop.f32.mrb[0].mxu0
        %v1796 = vadd.f32 %v937, %v1795
        %v1797 = vpop.f32.mrb[0].mxu0
        %1798 = vmatprep.mubr.f32.mxu0 0.0
        %1799 = vmatmul.mubr.f32.gmra.mrb[0].mxu0 %v1187
        %v1800 = vpop.f32.mrb[0].mxu0
        %v1801 = vadd.f32 %v937, %v1800
        %v1802 = vpop.f32.mrb[0].mxu0
        %1803 = vmatprep.mubr.f32.mxu0 0.0
        %1804 = vmatmul.mubr.f32.gmra.mrb[0].mxu0 %v1190
        %v1805 = vpop.f32.mrb[0].mxu0
        %v1806 = vadd.f32 %v937, %v1805
        %v1807 = vpop.f32.mrb[0].mxu0
        %1808 = vmatprep.mubr.f32.mxu0 0.0
        %1809 = vmatmul.mubr.f32.gmra.mrb[0].mxu0 %v1193
        %v1810 = vpop.f32.mrb[0].mxu0
        %v1811 = vadd.f32 %v937, %v1810
        %v1812 = vpop.f32.mrb[0].mxu0
        %1813 = vmatprep.mubr.f32.mxu0 0.0
        %1814 = vmatmul.mubr.f32.gmra.mrb[0].mxu0 %v1196
        %v1815 = vpop.f32.mrb[0].mxu0
        %v1816 = vadd.f32 %v937, %v1815
        %v1817 = vpop.f32.mrb[0].mxu0
        %1818 = vmatprep.mubr.f32.mxu0 0.0
        %1819 = vmatmul.mubr.f32.gmra.mrb[0].mxu0 %v1199
        %v1820 = vpop.f32.mrb[0].mxu0
        %v1821 = vadd.f32 %v937, %v1820
        %v1822 = vpop.f32.mrb[0].mxu0
        %1823 = vmatprep.mubr.f32.mxu0 0.0
        %1824 = vmatmul.mubr.f32.gmra.mrb[0].mxu0 %v1202
        %v1825 = vpop.f32.mrb[0].mxu0
        %v1826 = vadd.f32 %v937, %v1825
        %v1827 = vpop.f32.mrb[0].mxu0
        %1828 = vmatprep.mubr.f32.mxu0 0.0
        %1829 = vmatmul.mubr.f32.gmra.mrb[0].mxu0 %v1205
        %v1830 = vpop.f32.mrb[0].mxu0
        %v1831 = vadd.f32 %v937, %v1830
        %v1832 = vpop.f32.mrb[0].mxu0
        %1833 = vmatprep.mubr.f32.mxu0 0.0
        %1834 = vmatmul.mubr.f32.gmra.mrb[0].mxu0 %v1208
        %v1835 = vpop.f32.mrb[0].mxu0
        %v1836 = vadd.f32 %v937, %v1835
        %v1837 = vpop.f32.mrb[0].mxu0
        %1838 = vmatprep.mubr.f32.mxu0 0.0
        %1839 = vmatmul.mubr.f32.gmra.mrb[0].mxu0 %v1211
        %v1840 = vpop.f32.mrb[0].mxu0
        %v1841 = vadd.f32 %v937, %v1840
        %v1842 = vpop.f32.mrb[0].mxu0
        %1843 = vmatprep.mubr.f32.mxu0 0.0
        %1844 = vmatmul.mubr.f32.gmra.mrb[0].mxu0 %v1214
        %v1845 = vpop.f32.mrb[0].mxu0
        %v1846 = vadd.f32 %v937, %v1845
        %v1847 = vpop.f32.mrb[0].mxu0
        %1848 = vmatprep.mubr.f32.mxu0 0.0
        %1849 = vmatmul.mubr.f32.gmra.mrb[0].mxu0 %v1217
        %v1850 = vpop.f32.mrb[0].mxu0
        %v1851 = vadd.f32 %v937, %v1850
        %v1852 = vpop.f32.mrb[0].mxu0
        %1853 = vmatprep.mubr.f32.mxu0 0.0
        %1854 = vmatmul.mubr.f32.gmra.mrb[0].mxu0 %v1220
        %v1855 = vpop.f32.mrb[0].mxu0
        %v1856 = vadd.f32 %v937, %v1855
        %v1857 = vpop.f32.mrb[0].mxu0
        %1858 = vmatprep.mubr.f32.mxu0 0.0
        %1859 = vmatmul.mubr.f32.gmra.mrb[0].mxu0 %v1223
        %v1860 = vpop.f32.mrb[0].mxu0
        %v1861 = vadd.f32 %v937, %v1860
        %v1862 = vpop.f32.mrb[0].mxu0
        %1863 = vmatprep.mubr.f32.mxu0 0.0
        %1864 = vmatmul.mubr.f32.gmra.mrb[0].mxu0 %v1226
        %v1865 = vpop.f32.mrb[0].mxu0
        %v1866 = vadd.f32 %v937, %v1865
        %v1867 = vpop.f32.mrb[0].mxu0
        %1868 = vmatprep.mubr.f32.mxu0 0.0
        %1869 = vmatmul.mubr.f32.gmra.mrb[0].mxu0 %v1229
        %v1870 = vpop.f32.mrb[0].mxu0
        %v1871 = vadd.f32 %v937, %v1870
        %v1872 = vpop.f32.mrb[0].mxu0
        %1873 = vmatprep.mubr.f32.mxu0 0.0
        %1874 = vmatmul.mubr.f32.gmra.mrb[0].mxu0 %v1232
        %v1875 = vpop.f32.mrb[0].mxu0
        %v1876 = vadd.f32 %v937, %v1875
        %v1877 = vpop.f32.mrb[0].mxu0
        %1878 = vmatprep.mubr.f32.mxu0 0.0
        %1879 = vmatmul.mubr.f32.gmra.mrb[0].mxu0 %v1235
        %v1880 = vpop.f32.mrb[0].mxu0
        %v1881 = vadd.f32 %v937, %v1880
        %v1882 = vpop.f32.mrb[0].mxu0
        %1883 = vmatprep.mubr.f32.mxu0 0.0
        %1884 = vmatmul.mubr.f32.gmra.mrb[0].mxu0 %v1238
        %v1885 = vpop.f32.mrb[0].mxu0
        %v1886 = vadd.f32 %v937, %v1885
        %v1887 = vpop.f32.mrb[0].mxu0
        %1888 = vmatprep.mubr.f32.mxu0 0.0
        %1889 = vmatmul.mubr.f32.gmra.mrb[0].mxu0 %v1241
        %v1890 = vpop.f32.mrb[0].mxu0
        %v1891 = vadd.f32 %v937, %v1890
        %v1892 = vpop.f32.mrb[0].mxu0
        %1893 = vmatprep.mubr.f32.mxu0 0.0
        %1894 = vmatmul.mubr.f32.gmra.mrb[0].mxu0 %v1244
        %v1895 = vpop.f32.mrb[0].mxu0
        %v1896 = vadd.f32 %v937, %v1895
        %v1897 = vpop.f32.mrb[0].mxu0
        %1898 = vmatprep.mubr.f32.mxu0 0.0
        %1899 = vmatmul.mubr.f32.gmra.mrb[0].mxu0 %v1247
        %v1900 = vpop.f32.mrb[0].mxu0
        %v1901 = vadd.f32 %v937, %v1900
        %v1902 = vpop.f32.mrb[0].mxu0
        %1903 = vmatprep.mubr.f32.mxu0 0.0
        %1904 = vmatmul.mubr.f32.gmra.mrb[0].mxu0 %v1250
        %v1905 = vpop.f32.mrb[0].mxu0
        %v1906 = vadd.f32 %v937, %v1905
        %v1907 = vpop.f32.mrb[0].mxu0
        %1908 = vmatprep.mubr.f32.mxu0 0.0
        %1909 = vmatmul.mubr.f32.gmra.mrb[0].mxu0 %v1253
        %v1910 = vpop.f32.mrb[0].mxu0
        %v1911 = vadd.f32 %v937, %v1910
        %v1912 = vpop.f32.mrb[0].mxu0
        %1913 = vmatprep.mubr.f32.mxu0 0.0
        %1914 = vmatmul.mubr.f32.gmra.mrb[0].mxu0 %v1256
        %v1915 = vpop.f32.mrb[0].mxu0
        %v1916 = vadd.f32 %v937, %v1915
        %v1917 = vpop.f32.mrb[0].mxu0
        %1918 = vmatprep.mubr.f32.mxu0 0.0
        %1919 = vmatmul.mubr.f32.gmra.mrb[0].mxu0 %v1259
        %v1920 = vpop.f32.mrb[0].mxu0
        %v1921 = vadd.f32 %v937, %v1920
        %v1922 = vpop.f32.mrb[0].mxu0
        %1923 = vmatprep.mubr.f32.mxu0 0.0
        %1924 = vmatmul.mubr.f32.gmra.mrb[0].mxu0 %v1262
        %v1925 = vpop.f32.mrb[0].mxu0
        %v1926 = vadd.f32 %v937, %v1925
        %v1927 = vpop.f32.mrb[0].mxu0
        %1928 = vmatprep.mubr.f32.mxu0 0.0
        %1929 = vmatmul.mubr.f32.gmra.mrb[0].mxu0 %v1265
        %v1930 = vpop.f32.mrb[0].mxu0
        %v1931 = vadd.f32 %v937, %v1930
        %v1932 = vpop.f32.mrb[0].mxu0
        %1933 = vmatprep.mubr.f32.mxu0 0.0
        %1934 = vmatmul.mubr.f32.gmra.mrb[0].mxu0 %v1268
        %v1935 = vpop.f32.mrb[0].mxu0
        %v1936 = vadd.f32 %v937, %v1935
        %v1937 = vpop.f32.mrb[0].mxu0
        %1938 = vmatprep.mubr.f32.mxu0 0.0
        %1939 = vmatmul.mubr.f32.gmra.mrb[0].mxu0 %v1271
        %v1940 = vpop.f32.mrb[0].mxu0
        %v1941 = vadd.f32 %v937, %v1940
        %v1942 = vpop.f32.mrb[0].mxu0
        %1943 = vmatprep.mubr.f32.mxu0 0.0
        %1944 = vmatmul.mubr.f32.gmra.mrb[0].mxu0 %v1274
        %v1945 = vpop.f32.mrb[0].mxu0
        %v1946 = vadd.f32 %v937, %v1945
        %v1947 = vpop.f32.mrb[0].mxu0
        %1948 = vmatprep.mubr.f32.mxu0 0.0
        %1949 = vmatmul.mubr.f32.gmra.mrb[0].mxu0 %v1277
        %v1950 = vpop.f32.mrb[0].mxu0
        %v1951 = vadd.f32 %v937, %v1950
        %v1952 = vpop.f32.mrb[0].mxu0
        %1953 = vmatprep.mubr.f32.mxu0 0.0
        %1954 = vmatmul.mubr.f32.gmra.mrb[0].mxu0 %v1280
        %v1955 = vpop.f32.mrb[0].mxu0
        %v1956 = vadd.f32 %v937, %v1955
        %v1957 = vpop.f32.mrb[0].mxu0
        %1958 = vmatprep.mubr.f32.mxu0 0.0
        %1959 = vmatmul.mubr.f32.gmra.mrb[0].mxu0 %v1283
        %v1960 = vpop.f32.mrb[0].mxu0
        %v1961 = vadd.f32 %v937, %v1960
        %v1962 = vpop.f32.mrb[0].mxu0
        %1963 = vmatprep.mubr.f32.mxu0 0.0
        %1964 = vmatmul.mubr.f32.gmra.mrb[0].mxu0 %v1286
        %v1965 = vpop.f32.mrb[0].mxu0
        %v1966 = vadd.f32 %v937, %v1965
        %v1967 = vpop.f32.mrb[0].mxu0
        %1968 = vmatprep.mubr.f32.mxu0 0.0
        %1969 = vmatmul.mubr.f32.gmra.mrb[0].mxu0 %v1289
        %v1970 = vpop.f32.mrb[0].mxu0
        %v1971 = vadd.f32 %v937, %v1970
        %v1972 = vpop.f32.mrb[0].mxu0
        %1973 = vmatprep.mubr.f32.mxu0 0.0
        %1974 = vmatmul.mubr.f32.gmra.mrb[0].mxu0 %v1292
        %v1975 = vpop.f32.mrb[0].mxu0
        %v1976 = vadd.f32 %v937, %v1975
        %v1977 = vpop.f32.mrb[0].mxu0
        %1978 = vmatprep.mubr.f32.mxu0 0.0
        %1979 = vmatmul.mubr.f32.gmra.mrb[0].mxu0 %v1295
        %v1980 = vpop.f32.mrb[0].mxu0
        %v1981 = vadd.f32 %v937, %v1980
        %v1982 = vpop.f32.mrb[0].mxu0
        %1983 = vmatprep.mubr.f32.mxu0 0.0
        %1984 = vmatmul.mubr.f32.gmra.mrb[0].mxu0 %v1298
        %v1985 = vpop.f32.mrb[0].mxu0
        %v1986 = vadd.f32 %v937, %v1985
        %v1987 = vpop.f32.mrb[0].mxu0
        %1988 = vmatprep.mubr.f32.mxu0 0.0
        %1989 = vmatmul.mubr.f32.gmra.mrb[0].mxu0 %v1301
        %v1990 = vpop.f32.mrb[0].mxu0
        %v1991 = vadd.f32 %v937, %v1990
        %v1992 = vpop.f32.mrb[0].mxu0
        %1993 = vmatprep.mubr.f32.mxu0 0.0
        %1994 = vmatmul.mubr.f32.gmra.mrb[0].mxu0 %v1304
        %v1995 = vpop.f32.mrb[0].mxu0
        %v1996 = vadd.f32 %v937, %v1995
        %v1997 = vpop.f32.mrb[0].mxu0
        %1998 = vmatprep.mubr.f32.mxu0 0.0
        %1999 = vmatmul.mubr.f32.gmra.mrb[0].mxu0 %v1307
        %v2000 = vpop.f32.mrb[0].mxu0
        %v2001 = vadd.f32 %v937, %v2000
        %v2002 = vpop.f32.mrb[0].mxu0
        %2003 = vmatprep.mubr.f32.mxu0 0.0
        %2004 = vmatmul.mubr.f32.gmra.mrb[0].mxu0 %v1310
        %v2005 = vpop.f32.mrb[0].mxu0
        %v2006 = vadd.f32 %v937, %v2005
        %v2007 = vpop.f32.mrb[0].mxu0
        %2008 = vmatprep.mubr.f32.mxu0 0.0
        %2009 = vmatmul.mubr.f32.gmra.mrb[0].mxu0 %v1313
        %v2010 = vpop.f32.mrb[0].mxu0
        %v2011 = vadd.f32 %v937, %v2010
        %v2012 = vpop.f32.mrb[0].mxu0
        %2013 = vmatprep.mubr.f32.mxu0 0.0
        %2014 = vmatmul.mubr.f32.gmra.mrb[0].mxu0 %v1316
        %v2015 = vpop.f32.mrb[0].mxu0
        %v2016 = vadd.f32 %v937, %v2015
        %v2017 = vpop.f32.mrb[0].mxu0
        %2018 = vmatprep.mubr.f32.mxu0 0.0
        %2019 = vmatmul.mubr.f32.gmra.mrb[0].mxu0 %v1319
        %v2020 = vpop.f32.mrb[0].mxu0
        %v2021 = vadd.f32 %v937, %v2020
        %v2022 = vpop.f32.mrb[0].mxu0
        %2023 = vmatprep.mubr.f32.mxu0 0.0
        %2024 = vmatmul.mubr.f32.gmra.mrb[0].mxu0 %v1322
        %v2025 = vpop.f32.mrb[0].mxu0
        %v2026 = vadd.f32 %v937, %v2025
        %v2027 = vpop.f32.mrb[0].mxu0
        %2028 = vdwg.mxu0
        %vm2029 = vcmask 261120
        %v2031 = vsel %vm2029, 0.0, 0
        %2033 = vmatprep.subr.mxu0 0.0
        %2034 = vmatpush1.msra.mxu0 %v928
        %2035 = vmatprep.subr.mxu0 0.0
        %2036 = vmatpush1.msra.mxu0 %v929
        %2037 = vmatprep.subr.mxu0 0.0
        %2038 = vmatpush1.msra.mxu0 %v930
        %2039 = vmatprep.subr.mxu0 0.0
        %2040 = vmatpush1.msra.mxu0 %v931
        %2041 = vmatprep.subr.mxu0 0.0
        %2042 = vmatpush1.msra.mxu0 0.0
        %2043 = vmatprep.subr.mxu0 0.0
        %2044 = vmatpush1.msra.mxu0 0.0
        %2045 = vmatprep.subr.mxu0 0.0
        %2046 = vmatpush1.msra.mxu0 0.0
        %2047 = vmatprep.subr.mxu0 0.0
        %2048 = vmatpush1.msra.mxu0 0.0
        %2049 = vmatprep.subr.mxu0 0.0
        %2050 = vmatpush1.msra.mxu0 0.0
        %2051 = vmatprep.subr.mxu0 0.0
        %2052 = vmatpush1.msra.mxu0 0.0
        %2053 = vmatprep.subr.mxu0 0.0
        %2054 = vmatpush1.msra.mxu0 0.0
        %2055 = vmatprep.subr.mxu0 0.0
        %2056 = vmatpush1.msra.mxu0 0.0
        %2057 = vmatprep.subr.mxu0 0.0
        %2058 = vmatpush1.msra.mxu0 0.0
        %2059 = vmatprep.subr.mxu0 0.0
        %2060 = vmatpush1.msra.mxu0 0.0
        %2061 = vmatprep.subr.mxu0 0.0
        %2062 = vmatpush1.msra.mxu0 0.0
        %2063 = vmatprep.subr.mxu0 0.0
        %2064 = vmatpush1.msra.mxu0 0.0
        %2065 = vmatprep.subr.mxu0 0.0
        %2066 = vmatpush1.msra.mxu0 0.0
        %2067 = vmatprep.subr.mxu0 0.0
        %2068 = vmatpush1.msra.mxu0 0.0
        %2069 = vmatprep.subr.mxu0 0.0
        %2070 = vmatpush1.msra.mxu0 0.0
        %2071 = vmatprep.subr.mxu0 0.0
        %2072 = vmatpush1.msra.mxu0 0.0
        %2073 = vmatprep.subr.mxu0 0.0
        %2074 = vmatpush1.msra.mxu0 0.0
        %2075 = vmatprep.subr.mxu0 0.0
        %2076 = vmatpush1.msra.mxu0 0.0
        %2077 = vmatprep.subr.mxu0 0.0
        %2078 = vmatpush1.msra.mxu0 0.0
        %2079 = vmatprep.subr.mxu0 0.0
        %2080 = vmatpush1.msra.mxu0 0.0
        %2081 = vmatprep.subr.mxu0 0.0
        %2082 = vmatpush1.msra.mxu0 0.0
        %2083 = vmatprep.subr.mxu0 0.0
        %2084 = vmatpush1.msra.mxu0 0.0
        %2085 = vmatprep.subr.mxu0 0.0
        %2086 = vmatpush1.msra.mxu0 0.0
        %2087 = vmatprep.subr.mxu0 0.0
        %2088 = vmatpush1.msra.mxu0 0.0
        %2089 = vmatprep.subr.mxu0 0.0
        %2090 = vmatpush1.msra.mxu0 0.0
        %2091 = vmatprep.subr.mxu0 0.0
        %2092 = vmatpush1.msra.mxu0 0.0
        %2093 = vmatprep.subr.mxu0 0.0
        %2094 = vmatpush1.msra.mxu0 0.0
        %2095 = vmatprep.subr.mxu0 0.0
        %2096 = vmatpush1.msra.mxu0 0.0
        %2097 = vmatprep.mubr.f32.mxu0 0.0
        %2098 = vmatmul.mubr.f32.gmra.mrb[0].mxu0 %v2031
        %v2099 = vpop.f32.mrb[0].mxu0
        %v2100 = vadd.f32 0.0, %v2099
        %v2101 = vpop.f32.mrb[0].mxu0
        %2102 = vmatprep.mubr.f32.mxu0 0.0
        %2103 = vmatmul.mubr.f32.gmra.mrb[0].mxu0 %v2031
        %v2104 = vpop.f32.mrb[0].mxu0
        %v2105 = vadd.f32 0.0, %v2104
        %v2106 = vpop.f32.mrb[0].mxu0
        %2107 = vmatprep.mubr.f32.mxu0 0.0
        %2108 = vmatmul.mubr.f32.gmra.mrb[0].mxu0 %v2031
        %v2109 = vpop.f32.mrb[0].mxu0
        %v2110 = vadd.f32 0.0, %v2109
        %v2111 = vpop.f32.mrb[0].mxu0
        %2112 = vmatprep.mubr.f32.mxu0 0.0
        %2113 = vmatmul.mubr.f32.gmra.mrb[0].mxu0 %v2031
        %v2114 = vpop.f32.mrb[0].mxu0
        %v2115 = vadd.f32 0.0, %v2114
        %v2116 = vpop.f32.mrb[0].mxu0
        %2117 = vmatprep.mubr.f32.mxu0 0.0
        %2118 = vmatmul.mubr.f32.gmra.mrb[0].mxu0 %v2031
        %v2119 = vpop.f32.mrb[0].mxu0
        %v2120 = vadd.f32 0.0, %v2119
        %v2121 = vpop.f32.mrb[0].mxu0
        %2122 = vmatprep.mubr.f32.mxu0 0.0
        %2123 = vmatmul.mubr.f32.gmra.mrb[0].mxu0 %v2031
        %v2124 = vpop.f32.mrb[0].mxu0
        %v2125 = vadd.f32 0.0, %v2124
        %v2126 = vpop.f32.mrb[0].mxu0
        %2127 = vmatprep.mubr.f32.mxu0 0.0
        %2128 = vmatmul.mubr.f32.gmra.mrb[0].mxu0 %v2031
        %v2129 = vpop.f32.mrb[0].mxu0
        %v2130 = vadd.f32 0.0, %v2129
        %v2131 = vpop.f32.mrb[0].mxu0
        %2132 = vmatprep.mubr.f32.mxu0 0.0
        %2133 = vmatmul.mubr.f32.gmra.mrb[0].mxu0 %v2031
        %v2134 = vpop.f32.mrb[0].mxu0
        %v2135 = vadd.f32 0.0, %v2134
        %v2136 = vpop.f32.mrb[0].mxu0
        %2137 = vmatprep.mubr.f32.mxu0 0.0
        %2138 = vmatmul.mubr.f32.gmra.mrb[0].mxu0 %v2031
        %v2139 = vpop.f32.mrb[0].mxu0
        %v2140 = vadd.f32 0.0, %v2139
        %v2141 = vpop.f32.mrb[0].mxu0
        %2142 = vmatprep.mubr.f32.mxu0 0.0
        %2143 = vmatmul.mubr.f32.gmra.mrb[0].mxu0 %v2031
        %v2144 = vpop.f32.mrb[0].mxu0
        %v2145 = vadd.f32 0.0, %v2144
        %v2146 = vpop.f32.mrb[0].mxu0
        %2147 = vmatprep.mubr.f32.mxu0 0.0
        %2148 = vmatmul.mubr.f32.gmra.mrb[0].mxu0 %v2031
        %v2149 = vpop.f32.mrb[0].mxu0
        %v2150 = vadd.f32 0.0, %v2149
        %v2151 = vpop.f32.mrb[0].mxu0
        %2152 = vmatprep.mubr.f32.mxu0 0.0
        %2153 = vmatmul.mubr.f32.gmra.mrb[0].mxu0 %v2031
        %v2154 = vpop.f32.mrb[0].mxu0
        %v2155 = vadd.f32 0.0, %v2154
        %v2156 = vpop.f32.mrb[0].mxu0
        %2157 = vmatprep.mubr.f32.mxu0 0.0
        %2158 = vmatmul.mubr.f32.gmra.mrb[0].mxu0 %v2031
        %v2159 = vpop.f32.mrb[0].mxu0
        %v2160 = vadd.f32 0.0, %v2159
        %v2161 = vpop.f32.mrb[0].mxu0
        %2162 = vmatprep.mubr.f32.mxu0 0.0
        %2163 = vmatmul.mubr.f32.gmra.mrb[0].mxu0 %v2031
        %v2164 = vpop.f32.mrb[0].mxu0
        %v2165 = vadd.f32 0.0, %v2164
        %v2166 = vpop.f32.mrb[0].mxu0
        %2167 = vmatprep.mubr.f32.mxu0 0.0
        %2168 = vmatmul.mubr.f32.gmra.mrb[0].mxu0 %v2031
        %v2169 = vpop.f32.mrb[0].mxu0
        %v2170 = vadd.f32 0.0, %v2169
        %v2171 = vpop.f32.mrb[0].mxu0
        %2172 = vmatprep.mubr.f32.mxu0 0.0
        %2173 = vmatmul.mubr.f32.gmra.mrb[0].mxu0 %v2031
        %v2174 = vpop.f32.mrb[0].mxu0
        %v2175 = vadd.f32 0.0, %v2174
        %v2176 = vpop.f32.mrb[0].mxu0
        %2177 = vdwg.mxu0
        %v2178 = vadd.f32 %v1391, %v2100
        %v2179 = vadd.f32 %v1396, %v2105
        %v2180 = vadd.f32 %v1401, %v2110
        %v2181 = vadd.f32 %v1406, %v2115
        %v2182 = vadd.f32 %v1411, %v2120
        %v2183 = vadd.f32 %v1416, %v2125
        %v2184 = vadd.f32 %v1421, %v2130
        %v2185 = vadd.f32 %v1426, %v2135
        %v2186 = vadd.f32 %v1431, %v2140
        %v2187 = vadd.f32 %v1436, %v2145
        %v2188 = vadd.f32 %v1441, %v2150
        %v2189 = vadd.f32 %v1446, %v2155
        %v2190 = vadd.f32 %v1451, %v2160
        %v2191 = vadd.f32 %v1456, %v2165
        %v2192 = vadd.f32 %v1461, %v2170
        %v2193 = vadd.f32 %v1466, %v2175
        %v2194 = vtanh.pop %v2178
        %v2195 = vtanh.pop %v2179
        %v2196 = vtanh.pop %v2180
        %v2197 = vtanh.pop %v2181
        %v2198 = vtanh.pop %v2182
        %v2199 = vtanh.pop %v2183
        %v2200 = vtanh.pop %v2184
        %v2201 = vtanh.pop %v2185
        %v2202 = vtanh.pop %v2186
        %v2203 = vtanh.pop %v2187
        %v2204 = vtanh.pop %v2188
        %v2205 = vtanh.pop %v2189
        %v2206 = vtanh.pop %v2190
        %v2207 = vtanh.pop %v2191
        %v2208 = vtanh.pop %v2192
        %v2209 = vtanh.pop %v2193
        %v2210 = vadd.f32 %v2194, 1.0
        %v2211 = vadd.f32 %v2195, 1.0
        %v2212 = vadd.f32 %v2196, 1.0
        %v2213 = vadd.f32 %v2197, 1.0
        %v2214 = vadd.f32 %v2198, 1.0
        %v2215 = vadd.f32 %v2199, 1.0
        %v2216 = vadd.f32 %v2200, 1.0
        %v2217 = vadd.f32 %v2201, 1.0
        %v2218 = vadd.f32 %v2202, 1.0
        %v2219 = vadd.f32 %v2203, 1.0
        %v2220 = vadd.f32 %v2204, 1.0
        %v2221 = vadd.f32 %v2205, 1.0
        %v2222 = vadd.f32 %v2206, 1.0
        %v2223 = vadd.f32 %v2207, 1.0
        %v2224 = vadd.f32 %v2208, 1.0
        %v2225 = vadd.f32 %v2209, 1.0
        %v2226 = vmul.f32 %v2210, 0.5
        %v2227 = vmul.f32 %v2211, 0.5
        %v2228 = vmul.f32 %v2212, 0.5
        %v2229 = vmul.f32 %v2213, 0.5
        %v2230 = vmul.f32 %v2214, 0.5
        %v2231 = vmul.f32 %v2215, 0.5
        %v2232 = vmul.f32 %v2216, 0.5
        %v2233 = vmul.f32 %v2217, 0.5
        %v2234 = vmul.f32 %v2218, 0.5
        %v2235 = vmul.f32 %v2219, 0.5
        %v2236 = vmul.f32 %v2220, 0.5
        %v2237 = vmul.f32 %v2221, 0.5
        %v2238 = vmul.f32 %v2222, 0.5
        %v2239 = vmul.f32 %v2223, 0.5
        %v2240 = vmul.f32 %v2224, 0.5
        %v2241 = vmul.f32 %v2225, 0.5
        %v2242 = vmul.f32 %v2226, 0.0
        %v2243 = vmul.f32 %v2227, 0.0
        %v2244 = vmul.f32 %v2228, 0.0
        %v2245 = vmul.f32 %v2229, 0.0
        %v2246 = vmul.f32 %v2230, 0.0
        %v2247 = vmul.f32 %v2231, 0.0
        %v2248 = vmul.f32 %v2232, 0.0
        %v2249 = vmul.f32 %v2233, 0.0
        %v2250 = vmul.f32 %v2234, 0.0
        %v2251 = vmul.f32 %v2235, 0.0
        %v2252 = vmul.f32 %v2236, 0.0
        %v2253 = vmul.f32 %v2237, 0.0
        %v2254 = vmul.f32 %v2238, 0.0
        %v2255 = vmul.f32 %v2239, 0.0
        %v2256 = vmul.f32 %v2240, 0.0
        %v2257 = vmul.f32 %v2241, 0.0
        %2274 = vrot.lane.b32.xlu0 %v2194, 32
        %v2275 = vpop.permute.xlu0 %2274
        %2276 = vrot.lane.b32.xlu0 %v2195, 32
        %v2277 = vpop.permute.xlu0 %2276
        %2278 = vrot.lane.b32.xlu0 %v2196, 32
        %v2279 = vpop.permute.xlu0 %2278
        %2280 = vrot.lane.b32.xlu0 %v2197, 32
        %v2281 = vpop.permute.xlu0 %2280
        %2282 = vrot.lane.b32.xlu0 %v2198, 32
        %v2283 = vpop.permute.xlu0 %2282
        %2284 = vrot.lane.b32.xlu0 %v2199, 32
        %v2285 = vpop.permute.xlu0 %2284
        %2286 = vrot.lane.b32.xlu0 %v2200, 32
        %v2287 = vpop.permute.xlu0 %2286
        %2288 = vrot.lane.b32.xlu0 %v2201, 32
        %v2289 = vpop.permute.xlu0 %2288
        %2290 = vrot.lane.b32.xlu0 %v2202, 32
        %v2291 = vpop.permute.xlu0 %2290
        %2292 = vrot.lane.b32.xlu0 %v2203, 32
        %v2293 = vpop.permute.xlu0 %2292
        %2294 = vrot.lane.b32.xlu0 %v2204, 32
        %v2295 = vpop.permute.xlu0 %2294
        %2296 = vrot.lane.b32.xlu0 %v2205, 32
        %v2297 = vpop.permute.xlu0 %2296
        %2298 = vrot.lane.b32.xlu0 %v2206, 32
        %v2299 = vpop.permute.xlu0 %2298
        %2300 = vrot.lane.b32.xlu0 %v2207, 32
        %v2301 = vpop.permute.xlu0 %2300
        %2302 = vrot.lane.b32.xlu0 %v2208, 32
        %v2303 = vpop.permute.xlu0 %2302
        %2304 = vrot.lane.b32.xlu0 %v2209, 32
        %v2305 = vpop.permute.xlu0 %2304
        %v2322 = vmul.f32 %v2226, %v2275
        %v2323 = vmul.f32 %v2227, %v2277
        %v2324 = vmul.f32 %v2228, %v2279
        %v2325 = vmul.f32 %v2229, %v2281
        %v2326 = vmul.f32 %v2230, %v2283
        %v2327 = vmul.f32 %v2231, %v2285
        %v2328 = vmul.f32 %v2232, %v2287
        %v2329 = vmul.f32 %v2233, %v2289
        %v2330 = vmul.f32 %v2234, %v2291
        %v2331 = vmul.f32 %v2235, %v2293
        %v2332 = vmul.f32 %v2236, %v2295
        %v2333 = vmul.f32 %v2237, %v2297
        %v2334 = vmul.f32 %v2238, %v2299
        %v2335 = vmul.f32 %v2239, %v2301
        %v2336 = vmul.f32 %v2240, %v2303
        %v2337 = vmul.f32 %v2241, %v2305
        %2354 = vrot.lane.b32.xlu0 %v2322, 32
        %v2355 = vpop.permute.xlu0 %2354
        %2356 = vrot.lane.b32.xlu0 %v2323, 32
        %v2357 = vpop.permute.xlu0 %2356
        %2358 = vrot.lane.b32.xlu0 %v2324, 32
        %v2359 = vpop.permute.xlu0 %2358
        %2360 = vrot.lane.b32.xlu0 %v2325, 32
        %v2361 = vpop.permute.xlu0 %2360
        %2362 = vrot.lane.b32.xlu0 %v2326, 32
        %v2363 = vpop.permute.xlu0 %2362
        %2364 = vrot.lane.b32.xlu0 %v2327, 32
        %v2365 = vpop.permute.xlu0 %2364
        %2366 = vrot.lane.b32.xlu0 %v2328, 32
        %v2367 = vpop.permute.xlu0 %2366
        %2368 = vrot.lane.b32.xlu0 %v2329, 32
        %v2369 = vpop.permute.xlu0 %2368
        %2370 = vrot.lane.b32.xlu0 %v2330, 32
        %v2371 = vpop.permute.xlu0 %2370
        %2372 = vrot.lane.b32.xlu0 %v2331, 32
        %v2373 = vpop.permute.xlu0 %2372
        %2374 = vrot.lane.b32.xlu0 %v2332, 32
        %v2375 = vpop.permute.xlu0 %2374
        %2376 = vrot.lane.b32.xlu0 %v2333, 32
        %v2377 = vpop.permute.xlu0 %2376
        %2378 = vrot.lane.b32.xlu0 %v2334, 32
        %v2379 = vpop.permute.xlu0 %2378
        %2380 = vrot.lane.b32.xlu0 %v2335, 32
        %v2381 = vpop.permute.xlu0 %2380
        %2382 = vrot.lane.b32.xlu0 %v2336, 32
        %v2383 = vpop.permute.xlu0 %2382
        %2384 = vrot.lane.b32.xlu0 %v2337, 32
        %v2385 = vpop.permute.xlu0 %2384
        %v2402 = vadd.f32 %v2242, %v2355
        %v2403 = vadd.f32 %v2243, %v2357
        %v2404 = vadd.f32 %v2244, %v2359
        %v2405 = vadd.f32 %v2245, %v2361
        %v2406 = vadd.f32 %v2246, %v2363
        %v2407 = vadd.f32 %v2247, %v2365
        %v2408 = vadd.f32 %v2248, %v2367
        %v2409 = vadd.f32 %v2249, %v2369
        %v2410 = vadd.f32 %v2250, %v2371
        %v2411 = vadd.f32 %v2251, %v2373
        %v2412 = vadd.f32 %v2252, %v2375
        %v2413 = vadd.f32 %v2253, %v2377
        %v2414 = vadd.f32 %v2254, %v2379
        %v2415 = vadd.f32 %v2255, %v2381
        %v2416 = vadd.f32 %v2256, %v2383
        %v2417 = vadd.f32 %v2257, %v2385
        %v2418 = vtanh.pop %v2402
        %v2419 = vtanh.pop %v2403
        %v2420 = vtanh.pop %v2404
        %v2421 = vtanh.pop %v2405
        %v2422 = vtanh.pop %v2406
        %v2423 = vtanh.pop %v2407
        %v2424 = vtanh.pop %v2408
        %v2425 = vtanh.pop %v2409
        %v2426 = vtanh.pop %v2410
        %v2427 = vtanh.pop %v2411
        %v2428 = vtanh.pop %v2412
        %v2429 = vtanh.pop %v2413
        %v2430 = vtanh.pop %v2414
        %v2431 = vtanh.pop %v2415
        %v2432 = vtanh.pop %v2416
        %v2433 = vtanh.pop %v2417
        %2450 = vrot.lane.b32.xlu0 %v2418, 32
        %v2451 = vpop.permute.xlu0 %2450
        %2452 = vrot.lane.b32.xlu0 %v2419, 32
        %v2453 = vpop.permute.xlu0 %2452
        %2454 = vrot.lane.b32.xlu0 %v2420, 32
        %v2455 = vpop.permute.xlu0 %2454
        %2456 = vrot.lane.b32.xlu0 %v2421, 32
        %v2457 = vpop.permute.xlu0 %2456
        %2458 = vrot.lane.b32.xlu0 %v2422, 32
        %v2459 = vpop.permute.xlu0 %2458
        %2460 = vrot.lane.b32.xlu0 %v2423, 32
        %v2461 = vpop.permute.xlu0 %2460
        %2462 = vrot.lane.b32.xlu0 %v2424, 32
        %v2463 = vpop.permute.xlu0 %2462
        %2464 = vrot.lane.b32.xlu0 %v2425, 32
        %v2465 = vpop.permute.xlu0 %2464
        %2466 = vrot.lane.b32.xlu0 %v2426, 32
        %v2467 = vpop.permute.xlu0 %2466
        %2468 = vrot.lane.b32.xlu0 %v2427, 32
        %v2469 = vpop.permute.xlu0 %2468
        %2470 = vrot.lane.b32.xlu0 %v2428, 32
        %v2471 = vpop.permute.xlu0 %2470
        %2472 = vrot.lane.b32.xlu0 %v2429, 32
        %v2473 = vpop.permute.xlu0 %2472
        %2474 = vrot.lane.b32.xlu0 %v2430, 32
        %v2475 = vpop.permute.xlu0 %2474
        %2476 = vrot.lane.b32.xlu0 %v2431, 32
        %v2477 = vpop.permute.xlu0 %2476
        %2478 = vrot.lane.b32.xlu0 %v2432, 32
        %v2479 = vpop.permute.xlu0 %2478
        %2480 = vrot.lane.b32.xlu0 %v2433, 32
        %v2481 = vpop.permute.xlu0 %2480
        %v2498 = vmul.f32 %v2226, %v2451
        %v2499 = vmul.f32 %v2227, %v2453
        %v2500 = vmul.f32 %v2228, %v2455
        %v2501 = vmul.f32 %v2229, %v2457
        %v2502 = vmul.f32 %v2230, %v2459
        %v2503 = vmul.f32 %v2231, %v2461
        %v2504 = vmul.f32 %v2232, %v2463
        %v2505 = vmul.f32 %v2233, %v2465
        %v2506 = vmul.f32 %v2234, %v2467
        %v2507 = vmul.f32 %v2235, %v2469
        %v2508 = vmul.f32 %v2236, %v2471
        %v2509 = vmul.f32 %v2237, %v2473
        %v2510 = vmul.f32 %v2238, %v2475
        %v2511 = vmul.f32 %v2239, %v2477
        %v2512 = vmul.f32 %v2240, %v2479
        %v2513 = vmul.f32 %v2241, %v2481
        %2530 = vrot.lane.b32.xlu0 %v2498, 64
        %v2531 = vpop.permute.xlu0 %2530
        %2532 = vrot.lane.b32.xlu0 %v2499, 64
        %v2533 = vpop.permute.xlu0 %2532
        %2534 = vrot.lane.b32.xlu0 %v2500, 64
        %v2535 = vpop.permute.xlu0 %2534
        %2536 = vrot.lane.b32.xlu0 %v2501, 64
        %v2537 = vpop.permute.xlu0 %2536
        %2538 = vrot.lane.b32.xlu0 %v2502, 64
        %v2539 = vpop.permute.xlu0 %2538
        %2540 = vrot.lane.b32.xlu0 %v2503, 64
        %v2541 = vpop.permute.xlu0 %2540
        %2542 = vrot.lane.b32.xlu0 %v2504, 64
        %v2543 = vpop.permute.xlu0 %2542
        %2544 = vrot.lane.b32.xlu0 %v2505, 64
        %v2545 = vpop.permute.xlu0 %2544
        %2546 = vrot.lane.b32.xlu0 %v2506, 64
        %v2547 = vpop.permute.xlu0 %2546
        %2548 = vrot.lane.b32.xlu0 %v2507, 64
        %v2549 = vpop.permute.xlu0 %2548
        %2550 = vrot.lane.b32.xlu0 %v2508, 64
        %v2551 = vpop.permute.xlu0 %2550
        %2552 = vrot.lane.b32.xlu0 %v2509, 64
        %v2553 = vpop.permute.xlu0 %2552
        %2554 = vrot.lane.b32.xlu0 %v2510, 64
        %v2555 = vpop.permute.xlu0 %2554
        %2556 = vrot.lane.b32.xlu0 %v2511, 64
        %v2557 = vpop.permute.xlu0 %2556
        %2558 = vrot.lane.b32.xlu0 %v2512, 64
        %v2559 = vpop.permute.xlu0 %2558
        %2560 = vrot.lane.b32.xlu0 %v2513, 64
        %v2561 = vpop.permute.xlu0 %2560
        %v2562 = vsel %vm2029, %v2531, 0
        %v2564 = vsel %vm2029, %v2533, 0
        %v2566 = vsel %vm2029, %v2535, 0
        %v2568 = vsel %vm2029, %v2537, 0
        %v2570 = vsel %vm2029, %v2539, 0
        %v2572 = vsel %vm2029, %v2541, 0
        %v2574 = vsel %vm2029, %v2543, 0
        %v2576 = vsel %vm2029, %v2545, 0
        %v2578 = vsel %vm2029, %v2547, 0
        %v2580 = vsel %vm2029, %v2549, 0
        %v2582 = vsel %vm2029, %v2551, 0
        %v2584 = vsel %vm2029, %v2553, 0
        %v2586 = vsel %vm2029, %v2555, 0
        %v2588 = vsel %vm2029, %v2557, 0
        %v2590 = vsel %vm2029, %v2559, 0
        %v2592 = vsel %vm2029, %v2561, 0
        %2594 = vmatprep.subr.mxu0 0.0
        %2595 = vmatpush1.msra.mxu0 %v928
        %2596 = vmatprep.subr.mxu0 0.0
        %2597 = vmatpush1.msra.mxu0 %v929
        %2598 = vmatprep.subr.mxu0 0.0
        %2599 = vmatpush1.msra.mxu0 %v930
        %2600 = vmatprep.subr.mxu0 0.0
        %2601 = vmatpush1.msra.mxu0 %v931
        %2602 = vmatprep.subr.mxu0 0.0
        %2603 = vmatpush1.msra.mxu0 0.0
        %2604 = vmatprep.subr.mxu0 0.0
        %2605 = vmatpush1.msra.mxu0 0.0
        %2606 = vmatprep.subr.mxu0 0.0
        %2607 = vmatpush1.msra.mxu0 0.0
        %2608 = vmatprep.subr.mxu0 0.0
        %2609 = vmatpush1.msra.mxu0 0.0
        %2610 = vmatprep.subr.mxu0 0.0
        %2611 = vmatpush1.msra.mxu0 0.0
        %2612 = vmatprep.subr.mxu0 0.0
        %2613 = vmatpush1.msra.mxu0 0.0
        %2614 = vmatprep.subr.mxu0 0.0
        %2615 = vmatpush1.msra.mxu0 0.0
        %2616 = vmatprep.subr.mxu0 0.0
        %2617 = vmatpush1.msra.mxu0 0.0
        %2618 = vmatprep.subr.mxu0 0.0
        %2619 = vmatpush1.msra.mxu0 0.0
        %2620 = vmatprep.subr.mxu0 0.0
        %2621 = vmatpush1.msra.mxu0 0.0
        %2622 = vmatprep.subr.mxu0 0.0
        %2623 = vmatpush1.msra.mxu0 0.0
        %2624 = vmatprep.subr.mxu0 0.0
        %2625 = vmatpush1.msra.mxu0 0.0
        %2626 = vmatprep.subr.mxu0 0.0
        %2627 = vmatpush1.msra.mxu0 0.0
        %2628 = vmatprep.subr.mxu0 0.0
        %2629 = vmatpush1.msra.mxu0 0.0
        %2630 = vmatprep.subr.mxu0 0.0
        %2631 = vmatpush1.msra.mxu0 0.0
        %2632 = vmatprep.subr.mxu0 0.0
        %2633 = vmatpush1.msra.mxu0 0.0
        %2634 = vmatprep.subr.mxu0 0.0
        %2635 = vmatpush1.msra.mxu0 0.0
        %2636 = vmatprep.subr.mxu0 0.0
        %2637 = vmatpush1.msra.mxu0 0.0
        %2638 = vmatprep.subr.mxu0 0.0
        %2639 = vmatpush1.msra.mxu0 0.0
        %2640 = vmatprep.subr.mxu0 0.0
        %2641 = vmatpush1.msra.mxu0 0.0
        %2642 = vmatprep.subr.mxu0 0.0
        %2643 = vmatpush1.msra.mxu0 0.0
        %2644 = vmatprep.subr.mxu0 0.0
        %2645 = vmatpush1.msra.mxu0 0.0
        %2646 = vmatprep.subr.mxu0 0.0
        %2647 = vmatpush1.msra.mxu0 0.0
        %2648 = vmatprep.subr.mxu0 0.0
        %2649 = vmatpush1.msra.mxu0 0.0
        %2650 = vmatprep.subr.mxu0 0.0
        %2651 = vmatpush1.msra.mxu0 0.0
        %2652 = vmatprep.subr.mxu0 0.0
        %2653 = vmatpush1.msra.mxu0 0.0
        %2654 = vmatprep.subr.mxu0 0.0
        %2655 = vmatpush1.msra.mxu0 0.0
        %2656 = vmatprep.subr.mxu0 0.0
        %2657 = vmatpush1.msra.mxu0 0.0
        %2658 = vmatprep.mubr.f32.mxu0 0.0
        %2659 = vmatmul.mubr.f32.gmra.mrb[0].mxu0 %v2562
        %v2660 = vpop.f32.mrb[0].mxu0
        %v2661 = vadd.f32 0.0, %v2660
        %v2662 = vpop.f32.mrb[0].mxu0
        %2663 = vmatprep.mubr.f32.mxu0 0.0
        %2664 = vmatmul.mubr.f32.gmra.mrb[0].mxu0 %v2564
        %v2665 = vpop.f32.mrb[0].mxu0
        %v2666 = vadd.f32 0.0, %v2665
        %v2667 = vpop.f32.mrb[0].mxu0
        %2668 = vmatprep.mubr.f32.mxu0 0.0
        %2669 = vmatmul.mubr.f32.gmra.mrb[0].mxu0 %v2566
        %v2670 = vpop.f32.mrb[0].mxu0
        %v2671 = vadd.f32 0.0, %v2670
        %v2672 = vpop.f32.mrb[0].mxu0
        %2673 = vmatprep.mubr.f32.mxu0 0.0
        %2674 = vmatmul.mubr.f32.gmra.mrb[0].mxu0 %v2568
        %v2675 = vpop.f32.mrb[0].mxu0
        %v2676 = vadd.f32 0.0, %v2675
        %v2677 = vpop.f32.mrb[0].mxu0
        %2678 = vmatprep.mubr.f32.mxu0 0.0
        %2679 = vmatmul.mubr.f32.gmra.mrb[0].mxu0 %v2570
        %v2680 = vpop.f32.mrb[0].mxu0
        %v2681 = vadd.f32 0.0, %v2680
        %v2682 = vpop.f32.mrb[0].mxu0
        %2683 = vmatprep.mubr.f32.mxu0 0.0
        %2684 = vmatmul.mubr.f32.gmra.mrb[0].mxu0 %v2572
        %v2685 = vpop.f32.mrb[0].mxu0
        %v2686 = vadd.f32 0.0, %v2685
        %v2687 = vpop.f32.mrb[0].mxu0
        %2688 = vmatprep.mubr.f32.mxu0 0.0
        %2689 = vmatmul.mubr.f32.gmra.mrb[0].mxu0 %v2574
        %v2690 = vpop.f32.mrb[0].mxu0
        %v2691 = vadd.f32 0.0, %v2690
        %v2692 = vpop.f32.mrb[0].mxu0
        %2693 = vmatprep.mubr.f32.mxu0 0.0
        %2694 = vmatmul.mubr.f32.gmra.mrb[0].mxu0 %v2576
        %v2695 = vpop.f32.mrb[0].mxu0
        %v2696 = vadd.f32 0.0, %v2695
        %v2697 = vpop.f32.mrb[0].mxu0
        %2698 = vmatprep.mubr.f32.mxu0 0.0
        %2699 = vmatmul.mubr.f32.gmra.mrb[0].mxu0 %v2578
        %v2700 = vpop.f32.mrb[0].mxu0
        %v2701 = vadd.f32 0.0, %v2700
        %v2702 = vpop.f32.mrb[0].mxu0
        %2703 = vmatprep.mubr.f32.mxu0 0.0
        %2704 = vmatmul.mubr.f32.gmra.mrb[0].mxu0 %v2580
        %v2705 = vpop.f32.mrb[0].mxu0
        %v2706 = vadd.f32 0.0, %v2705
        %v2707 = vpop.f32.mrb[0].mxu0
        %2708 = vmatprep.mubr.f32.mxu0 0.0
        %2709 = vmatmul.mubr.f32.gmra.mrb[0].mxu0 %v2582
        %v2710 = vpop.f32.mrb[0].mxu0
        %v2711 = vadd.f32 0.0, %v2710
        %v2712 = vpop.f32.mrb[0].mxu0
        %2713 = vmatprep.mubr.f32.mxu0 0.0
        %2714 = vmatmul.mubr.f32.gmra.mrb[0].mxu0 %v2584
        %v2715 = vpop.f32.mrb[0].mxu0
        %v2716 = vadd.f32 0.0, %v2715
        %v2717 = vpop.f32.mrb[0].mxu0
        %2718 = vmatprep.mubr.f32.mxu0 0.0
        %2719 = vmatmul.mubr.f32.gmra.mrb[0].mxu0 %v2586
        %v2720 = vpop.f32.mrb[0].mxu0
        %v2721 = vadd.f32 0.0, %v2720
        %v2722 = vpop.f32.mrb[0].mxu0
        %2723 = vmatprep.mubr.f32.mxu0 0.0
        %2724 = vmatmul.mubr.f32.gmra.mrb[0].mxu0 %v2588
        %v2725 = vpop.f32.mrb[0].mxu0
        %v2726 = vadd.f32 0.0, %v2725
        %v2727 = vpop.f32.mrb[0].mxu0
        %2728 = vmatprep.mubr.f32.mxu0 0.0
        %2729 = vmatmul.mubr.f32.gmra.mrb[0].mxu0 %v2590
        %v2730 = vpop.f32.mrb[0].mxu0
        %v2731 = vadd.f32 0.0, %v2730
        %v2732 = vpop.f32.mrb[0].mxu0
        %2733 = vmatprep.mubr.f32.mxu0 0.0
        %2734 = vmatmul.mubr.f32.gmra.mrb[0].mxu0 %v2592
        %v2735 = vpop.f32.mrb[0].mxu0
        %v2736 = vadd.f32 0.0, %v2735
        %v2737 = vpop.f32.mrb[0].mxu0
        %2738 = vdwg.mxu0
        %v2739 = vadd.f32 %v1471, %v2661
        %v2740 = vadd.f32 %v1476, %v2666
        %v2741 = vadd.f32 %v1481, %v2671
        %v2742 = vadd.f32 %v1486, %v2676
        %v2743 = vadd.f32 %v1491, %v2681
        %v2744 = vadd.f32 %v1496, %v2686
        %v2745 = vadd.f32 %v1501, %v2691
        %v2746 = vadd.f32 %v1506, %v2696
        %v2747 = vadd.f32 %v1511, %v2701
        %v2748 = vadd.f32 %v1516, %v2706
        %v2749 = vadd.f32 %v1521, %v2711
        %v2750 = vadd.f32 %v1526, %v2716
        %v2751 = vadd.f32 %v1531, %v2721
        %v2752 = vadd.f32 %v1536, %v2726
        %v2753 = vadd.f32 %v1541, %v2731
        %v2754 = vadd.f32 %v1546, %v2736
        %v2755 = vtanh.pop %v2739
        %v2756 = vtanh.pop %v2740
        %v2757 = vtanh.pop %v2741
        %v2758 = vtanh.pop %v2742
        %v2759 = vtanh.pop %v2743
        %v2760 = vtanh.pop %v2744
        %v2761 = vtanh.pop %v2745
        %v2762 = vtanh.pop %v2746
        %v2763 = vtanh.pop %v2747
        %v2764 = vtanh.pop %v2748
        %v2765 = vtanh.pop %v2749
        %v2766 = vtanh.pop %v2750
        %v2767 = vtanh.pop %v2751
        %v2768 = vtanh.pop %v2752
        %v2769 = vtanh.pop %v2753
        %v2770 = vtanh.pop %v2754
        %v2771 = vadd.f32 %v2755, 1.0
        %v2772 = vadd.f32 %v2756, 1.0
        %v2773 = vadd.f32 %v2757, 1.0
        %v2774 = vadd.f32 %v2758, 1.0
        %v2775 = vadd.f32 %v2759, 1.0
        %v2776 = vadd.f32 %v2760, 1.0
        %v2777 = vadd.f32 %v2761, 1.0
        %v2778 = vadd.f32 %v2762, 1.0
        %v2779 = vadd.f32 %v2763, 1.0
        %v2780 = vadd.f32 %v2764, 1.0
        %v2781 = vadd.f32 %v2765, 1.0
        %v2782 = vadd.f32 %v2766, 1.0
        %v2783 = vadd.f32 %v2767, 1.0
        %v2784 = vadd.f32 %v2768, 1.0
        %v2785 = vadd.f32 %v2769, 1.0
        %v2786 = vadd.f32 %v2770, 1.0
        %v2787 = vmul.f32 %v2771, 0.5
        %v2788 = vmul.f32 %v2772, 0.5
        %v2789 = vmul.f32 %v2773, 0.5
        %v2790 = vmul.f32 %v2774, 0.5
        %v2791 = vmul.f32 %v2775, 0.5
        %v2792 = vmul.f32 %v2776, 0.5
        %v2793 = vmul.f32 %v2777, 0.5
        %v2794 = vmul.f32 %v2778, 0.5
        %v2795 = vmul.f32 %v2779, 0.5
        %v2796 = vmul.f32 %v2780, 0.5
        %v2797 = vmul.f32 %v2781, 0.5
        %v2798 = vmul.f32 %v2782, 0.5
        %v2799 = vmul.f32 %v2783, 0.5
        %v2800 = vmul.f32 %v2784, 0.5
        %v2801 = vmul.f32 %v2785, 0.5
        %v2802 = vmul.f32 %v2786, 0.5
        %v2803 = vmul.f32 %v2787, %v2402
        %v2804 = vmul.f32 %v2788, %v2403
        %v2805 = vmul.f32 %v2789, %v2404
        %v2806 = vmul.f32 %v2790, %v2405
        %v2807 = vmul.f32 %v2791, %v2406
        %v2808 = vmul.f32 %v2792, %v2407
        %v2809 = vmul.f32 %v2793, %v2408
        %v2810 = vmul.f32 %v2794, %v2409
        %v2811 = vmul.f32 %v2795, %v2410
        %v2812 = vmul.f32 %v2796, %v2411
        %v2813 = vmul.f32 %v2797, %v2412
        %v2814 = vmul.f32 %v2798, %v2413
        %v2815 = vmul.f32 %v2799, %v2414
        %v2816 = vmul.f32 %v2800, %v2415
        %v2817 = vmul.f32 %v2801, %v2416
        %v2818 = vmul.f32 %v2802, %v2417
        %2835 = vrot.lane.b32.xlu0 %v2755, 32
        %v2836 = vpop.permute.xlu0 %2835
        %2837 = vrot.lane.b32.xlu0 %v2756, 32
        %v2838 = vpop.permute.xlu0 %2837
        %2839 = vrot.lane.b32.xlu0 %v2757, 32
        %v2840 = vpop.permute.xlu0 %2839
        %2841 = vrot.lane.b32.xlu0 %v2758, 32
        %v2842 = vpop.permute.xlu0 %2841
        %2843 = vrot.lane.b32.xlu0 %v2759, 32
        %v2844 = vpop.permute.xlu0 %2843
        %2845 = vrot.lane.b32.xlu0 %v2760, 32
        %v2846 = vpop.permute.xlu0 %2845
        %2847 = vrot.lane.b32.xlu0 %v2761, 32
        %v2848 = vpop.permute.xlu0 %2847
        %2849 = vrot.lane.b32.xlu0 %v2762, 32
        %v2850 = vpop.permute.xlu0 %2849
        %2851 = vrot.lane.b32.xlu0 %v2763, 32
        %v2852 = vpop.permute.xlu0 %2851
        %2853 = vrot.lane.b32.xlu0 %v2764, 32
        %v2854 = vpop.permute.xlu0 %2853
        %2855 = vrot.lane.b32.xlu0 %v2765, 32
        %v2856 = vpop.permute.xlu0 %2855
        %2857 = vrot.lane.b32.xlu0 %v2766, 32
        %v2858 = vpop.permute.xlu0 %2857
        %2859 = vrot.lane.b32.xlu0 %v2767, 32
        %v2860 = vpop.permute.xlu0 %2859
        %2861 = vrot.lane.b32.xlu0 %v2768, 32
        %v2862 = vpop.permute.xlu0 %2861
        %2863 = vrot.lane.b32.xlu0 %v2769, 32
        %v2864 = vpop.permute.xlu0 %2863
        %2865 = vrot.lane.b32.xlu0 %v2770, 32
        %v2866 = vpop.permute.xlu0 %2865
        %v2883 = vmul.f32 %v2787, %v2836
        %v2884 = vmul.f32 %v2788, %v2838
        %v2885 = vmul.f32 %v2789, %v2840
        %v2886 = vmul.f32 %v2790, %v2842
        %v2887 = vmul.f32 %v2791, %v2844
        %v2888 = vmul.f32 %v2792, %v2846
        %v2889 = vmul.f32 %v2793, %v2848
        %v2890 = vmul.f32 %v2794, %v2850
        %v2891 = vmul.f32 %v2795, %v2852
        %v2892 = vmul.f32 %v2796, %v2854
        %v2893 = vmul.f32 %v2797, %v2856
        %v2894 = vmul.f32 %v2798, %v2858
        %v2895 = vmul.f32 %v2799, %v2860
        %v2896 = vmul.f32 %v2800, %v2862
        %v2897 = vmul.f32 %v2801, %v2864
        %v2898 = vmul.f32 %v2802, %v2866
        %2915 = vrot.lane.b32.xlu0 %v2883, 32
        %v2916 = vpop.permute.xlu0 %2915
        %2917 = vrot.lane.b32.xlu0 %v2884, 32
        %v2918 = vpop.permute.xlu0 %2917
        %2919 = vrot.lane.b32.xlu0 %v2885, 32
        %v2920 = vpop.permute.xlu0 %2919
        %2921 = vrot.lane.b32.xlu0 %v2886, 32
        %v2922 = vpop.permute.xlu0 %2921
        %2923 = vrot.lane.b32.xlu0 %v2887, 32
        %v2924 = vpop.permute.xlu0 %2923
        %2925 = vrot.lane.b32.xlu0 %v2888, 32
        %v2926 = vpop.permute.xlu0 %2925
        %2927 = vrot.lane.b32.xlu0 %v2889, 32
        %v2928 = vpop.permute.xlu0 %2927
        %2929 = vrot.lane.b32.xlu0 %v2890, 32
        %v2930 = vpop.permute.xlu0 %2929
        %2931 = vrot.lane.b32.xlu0 %v2891, 32
        %v2932 = vpop.permute.xlu0 %2931
        %2933 = vrot.lane.b32.xlu0 %v2892, 32
        %v2934 = vpop.permute.xlu0 %2933
        %2935 = vrot.lane.b32.xlu0 %v2893, 32
        %v2936 = vpop.permute.xlu0 %2935
        %2937 = vrot.lane.b32.xlu0 %v2894, 32
        %v2938 = vpop.permute.xlu0 %2937
        %2939 = vrot.lane.b32.xlu0 %v2895, 32
        %v2940 = vpop.permute.xlu0 %2939
        %2941 = vrot.lane.b32.xlu0 %v2896, 32
        %v2942 = vpop.permute.xlu0 %2941
        %2943 = vrot.lane.b32.xlu0 %v2897, 32
        %v2944 = vpop.permute.xlu0 %2943
        %2945 = vrot.lane.b32.xlu0 %v2898, 32
        %v2946 = vpop.permute.xlu0 %2945
        %v2963 = vadd.f32 %v2803, %v2916
        %v2964 = vadd.f32 %v2804, %v2918
        %v2965 = vadd.f32 %v2805, %v2920
        %v2966 = vadd.f32 %v2806, %v2922
        %v2967 = vadd.f32 %v2807, %v2924
        %v2968 = vadd.f32 %v2808, %v2926
        %v2969 = vadd.f32 %v2809, %v2928
        %v2970 = vadd.f32 %v2810, %v2930
        %v2971 = vadd.f32 %v2811, %v2932
        %v2972 = vadd.f32 %v2812, %v2934
        %v2973 = vadd.f32 %v2813, %v2936
        %v2974 = vadd.f32 %v2814, %v2938
        %v2975 = vadd.f32 %v2815, %v2940
        %v2976 = vadd.f32 %v2816, %v2942
        %v2977 = vadd.f32 %v2817, %v2944
        %v2978 = vadd.f32 %v2818, %v2946
        %v2979 = vtanh.pop %v2963
        %v2980 = vtanh.pop %v2964
        %v2981 = vtanh.pop %v2965
        %v2982 = vtanh.pop %v2966
        %v2983 = vtanh.pop %v2967
        %v2984 = vtanh.pop %v2968
        %v2985 = vtanh.pop %v2969
        %v2986 = vtanh.pop %v2970
        %v2987 = vtanh.pop %v2971
        %v2988 = vtanh.pop %v2972
        %v2989 = vtanh.pop %v2973
        %v2990 = vtanh.pop %v2974
        %v2991 = vtanh.pop %v2975
        %v2992 = vtanh.pop %v2976
        %v2993 = vtanh.pop %v2977
        %v2994 = vtanh.pop %v2978
        %3011 = vrot.lane.b32.xlu0 %v2979, 32
        %v3012 = vpop.permute.xlu0 %3011
        %3013 = vrot.lane.b32.xlu0 %v2980, 32
        %v3014 = vpop.permute.xlu0 %3013
        %3015 = vrot.lane.b32.xlu0 %v2981, 32
        %v3016 = vpop.permute.xlu0 %3015
        %3017 = vrot.lane.b32.xlu0 %v2982, 32
        %v3018 = vpop.permute.xlu0 %3017
        %3019 = vrot.lane.b32.xlu0 %v2983, 32
        %v3020 = vpop.permute.xlu0 %3019
        %3021 = vrot.lane.b32.xlu0 %v2984, 32
        %v3022 = vpop.permute.xlu0 %3021
        %3023 = vrot.lane.b32.xlu0 %v2985, 32
        %v3024 = vpop.permute.xlu0 %3023
        %3025 = vrot.lane.b32.xlu0 %v2986, 32
        %v3026 = vpop.permute.xlu0 %3025
        %3027 = vrot.lane.b32.xlu0 %v2987, 32
        %v3028 = vpop.permute.xlu0 %3027
        %3029 = vrot.lane.b32.xlu0 %v2988, 32
        %v3030 = vpop.permute.xlu0 %3029
        %3031 = vrot.lane.b32.xlu0 %v2989, 32
        %v3032 = vpop.permute.xlu0 %3031
        %3033 = vrot.lane.b32.xlu0 %v2990, 32
        %v3034 = vpop.permute.xlu0 %3033
        %3035 = vrot.lane.b32.xlu0 %v2991, 32
        %v3036 = vpop.permute.xlu0 %3035
        %3037 = vrot.lane.b32.xlu0 %v2992, 32
        %v3038 = vpop.permute.xlu0 %3037
        %3039 = vrot.lane.b32.xlu0 %v2993, 32
        %v3040 = vpop.permute.xlu0 %3039
        %3041 = vrot.lane.b32.xlu0 %v2994, 32
        %v3042 = vpop.permute.xlu0 %3041
        %v3059 = vmul.f32 %v2787, %v3012
        %v3060 = vmul.f32 %v2788, %v3014
        %v3061 = vmul.f32 %v2789, %v3016
        %v3062 = vmul.f32 %v2790, %v3018
        %v3063 = vmul.f32 %v2791, %v3020
        %v3064 = vmul.f32 %v2792, %v3022
        %v3065 = vmul.f32 %v2793, %v3024
        %v3066 = vmul.f32 %v2794, %v3026
        %v3067 = vmul.f32 %v2795, %v3028
        %v3068 = vmul.f32 %v2796, %v3030
        %v3069 = vmul.f32 %v2797, %v3032
        %v3070 = vmul.f32 %v2798, %v3034
        %v3071 = vmul.f32 %v2799, %v3036
        %v3072 = vmul.f32 %v2800, %v3038
        %v3073 = vmul.f32 %v2801, %v3040
        %v3074 = vmul.f32 %v2802, %v3042
        %3091 = vrot.lane.b32.xlu0 %v3059, 64
        %v3092 = vpop.permute.xlu0 %3091
        %3093 = vrot.lane.b32.xlu0 %v3060, 64
        %v3094 = vpop.permute.xlu0 %3093
        %3095 = vrot.lane.b32.xlu0 %v3061, 64
        %v3096 = vpop.permute.xlu0 %3095
        %3097 = vrot.lane.b32.xlu0 %v3062, 64
        %v3098 = vpop.permute.xlu0 %3097
        %3099 = vrot.lane.b32.xlu0 %v3063, 64
        %v3100 = vpop.permute.xlu0 %3099
        %3101 = vrot.lane.b32.xlu0 %v3064, 64
        %v3102 = vpop.permute.xlu0 %3101
        %3103 = vrot.lane.b32.xlu0 %v3065, 64
        %v3104 = vpop.permute.xlu0 %3103
        %3105 = vrot.lane.b32.xlu0 %v3066, 64
        %v3106 = vpop.permute.xlu0 %3105
        %3107 = vrot.lane.b32.xlu0 %v3067, 64
        %v3108 = vpop.permute.xlu0 %3107
        %3109 = vrot.lane.b32.xlu0 %v3068, 64
        %v3110 = vpop.permute.xlu0 %3109
        %3111 = vrot.lane.b32.xlu0 %v3069, 64
        %v3112 = vpop.permute.xlu0 %3111
        %3113 = vrot.lane.b32.xlu0 %v3070, 64
        %v3114 = vpop.permute.xlu0 %3113
        %3115 = vrot.lane.b32.xlu0 %v3071, 64
        %v3116 = vpop.permute.xlu0 %3115
        %3117 = vrot.lane.b32.xlu0 %v3072, 64
        %v3118 = vpop.permute.xlu0 %3117
        %3119 = vrot.lane.b32.xlu0 %v3073, 64
        %v3120 = vpop.permute.xlu0 %3119
        %3121 = vrot.lane.b32.xlu0 %v3074, 64
        %v3122 = vpop.permute.xlu0 %3121
        %v3123 = vsel %vm2029, %v3092, 0
        %v3125 = vsel %vm2029, %v3094, 0
        %v3127 = vsel %vm2029, %v3096, 0
        %v3129 = vsel %vm2029, %v3098, 0
        %v3131 = vsel %vm2029, %v3100, 0
        %v3133 = vsel %vm2029, %v3102, 0
        %v3135 = vsel %vm2029, %v3104, 0
        %v3137 = vsel %vm2029, %v3106, 0
        %v3139 = vsel %vm2029, %v3108, 0
        %v3141 = vsel %vm2029, %v3110, 0
        %v3143 = vsel %vm2029, %v3112, 0
        %v3145 = vsel %vm2029, %v3114, 0
        %v3147 = vsel %vm2029, %v3116, 0
        %v3149 = vsel %vm2029, %v3118, 0
        %v3151 = vsel %vm2029, %v3120, 0
        %v3153 = vsel %vm2029, %v3122, 0
        %3155 = vmatprep.subr.mxu0 0.0
        %3156 = vmatpush1.msra.mxu0 %v928
        %3157 = vmatprep.subr.mxu0 0.0
        %3158 = vmatpush1.msra.mxu0 %v929
        %3159 = vmatprep.subr.mxu0 0.0
        %3160 = vmatpush1.msra.mxu0 %v930
        %3161 = vmatprep.subr.mxu0 0.0
        %3162 = vmatpush1.msra.mxu0 %v931
        %3163 = vmatprep.subr.mxu0 0.0
        %3164 = vmatpush1.msra.mxu0 0.0
        %3165 = vmatprep.subr.mxu0 0.0
        %3166 = vmatpush1.msra.mxu0 0.0
        %3167 = vmatprep.subr.mxu0 0.0
        %3168 = vmatpush1.msra.mxu0 0.0
        %3169 = vmatprep.subr.mxu0 0.0
        %3170 = vmatpush1.msra.mxu0 0.0
        %3171 = vmatprep.subr.mxu0 0.0
        %3172 = vmatpush1.msra.mxu0 0.0
        %3173 = vmatprep.subr.mxu0 0.0
        %3174 = vmatpush1.msra.mxu0 0.0
        %3175 = vmatprep.subr.mxu0 0.0
        %3176 = vmatpush1.msra.mxu0 0.0
        %3177 = vmatprep.subr.mxu0 0.0
        %3178 = vmatpush1.msra.mxu0 0.0
        %3179 = vmatprep.subr.mxu0 0.0
        %3180 = vmatpush1.msra.mxu0 0.0
        %3181 = vmatprep.subr.mxu0 0.0
        %3182 = vmatpush1.msra.mxu0 0.0
        %3183 = vmatprep.subr.mxu0 0.0
        %3184 = vmatpush1.msra.mxu0 0.0
        %3185 = vmatprep.subr.mxu0 0.0
        %3186 = vmatpush1.msra.mxu0 0.0
        %3187 = vmatprep.subr.mxu0 0.0
        %3188 = vmatpush1.msra.mxu0 0.0
        %3189 = vmatprep.subr.mxu0 0.0
        %3190 = vmatpush1.msra.mxu0 0.0
        %3191 = vmatprep.subr.mxu0 0.0
        %3192 = vmatpush1.msra.mxu0 0.0
        %3193 = vmatprep.subr.mxu0 0.0
        %3194 = vmatpush1.msra.mxu0 0.0
        %3195 = vmatprep.subr.mxu0 0.0
        %3196 = vmatpush1.msra.mxu0 0.0
        %3197 = vmatprep.subr.mxu0 0.0
        %3198 = vmatpush1.msra.mxu0 0.0
        %3199 = vmatprep.subr.mxu0 0.0
        %3200 = vmatpush1.msra.mxu0 0.0
        %3201 = vmatprep.subr.mxu0 0.0
        %3202 = vmatpush1.msra.mxu0 0.0
        %3203 = vmatprep.subr.mxu0 0.0
        %3204 = vmatpush1.msra.mxu0 0.0
        %3205 = vmatprep.subr.mxu0 0.0
        %3206 = vmatpush1.msra.mxu0 0.0
        %3207 = vmatprep.subr.mxu0 0.0
        %3208 = vmatpush1.msra.mxu0 0.0
        %3209 = vmatprep.subr.mxu0 0.0
        %3210 = vmatpush1.msra.mxu0 0.0
        %3211 = vmatprep.subr.mxu0 0.0
        %3212 = vmatpush1.msra.mxu0 0.0
        %3213 = vmatprep.subr.mxu0 0.0
        %3214 = vmatpush1.msra.mxu0 0.0
        %3215 = vmatprep.subr.mxu0 0.0
        %3216 = vmatpush1.msra.mxu0 0.0
        %3217 = vmatprep.subr.mxu0 0.0
        %3218 = vmatpush1.msra.mxu0 0.0
        %3219 = vmatprep.mubr.f32.mxu0 0.0
        %3220 = vmatmul.mubr.f32.gmra.mrb[0].mxu0 %v3123
        %v3221 = vpop.f32.mrb[0].mxu0
        %v3222 = vadd.f32 0.0, %v3221
        %v3223 = vpop.f32.mrb[0].mxu0
        %3224 = vmatprep.mubr.f32.mxu0 0.0
        %3225 = vmatmul.mubr.f32.gmra.mrb[0].mxu0 %v3125
        %v3226 = vpop.f32.mrb[0].mxu0
        %v3227 = vadd.f32 0.0, %v3226
        %v3228 = vpop.f32.mrb[0].mxu0
        %3229 = vmatprep.mubr.f32.mxu0 0.0
        %3230 = vmatmul.mubr.f32.gmra.mrb[0].mxu0 %v3127
        %v3231 = vpop.f32.mrb[0].mxu0
        %v3232 = vadd.f32 0.0, %v3231
        %v3233 = vpop.f32.mrb[0].mxu0
        %3234 = vmatprep.mubr.f32.mxu0 0.0
        %3235 = vmatmul.mubr.f32.gmra.mrb[0].mxu0 %v3129
        %v3236 = vpop.f32.mrb[0].mxu0
        %v3237 = vadd.f32 0.0, %v3236
        %v3238 = vpop.f32.mrb[0].mxu0
        %3239 = vmatprep.mubr.f32.mxu0 0.0
        %3240 = vmatmul.mubr.f32.gmra.mrb[0].mxu0 %v3131
        %v3241 = vpop.f32.mrb[0].mxu0
        %v3242 = vadd.f32 0.0, %v3241
        %v3243 = vpop.f32.mrb[0].mxu0
        %3244 = vmatprep.mubr.f32.mxu0 0.0
        %3245 = vmatmul.mubr.f32.gmra.mrb[0].mxu0 %v3133
        %v3246 = vpop.f32.mrb[0].mxu0
        %v3247 = vadd.f32 0.0, %v3246
        %v3248 = vpop.f32.mrb[0].mxu0
        %3249 = vmatprep.mubr.f32.mxu0 0.0
        %3250 = vmatmul.mubr.f32.gmra.mrb[0].mxu0 %v3135
        %v3251 = vpop.f32.mrb[0].mxu0
        %v3252 = vadd.f32 0.0, %v3251
        %v3253 = vpop.f32.mrb[0].mxu0
        %3254 = vmatprep.mubr.f32.mxu0 0.0
        %3255 = vmatmul.mubr.f32.gmra.mrb[0].mxu0 %v3137
        %v3256 = vpop.f32.mrb[0].mxu0
        %v3257 = vadd.f32 0.0, %v3256
        %v3258 = vpop.f32.mrb[0].mxu0
        %3259 = vmatprep.mubr.f32.mxu0 0.0
        %3260 = vmatmul.mubr.f32.gmra.mrb[0].mxu0 %v3139
        %v3261 = vpop.f32.mrb[0].mxu0
        %v3262 = vadd.f32 0.0, %v3261
        %v3263 = vpop.f32.mrb[0].mxu0
        %3264 = vmatprep.mubr.f32.mxu0 0.0
        %3265 = vmatmul.mubr.f32.gmra.mrb[0].mxu0 %v3141
        %v3266 = vpop.f32.mrb[0].mxu0
        %v3267 = vadd.f32 0.0, %v3266
        %v3268 = vpop.f32.mrb[0].mxu0
        %3269 = vmatprep.mubr.f32.mxu0 0.0
        %3270 = vmatmul.mubr.f32.gmra.mrb[0].mxu0 %v3143
        %v3271 = vpop.f32.mrb[0].mxu0
        %v3272 = vadd.f32 0.0, %v3271
        %v3273 = vpop.f32.mrb[0].mxu0
        %3274 = vmatprep.mubr.f32.mxu0 0.0
        %3275 = vmatmul.mubr.f32.gmra.mrb[0].mxu0 %v3145
        %v3276 = vpop.f32.mrb[0].mxu0
        %v3277 = vadd.f32 0.0, %v3276
        %v3278 = vpop.f32.mrb[0].mxu0
        %3279 = vmatprep.mubr.f32.mxu0 0.0
        %3280 = vmatmul.mubr.f32.gmra.mrb[0].mxu0 %v3147
        %v3281 = vpop.f32.mrb[0].mxu0
        %v3282 = vadd.f32 0.0, %v3281
        %v3283 = vpop.f32.mrb[0].mxu0
        %3284 = vmatprep.mubr.f32.mxu0 0.0
        %3285 = vmatmul.mubr.f32.gmra.mrb[0].mxu0 %v3149
        %v3286 = vpop.f32.mrb[0].mxu0
        %v3287 = vadd.f32 0.0, %v3286
        %v3288 = vpop.f32.mrb[0].mxu0
        %3289 = vmatprep.mubr.f32.mxu0 0.0
        %3290 = vmatmul.mubr.f32.gmra.mrb[0].mxu0 %v3151
        %v3291 = vpop.f32.mrb[0].mxu0
        %v3292 = vadd.f32 0.0, %v3291
        %v3293 = vpop.f32.mrb[0].mxu0
        %3294 = vmatprep.mubr.f32.mxu0 0.0
        %3295 = vmatmul.mubr.f32.gmra.mrb[0].mxu0 %v3153
        %v3296 = vpop.f32.mrb[0].mxu0
        %v3297 = vadd.f32 0.0, %v3296
        %v3298 = vpop.f32.mrb[0].mxu0
        %3299 = vdwg.mxu0
        %v3300 = vadd.f32 %v1551, %v3222
        %v3301 = vadd.f32 %v1556, %v3227
        %v3302 = vadd.f32 %v1561, %v3232
        %v3303 = vadd.f32 %v1566, %v3237
        %v3304 = vadd.f32 %v1571, %v3242
        %v3305 = vadd.f32 %v1576, %v3247
        %v3306 = vadd.f32 %v1581, %v3252
        %v3307 = vadd.f32 %v1586, %v3257
        %v3308 = vadd.f32 %v1591, %v3262
        %v3309 = vadd.f32 %v1596, %v3267
        %v3310 = vadd.f32 %v1601, %v3272
        %v3311 = vadd.f32 %v1606, %v3277
        %v3312 = vadd.f32 %v1611, %v3282
        %v3313 = vadd.f32 %v1616, %v3287
        %v3314 = vadd.f32 %v1621, %v3292
        %v3315 = vadd.f32 %v1626, %v3297
        %v3316 = vtanh.pop %v3300
        %v3317 = vtanh.pop %v3301
        %v3318 = vtanh.pop %v3302
        %v3319 = vtanh.pop %v3303
        %v3320 = vtanh.pop %v3304
        %v3321 = vtanh.pop %v3305
        %v3322 = vtanh.pop %v3306
        %v3323 = vtanh.pop %v3307
        %v3324 = vtanh.pop %v3308
        %v3325 = vtanh.pop %v3309
        %v3326 = vtanh.pop %v3310
        %v3327 = vtanh.pop %v3311
        %v3328 = vtanh.pop %v3312
        %v3329 = vtanh.pop %v3313
        %v3330 = vtanh.pop %v3314
        %v3331 = vtanh.pop %v3315
        %v3332 = vadd.f32 %v3316, 1.0
        %v3333 = vadd.f32 %v3317, 1.0
        %v3334 = vadd.f32 %v3318, 1.0
        %v3335 = vadd.f32 %v3319, 1.0
        %v3336 = vadd.f32 %v3320, 1.0
        %v3337 = vadd.f32 %v3321, 1.0
        %v3338 = vadd.f32 %v3322, 1.0
        %v3339 = vadd.f32 %v3323, 1.0
        %v3340 = vadd.f32 %v3324, 1.0
        %v3341 = vadd.f32 %v3325, 1.0
        %v3342 = vadd.f32 %v3326, 1.0
        %v3343 = vadd.f32 %v3327, 1.0
        %v3344 = vadd.f32 %v3328, 1.0
        %v3345 = vadd.f32 %v3329, 1.0
        %v3346 = vadd.f32 %v3330, 1.0
        %v3347 = vadd.f32 %v3331, 1.0
        %v3348 = vmul.f32 %v3332, 0.5
        %v3349 = vmul.f32 %v3333, 0.5
        %v3350 = vmul.f32 %v3334, 0.5
        %v3351 = vmul.f32 %v3335, 0.5
        %v3352 = vmul.f32 %v3336, 0.5
        %v3353 = vmul.f32 %v3337, 0.5
        %v3354 = vmul.f32 %v3338, 0.5
        %v3355 = vmul.f32 %v3339, 0.5
        %v3356 = vmul.f32 %v3340, 0.5
        %v3357 = vmul.f32 %v3341, 0.5
        %v3358 = vmul.f32 %v3342, 0.5
        %v3359 = vmul.f32 %v3343, 0.5
        %v3360 = vmul.f32 %v3344, 0.5
        %v3361 = vmul.f32 %v3345, 0.5
        %v3362 = vmul.f32 %v3346, 0.5
        %v3363 = vmul.f32 %v3347, 0.5
        %v3364 = vmul.f32 %v3348, %v2963
        %v3365 = vmul.f32 %v3349, %v2964
        %v3366 = vmul.f32 %v3350, %v2965
        %v3367 = vmul.f32 %v3351, %v2966
        %v3368 = vmul.f32 %v3352, %v2967
        %v3369 = vmul.f32 %v3353, %v2968
        %v3370 = vmul.f32 %v3354, %v2969
        %v3371 = vmul.f32 %v3355, %v2970
        %v3372 = vmul.f32 %v3356, %v2971
        %v3373 = vmul.f32 %v3357, %v2972
        %v3374 = vmul.f32 %v3358, %v2973
        %v3375 = vmul.f32 %v3359, %v2974
        %v3376 = vmul.f32 %v3360, %v2975
        %v3377 = vmul.f32 %v3361, %v2976
        %v3378 = vmul.f32 %v3362, %v2977
        %v3379 = vmul.f32 %v3363, %v2978
        %3396 = vrot.lane.b32.xlu0 %v3316, 32
        %v3397 = vpop.permute.xlu0 %3396
        %3398 = vrot.lane.b32.xlu0 %v3317, 32
        %v3399 = vpop.permute.xlu0 %3398
        %3400 = vrot.lane.b32.xlu0 %v3318, 32
        %v3401 = vpop.permute.xlu0 %3400
        %3402 = vrot.lane.b32.xlu0 %v3319, 32
        %v3403 = vpop.permute.xlu0 %3402
        %3404 = vrot.lane.b32.xlu0 %v3320, 32
        %v3405 = vpop.permute.xlu0 %3404
        %3406 = vrot.lane.b32.xlu0 %v3321, 32
        %v3407 = vpop.permute.xlu0 %3406
        %3408 = vrot.lane.b32.xlu0 %v3322, 32
        %v3409 = vpop.permute.xlu0 %3408
        %3410 = vrot.lane.b32.xlu0 %v3323, 32
        %v3411 = vpop.permute.xlu0 %3410
        %3412 = vrot.lane.b32.xlu0 %v3324, 32
        %v3413 = vpop.permute.xlu0 %3412
        %3414 = vrot.lane.b32.xlu0 %v3325, 32
        %v3415 = vpop.permute.xlu0 %3414
        %3416 = vrot.lane.b32.xlu0 %v3326, 32
        %v3417 = vpop.permute.xlu0 %3416
        %3418 = vrot.lane.b32.xlu0 %v3327, 32
        %v3419 = vpop.permute.xlu0 %3418
        %3420 = vrot.lane.b32.xlu0 %v3328, 32
        %v3421 = vpop.permute.xlu0 %3420
        %3422 = vrot.lane.b32.xlu0 %v3329, 32
        %v3423 = vpop.permute.xlu0 %3422
        %3424 = vrot.lane.b32.xlu0 %v3330, 32
        %v3425 = vpop.permute.xlu0 %3424
        %3426 = vrot.lane.b32.xlu0 %v3331, 32
        %v3427 = vpop.permute.xlu0 %3426
        %v3444 = vmul.f32 %v3348, %v3397
        %v3445 = vmul.f32 %v3349, %v3399
        %v3446 = vmul.f32 %v3350, %v3401
        %v3447 = vmul.f32 %v3351, %v3403
        %v3448 = vmul.f32 %v3352, %v3405
        %v3449 = vmul.f32 %v3353, %v3407
        %v3450 = vmul.f32 %v3354, %v3409
        %v3451 = vmul.f32 %v3355, %v3411
        %v3452 = vmul.f32 %v3356, %v3413
        %v3453 = vmul.f32 %v3357, %v3415
        %v3454 = vmul.f32 %v3358, %v3417
        %v3455 = vmul.f32 %v3359, %v3419
        %v3456 = vmul.f32 %v3360, %v3421
        %v3457 = vmul.f32 %v3361, %v3423
        %v3458 = vmul.f32 %v3362, %v3425
        %v3459 = vmul.f32 %v3363, %v3427
        %3476 = vrot.lane.b32.xlu0 %v3444, 32
        %v3477 = vpop.permute.xlu0 %3476
        %3478 = vrot.lane.b32.xlu0 %v3445, 32
        %v3479 = vpop.permute.xlu0 %3478
        %3480 = vrot.lane.b32.xlu0 %v3446, 32
        %v3481 = vpop.permute.xlu0 %3480
        %3482 = vrot.lane.b32.xlu0 %v3447, 32
        %v3483 = vpop.permute.xlu0 %3482
        %3484 = vrot.lane.b32.xlu0 %v3448, 32
        %v3485 = vpop.permute.xlu0 %3484
        %3486 = vrot.lane.b32.xlu0 %v3449, 32
        %v3487 = vpop.permute.xlu0 %3486
        %3488 = vrot.lane.b32.xlu0 %v3450, 32
        %v3489 = vpop.permute.xlu0 %3488
        %3490 = vrot.lane.b32.xlu0 %v3451, 32
        %v3491 = vpop.permute.xlu0 %3490
        %3492 = vrot.lane.b32.xlu0 %v3452, 32
        %v3493 = vpop.permute.xlu0 %3492
        %3494 = vrot.lane.b32.xlu0 %v3453, 32
        %v3495 = vpop.permute.xlu0 %3494
        %3496 = vrot.lane.b32.xlu0 %v3454, 32
        %v3497 = vpop.permute.xlu0 %3496
        %3498 = vrot.lane.b32.xlu0 %v3455, 32
        %v3499 = vpop.permute.xlu0 %3498
        %3500 = vrot.lane.b32.xlu0 %v3456, 32
        %v3501 = vpop.permute.xlu0 %3500
        %3502 = vrot.lane.b32.xlu0 %v3457, 32
        %v3503 = vpop.permute.xlu0 %3502
        %3504 = vrot.lane.b32.xlu0 %v3458, 32
        %v3505 = vpop.permute.xlu0 %3504
        %3506 = vrot.lane.b32.xlu0 %v3459, 32
        %v3507 = vpop.permute.xlu0 %3506
        %v3524 = vadd.f32 %v3364, %v3477
        %v3525 = vadd.f32 %v3365, %v3479
        %v3526 = vadd.f32 %v3366, %v3481
        %v3527 = vadd.f32 %v3367, %v3483
        %v3528 = vadd.f32 %v3368, %v3485
        %v3529 = vadd.f32 %v3369, %v3487
        %v3530 = vadd.f32 %v3370, %v3489
        %v3531 = vadd.f32 %v3371, %v3491
        %v3532 = vadd.f32 %v3372, %v3493
        %v3533 = vadd.f32 %v3373, %v3495
        %v3534 = vadd.f32 %v3374, %v3497
        %v3535 = vadd.f32 %v3375, %v3499
        %v3536 = vadd.f32 %v3376, %v3501
        %v3537 = vadd.f32 %v3377, %v3503
        %v3538 = vadd.f32 %v3378, %v3505
        %v3539 = vadd.f32 %v3379, %v3507
        %v3540 = vtanh.pop %v3524
        %v3541 = vtanh.pop %v3525
        %v3542 = vtanh.pop %v3526
        %v3543 = vtanh.pop %v3527
        %v3544 = vtanh.pop %v3528
        %v3545 = vtanh.pop %v3529
        %v3546 = vtanh.pop %v3530
        %v3547 = vtanh.pop %v3531
        %v3548 = vtanh.pop %v3532
        %v3549 = vtanh.pop %v3533
        %v3550 = vtanh.pop %v3534
        %v3551 = vtanh.pop %v3535
        %v3552 = vtanh.pop %v3536
        %v3553 = vtanh.pop %v3537
        %v3554 = vtanh.pop %v3538
        %v3555 = vtanh.pop %v3539
        %3572 = vrot.lane.b32.xlu0 %v3540, 32
        %v3573 = vpop.permute.xlu0 %3572
        %3574 = vrot.lane.b32.xlu0 %v3541, 32
        %v3575 = vpop.permute.xlu0 %3574
        %3576 = vrot.lane.b32.xlu0 %v3542, 32
        %v3577 = vpop.permute.xlu0 %3576
        %3578 = vrot.lane.b32.xlu0 %v3543, 32
        %v3579 = vpop.permute.xlu0 %3578
        %3580 = vrot.lane.b32.xlu0 %v3544, 32
        %v3581 = vpop.permute.xlu0 %3580
        %3582 = vrot.lane.b32.xlu0 %v3545, 32
        %v3583 = vpop.permute.xlu0 %3582
        %3584 = vrot.lane.b32.xlu0 %v3546, 32
        %v3585 = vpop.permute.xlu0 %3584
        %3586 = vrot.lane.b32.xlu0 %v3547, 32
        %v3587 = vpop.permute.xlu0 %3586
        %3588 = vrot.lane.b32.xlu0 %v3548, 32
        %v3589 = vpop.permute.xlu0 %3588
        %3590 = vrot.lane.b32.xlu0 %v3549, 32
        %v3591 = vpop.permute.xlu0 %3590
        %3592 = vrot.lane.b32.xlu0 %v3550, 32
        %v3593 = vpop.permute.xlu0 %3592
        %3594 = vrot.lane.b32.xlu0 %v3551, 32
        %v3595 = vpop.permute.xlu0 %3594
        %3596 = vrot.lane.b32.xlu0 %v3552, 32
        %v3597 = vpop.permute.xlu0 %3596
        %3598 = vrot.lane.b32.xlu0 %v3553, 32
        %v3599 = vpop.permute.xlu0 %3598
        %3600 = vrot.lane.b32.xlu0 %v3554, 32
        %v3601 = vpop.permute.xlu0 %3600
        %3602 = vrot.lane.b32.xlu0 %v3555, 32
        %v3603 = vpop.permute.xlu0 %3602
        %v3620 = vmul.f32 %v3348, %v3573
        %v3621 = vmul.f32 %v3349, %v3575
        %v3622 = vmul.f32 %v3350, %v3577
        %v3623 = vmul.f32 %v3351, %v3579
        %v3624 = vmul.f32 %v3352, %v3581
        %v3625 = vmul.f32 %v3353, %v3583
        %v3626 = vmul.f32 %v3354, %v3585
        %v3627 = vmul.f32 %v3355, %v3587
        %v3628 = vmul.f32 %v3356, %v3589
        %v3629 = vmul.f32 %v3357, %v3591
        %v3630 = vmul.f32 %v3358, %v3593
        %v3631 = vmul.f32 %v3359, %v3595
        %v3632 = vmul.f32 %v3360, %v3597
        %v3633 = vmul.f32 %v3361, %v3599
        %v3634 = vmul.f32 %v3362, %v3601
        %v3635 = vmul.f32 %v3363, %v3603
        %3652 = vrot.lane.b32.xlu0 %v3620, 64
        %v3653 = vpop.permute.xlu0 %3652
        %3654 = vrot.lane.b32.xlu0 %v3621, 64
        %v3655 = vpop.permute.xlu0 %3654
        %3656 = vrot.lane.b32.xlu0 %v3622, 64
        %v3657 = vpop.permute.xlu0 %3656
        %3658 = vrot.lane.b32.xlu0 %v3623, 64
        %v3659 = vpop.permute.xlu0 %3658
        %3660 = vrot.lane.b32.xlu0 %v3624, 64
        %v3661 = vpop.permute.xlu0 %3660
        %3662 = vrot.lane.b32.xlu0 %v3625, 64
        %v3663 = vpop.permute.xlu0 %3662
        %3664 = vrot.lane.b32.xlu0 %v3626, 64
        %v3665 = vpop.permute.xlu0 %3664
        %3666 = vrot.lane.b32.xlu0 %v3627, 64
        %v3667 = vpop.permute.xlu0 %3666
        %3668 = vrot.lane.b32.xlu0 %v3628, 64
        %v3669 = vpop.permute.xlu0 %3668
        %3670 = vrot.lane.b32.xlu0 %v3629, 64
        %v3671 = vpop.permute.xlu0 %3670
        %3672 = vrot.lane.b32.xlu0 %v3630, 64
        %v3673 = vpop.permute.xlu0 %3672
        %3674 = vrot.lane.b32.xlu0 %v3631, 64
        %v3675 = vpop.permute.xlu0 %3674
        %3676 = vrot.lane.b32.xlu0 %v3632, 64
        %v3677 = vpop.permute.xlu0 %3676
        %3678 = vrot.lane.b32.xlu0 %v3633, 64
        %v3679 = vpop.permute.xlu0 %3678
        %3680 = vrot.lane.b32.xlu0 %v3634, 64
        %v3681 = vpop.permute.xlu0 %3680
        %3682 = vrot.lane.b32.xlu0 %v3635, 64
        %v3683 = vpop.permute.xlu0 %3682
        %v3684 = vsel %vm2029, %v3653, 0
        %v3686 = vsel %vm2029, %v3655, 0
        %v3688 = vsel %vm2029, %v3657, 0
        %v3690 = vsel %vm2029, %v3659, 0
        %v3692 = vsel %vm2029, %v3661, 0
        %v3694 = vsel %vm2029, %v3663, 0
        %v3696 = vsel %vm2029, %v3665, 0
        %v3698 = vsel %vm2029, %v3667, 0
        %v3700 = vsel %vm2029, %v3669, 0
        %v3702 = vsel %vm2029, %v3671, 0
        %v3704 = vsel %vm2029, %v3673, 0
        %v3706 = vsel %vm2029, %v3675, 0
        %v3708 = vsel %vm2029, %v3677, 0
        %v3710 = vsel %vm2029, %v3679, 0
        %v3712 = vsel %vm2029, %v3681, 0
        %v3714 = vsel %vm2029, %v3683, 0
        %3716 = vmatprep.subr.mxu0 0.0
        %3717 = vmatpush1.msra.mxu0 %v928
        %3718 = vmatprep.subr.mxu0 0.0
        %3719 = vmatpush1.msra.mxu0 %v929
        %3720 = vmatprep.subr.mxu0 0.0
        %3721 = vmatpush1.msra.mxu0 %v930
        %3722 = vmatprep.subr.mxu0 0.0
        %3723 = vmatpush1.msra.mxu0 %v931
        %3724 = vmatprep.subr.mxu0 0.0
        %3725 = vmatpush1.msra.mxu0 0.0
        %3726 = vmatprep.subr.mxu0 0.0
        %3727 = vmatpush1.msra.mxu0 0.0
        %3728 = vmatprep.subr.mxu0 0.0
        %3729 = vmatpush1.msra.mxu0 0.0
        %3730 = vmatprep.subr.mxu0 0.0
        %3731 = vmatpush1.msra.mxu0 0.0
        %3732 = vmatprep.subr.mxu0 0.0
        %3733 = vmatpush1.msra.mxu0 0.0
        %3734 = vmatprep.subr.mxu0 0.0
        %3735 = vmatpush1.msra.mxu0 0.0
        %3736 = vmatprep.subr.mxu0 0.0
        %3737 = vmatpush1.msra.mxu0 0.0
        %3738 = vmatprep.subr.mxu0 0.0
        %3739 = vmatpush1.msra.mxu0 0.0
        %3740 = vmatprep.subr.mxu0 0.0
        %3741 = vmatpush1.msra.mxu0 0.0
        %3742 = vmatprep.subr.mxu0 0.0
        %3743 = vmatpush1.msra.mxu0 0.0
        %3744 = vmatprep.subr.mxu0 0.0
        %3745 = vmatpush1.msra.mxu0 0.0
        %3746 = vmatprep.subr.mxu0 0.0
        %3747 = vmatpush1.msra.mxu0 0.0
        %3748 = vmatprep.subr.mxu0 0.0
        %3749 = vmatpush1.msra.mxu0 0.0
        %3750 = vmatprep.subr.mxu0 0.0
        %3751 = vmatpush1.msra.mxu0 0.0
        %3752 = vmatprep.subr.mxu0 0.0
        %3753 = vmatpush1.msra.mxu0 0.0
        %3754 = vmatprep.subr.mxu0 0.0
        %3755 = vmatpush1.msra.mxu0 0.0
        %3756 = vmatprep.subr.mxu0 0.0
        %3757 = vmatpush1.msra.mxu0 0.0
        %3758 = vmatprep.subr.mxu0 0.0
        %3759 = vmatpush1.msra.mxu0 0.0
        %3760 = vmatprep.subr.mxu0 0.0
        %3761 = vmatpush1.msra.mxu0 0.0
        %3762 = vmatprep.subr.mxu0 0.0
        %3763 = vmatpush1.msra.mxu0 0.0
        %3764 = vmatprep.subr.mxu0 0.0
        %3765 = vmatpush1.msra.mxu0 0.0
        %3766 = vmatprep.subr.mxu0 0.0
        %3767 = vmatpush1.msra.mxu0 0.0
        %3768 = vmatprep.subr.mxu0 0.0
        %3769 = vmatpush1.msra.mxu0 0.0
        %3770 = vmatprep.subr.mxu0 0.0
        %3771 = vmatpush1.msra.mxu0 0.0
        %3772 = vmatprep.subr.mxu0 0.0
        %3773 = vmatpush1.msra.mxu0 0.0
        %3774 = vmatprep.subr.mxu0 0.0
        %3775 = vmatpush1.msra.mxu0 0.0
        %3776 = vmatprep.subr.mxu0 0.0
        %3777 = vmatpush1.msra.mxu0 0.0
        %3778 = vmatprep.subr.mxu0 0.0
        %3779 = vmatpush1.msra.mxu0 0.0
        %3780 = vmatprep.mubr.f32.mxu0 0.0
        %3781 = vmatmul.mubr.f32.gmra.mrb[0].mxu0 %v3684
        %v3782 = vpop.f32.mrb[0].mxu0
        %v3783 = vadd.f32 0.0, %v3782
        %v3784 = vpop.f32.mrb[0].mxu0
        %3785 = vmatprep.mubr.f32.mxu0 0.0
        %3786 = vmatmul.mubr.f32.gmra.mrb[0].mxu0 %v3686
        %v3787 = vpop.f32.mrb[0].mxu0
        %v3788 = vadd.f32 0.0, %v3787
        %v3789 = vpop.f32.mrb[0].mxu0
        %3790 = vmatprep.mubr.f32.mxu0 0.0
        %3791 = vmatmul.mubr.f32.gmra.mrb[0].mxu0 %v3688
        %v3792 = vpop.f32.mrb[0].mxu0
        %v3793 = vadd.f32 0.0, %v3792
        %v3794 = vpop.f32.mrb[0].mxu0
        %3795 = vmatprep.mubr.f32.mxu0 0.0
        %3796 = vmatmul.mubr.f32.gmra.mrb[0].mxu0 %v3690
        %v3797 = vpop.f32.mrb[0].mxu0
        %v3798 = vadd.f32 0.0, %v3797
        %v3799 = vpop.f32.mrb[0].mxu0
        %3800 = vmatprep.mubr.f32.mxu0 0.0
        %3801 = vmatmul.mubr.f32.gmra.mrb[0].mxu0 %v3692
        %v3802 = vpop.f32.mrb[0].mxu0
        %v3803 = vadd.f32 0.0, %v3802
        %v3804 = vpop.f32.mrb[0].mxu0
        %3805 = vmatprep.mubr.f32.mxu0 0.0
        %3806 = vmatmul.mubr.f32.gmra.mrb[0].mxu0 %v3694
        %v3807 = vpop.f32.mrb[0].mxu0
        %v3808 = vadd.f32 0.0, %v3807
        %v3809 = vpop.f32.mrb[0].mxu0
        %3810 = vmatprep.mubr.f32.mxu0 0.0
        %3811 = vmatmul.mubr.f32.gmra.mrb[0].mxu0 %v3696
        %v3812 = vpop.f32.mrb[0].mxu0
        %v3813 = vadd.f32 0.0, %v3812
        %v3814 = vpop.f32.mrb[0].mxu0
        %3815 = vmatprep.mubr.f32.mxu0 0.0
        %3816 = vmatmul.mubr.f32.gmra.mrb[0].mxu0 %v3698
        %v3817 = vpop.f32.mrb[0].mxu0
        %v3818 = vadd.f32 0.0, %v3817
        %v3819 = vpop.f32.mrb[0].mxu0
        %3820 = vmatprep.mubr.f32.mxu0 0.0
        %3821 = vmatmul.mubr.f32.gmra.mrb[0].mxu0 %v3700
        %v3822 = vpop.f32.mrb[0].mxu0
        %v3823 = vadd.f32 0.0, %v3822
        %v3824 = vpop.f32.mrb[0].mxu0
        %3825 = vmatprep.mubr.f32.mxu0 0.0
        %3826 = vmatmul.mubr.f32.gmra.mrb[0].mxu0 %v3702
        %v3827 = vpop.f32.mrb[0].mxu0
        %v3828 = vadd.f32 0.0, %v3827
        %v3829 = vpop.f32.mrb[0].mxu0
        %3830 = vmatprep.mubr.f32.mxu0 0.0
        %3831 = vmatmul.mubr.f32.gmra.mrb[0].mxu0 %v3704
        %v3832 = vpop.f32.mrb[0].mxu0
        %v3833 = vadd.f32 0.0, %v3832
        %v3834 = vpop.f32.mrb[0].mxu0
        %3835 = vmatprep.mubr.f32.mxu0 0.0
        %3836 = vmatmul.mubr.f32.gmra.mrb[0].mxu0 %v3706
        %v3837 = vpop.f32.mrb[0].mxu0
        %v3838 = vadd.f32 0.0, %v3837
        %v3839 = vpop.f32.mrb[0].mxu0
        %3840 = vmatprep.mubr.f32.mxu0 0.0
        %3841 = vmatmul.mubr.f32.gmra.mrb[0].mxu0 %v3708
        %v3842 = vpop.f32.mrb[0].mxu0
        %v3843 = vadd.f32 0.0, %v3842
        %v3844 = vpop.f32.mrb[0].mxu0
        %3845 = vmatprep.mubr.f32.mxu0 0.0
        %3846 = vmatmul.mubr.f32.gmra.mrb[0].mxu0 %v3710
        %v3847 = vpop.f32.mrb[0].mxu0
        %v3848 = vadd.f32 0.0, %v3847
        %v3849 = vpop.f32.mrb[0].mxu0
        %3850 = vmatprep.mubr.f32.mxu0 0.0
        %3851 = vmatmul.mubr.f32.gmra.mrb[0].mxu0 %v3712
        %v3852 = vpop.f32.mrb[0].mxu0
        %v3853 = vadd.f32 0.0, %v3852
        %v3854 = vpop.f32.mrb[0].mxu0
        %3855 = vmatprep.mubr.f32.mxu0 0.0
        %3856 = vmatmul.mubr.f32.gmra.mrb[0].mxu0 %v3714
        %v3857 = vpop.f32.mrb[0].mxu0
        %v3858 = vadd.f32 0.0, %v3857
        %v3859 = vpop.f32.mrb[0].mxu0
        %3860 = vdwg.mxu0
        %v3861 = vadd.f32 %v1631, %v3783
        %v3862 = vadd.f32 %v1636, %v3788
        %v3863 = vadd.f32 %v1641, %v3793
        %v3864 = vadd.f32 %v1646, %v3798
        %v3865 = vadd.f32 %v1651, %v3803
        %v3866 = vadd.f32 %v1656, %v3808
        %v3867 = vadd.f32 %v1661, %v3813
        %v3868 = vadd.f32 %v1666, %v3818
        %v3869 = vadd.f32 %v1671, %v3823
        %v3870 = vadd.f32 %v1676, %v3828
        %v3871 = vadd.f32 %v1681, %v3833
        %v3872 = vadd.f32 %v1686, %v3838
        %v3873 = vadd.f32 %v1691, %v3843
        %v3874 = vadd.f32 %v1696, %v3848
        %v3875 = vadd.f32 %v1701, %v3853
        %v3876 = vadd.f32 %v1706, %v3858
        %v3877 = vtanh.pop %v3861
        %v3878 = vtanh.pop %v3862
        %v3879 = vtanh.pop %v3863
        %v3880 = vtanh.pop %v3864
        %v3881 = vtanh.pop %v3865
        %v3882 = vtanh.pop %v3866
        %v3883 = vtanh.pop %v3867
        %v3884 = vtanh.pop %v3868
        %v3885 = vtanh.pop %v3869
        %v3886 = vtanh.pop %v3870
        %v3887 = vtanh.pop %v3871
        %v3888 = vtanh.pop %v3872
        %v3889 = vtanh.pop %v3873
        %v3890 = vtanh.pop %v3874
        %v3891 = vtanh.pop %v3875
        %v3892 = vtanh.pop %v3876
        %v3893 = vadd.f32 %v3877, 1.0
        %v3894 = vadd.f32 %v3878, 1.0
        %v3895 = vadd.f32 %v3879, 1.0
        %v3896 = vadd.f32 %v3880, 1.0
        %v3897 = vadd.f32 %v3881, 1.0
        %v3898 = vadd.f32 %v3882, 1.0
        %v3899 = vadd.f32 %v3883, 1.0
        %v3900 = vadd.f32 %v3884, 1.0
        %v3901 = vadd.f32 %v3885, 1.0
        %v3902 = vadd.f32 %v3886, 1.0
        %v3903 = vadd.f32 %v3887, 1.0
        %v3904 = vadd.f32 %v3888, 1.0
        %v3905 = vadd.f32 %v3889, 1.0
        %v3906 = vadd.f32 %v3890, 1.0
        %v3907 = vadd.f32 %v3891, 1.0
        %v3908 = vadd.f32 %v3892, 1.0
        %v3909 = vmul.f32 %v3893, 0.5
        %v3910 = vmul.f32 %v3894, 0.5
        %v3911 = vmul.f32 %v3895, 0.5
        %v3912 = vmul.f32 %v3896, 0.5
        %v3913 = vmul.f32 %v3897, 0.5
        %v3914 = vmul.f32 %v3898, 0.5
        %v3915 = vmul.f32 %v3899, 0.5
        %v3916 = vmul.f32 %v3900, 0.5
        %v3917 = vmul.f32 %v3901, 0.5
        %v3918 = vmul.f32 %v3902, 0.5
        %v3919 = vmul.f32 %v3903, 0.5
        %v3920 = vmul.f32 %v3904, 0.5
        %v3921 = vmul.f32 %v3905, 0.5
        %v3922 = vmul.f32 %v3906, 0.5
        %v3923 = vmul.f32 %v3907, 0.5
        %v3924 = vmul.f32 %v3908, 0.5
        %v3925 = vmul.f32 %v3909, %v3524
        %v3926 = vmul.f32 %v3910, %v3525
        %v3927 = vmul.f32 %v3911, %v3526
        %v3928 = vmul.f32 %v3912, %v3527
        %v3929 = vmul.f32 %v3913, %v3528
        %v3930 = vmul.f32 %v3914, %v3529
        %v3931 = vmul.f32 %v3915, %v3530
        %v3932 = vmul.f32 %v3916, %v3531
        %v3933 = vmul.f32 %v3917, %v3532
        %v3934 = vmul.f32 %v3918, %v3533
        %v3935 = vmul.f32 %v3919, %v3534
        %v3936 = vmul.f32 %v3920, %v3535
        %v3937 = vmul.f32 %v3921, %v3536
        %v3938 = vmul.f32 %v3922, %v3537
        %v3939 = vmul.f32 %v3923, %v3538
        %v3940 = vmul.f32 %v3924, %v3539
        %3957 = vrot.lane.b32.xlu0 %v3877, 32
        %v3958 = vpop.permute.xlu0 %3957
        %3959 = vrot.lane.b32.xlu0 %v3878, 32
        %v3960 = vpop.permute.xlu0 %3959
        %3961 = vrot.lane.b32.xlu0 %v3879, 32
        %v3962 = vpop.permute.xlu0 %3961
        %3963 = vrot.lane.b32.xlu0 %v3880, 32
        %v3964 = vpop.permute.xlu0 %3963
        %3965 = vrot.lane.b32.xlu0 %v3881, 32
        %v3966 = vpop.permute.xlu0 %3965
        %3967 = vrot.lane.b32.xlu0 %v3882, 32
        %v3968 = vpop.permute.xlu0 %3967
        %3969 = vrot.lane.b32.xlu0 %v3883, 32
        %v3970 = vpop.permute.xlu0 %3969
        %3971 = vrot.lane.b32.xlu0 %v3884, 32
        %v3972 = vpop.permute.xlu0 %3971
        %3973 = vrot.lane.b32.xlu0 %v3885, 32
        %v3974 = vpop.permute.xlu0 %3973
        %3975 = vrot.lane.b32.xlu0 %v3886, 32
        %v3976 = vpop.permute.xlu0 %3975
        %3977 = vrot.lane.b32.xlu0 %v3887, 32
        %v3978 = vpop.permute.xlu0 %3977
        %3979 = vrot.lane.b32.xlu0 %v3888, 32
        %v3980 = vpop.permute.xlu0 %3979
        %3981 = vrot.lane.b32.xlu0 %v3889, 32
        %v3982 = vpop.permute.xlu0 %3981
        %3983 = vrot.lane.b32.xlu0 %v3890, 32
        %v3984 = vpop.permute.xlu0 %3983
        %3985 = vrot.lane.b32.xlu0 %v3891, 32
        %v3986 = vpop.permute.xlu0 %3985
        %3987 = vrot.lane.b32.xlu0 %v3892, 32
        %v3988 = vpop.permute.xlu0 %3987
        %v4005 = vmul.f32 %v3909, %v3958
        %v4006 = vmul.f32 %v3910, %v3960
        %v4007 = vmul.f32 %v3911, %v3962
        %v4008 = vmul.f32 %v3912, %v3964
        %v4009 = vmul.f32 %v3913, %v3966
        %v4010 = vmul.f32 %v3914, %v3968
        %v4011 = vmul.f32 %v3915, %v3970
        %v4012 = vmul.f32 %v3916, %v3972
        %v4013 = vmul.f32 %v3917, %v3974
        %v4014 = vmul.f32 %v3918, %v3976
        %v4015 = vmul.f32 %v3919, %v3978
        %v4016 = vmul.f32 %v3920, %v3980
        %v4017 = vmul.f32 %v3921, %v3982
        %v4018 = vmul.f32 %v3922, %v3984
        %v4019 = vmul.f32 %v3923, %v3986
        %v4020 = vmul.f32 %v3924, %v3988
        %4037 = vrot.lane.b32.xlu0 %v4005, 32
        %v4038 = vpop.permute.xlu0 %4037
        %4039 = vrot.lane.b32.xlu0 %v4006, 32
        %v4040 = vpop.permute.xlu0 %4039
        %4041 = vrot.lane.b32.xlu0 %v4007, 32
        %v4042 = vpop.permute.xlu0 %4041
        %4043 = vrot.lane.b32.xlu0 %v4008, 32
        %v4044 = vpop.permute.xlu0 %4043
        %4045 = vrot.lane.b32.xlu0 %v4009, 32
        %v4046 = vpop.permute.xlu0 %4045
        %4047 = vrot.lane.b32.xlu0 %v4010, 32
        %v4048 = vpop.permute.xlu0 %4047
        %4049 = vrot.lane.b32.xlu0 %v4011, 32
        %v4050 = vpop.permute.xlu0 %4049
        %4051 = vrot.lane.b32.xlu0 %v4012, 32
        %v4052 = vpop.permute.xlu0 %4051
        %4053 = vrot.lane.b32.xlu0 %v4013, 32
        %v4054 = vpop.permute.xlu0 %4053
        %4055 = vrot.lane.b32.xlu0 %v4014, 32
        %v4056 = vpop.permute.xlu0 %4055
        %4057 = vrot.lane.b32.xlu0 %v4015, 32
        %v4058 = vpop.permute.xlu0 %4057
        %4059 = vrot.lane.b32.xlu0 %v4016, 32
        %v4060 = vpop.permute.xlu0 %4059
        %4061 = vrot.lane.b32.xlu0 %v4017, 32
        %v4062 = vpop.permute.xlu0 %4061
        %4063 = vrot.lane.b32.xlu0 %v4018, 32
        %v4064 = vpop.permute.xlu0 %4063
        %4065 = vrot.lane.b32.xlu0 %v4019, 32
        %v4066 = vpop.permute.xlu0 %4065
        %4067 = vrot.lane.b32.xlu0 %v4020, 32
        %v4068 = vpop.permute.xlu0 %4067
        %v4085 = vadd.f32 %v3925, %v4038
        %v4086 = vadd.f32 %v3926, %v4040
        %v4087 = vadd.f32 %v3927, %v4042
        %v4088 = vadd.f32 %v3928, %v4044
        %v4089 = vadd.f32 %v3929, %v4046
        %v4090 = vadd.f32 %v3930, %v4048
        %v4091 = vadd.f32 %v3931, %v4050
        %v4092 = vadd.f32 %v3932, %v4052
        %v4093 = vadd.f32 %v3933, %v4054
        %v4094 = vadd.f32 %v3934, %v4056
        %v4095 = vadd.f32 %v3935, %v4058
        %v4096 = vadd.f32 %v3936, %v4060
        %v4097 = vadd.f32 %v3937, %v4062
        %v4098 = vadd.f32 %v3938, %v4064
        %v4099 = vadd.f32 %v3939, %v4066
        %v4100 = vadd.f32 %v3940, %v4068
        %v4101 = vtanh.pop %v4085
        %v4102 = vtanh.pop %v4086
        %v4103 = vtanh.pop %v4087
        %v4104 = vtanh.pop %v4088
        %v4105 = vtanh.pop %v4089
        %v4106 = vtanh.pop %v4090
        %v4107 = vtanh.pop %v4091
        %v4108 = vtanh.pop %v4092
        %v4109 = vtanh.pop %v4093
        %v4110 = vtanh.pop %v4094
        %v4111 = vtanh.pop %v4095
        %v4112 = vtanh.pop %v4096
        %v4113 = vtanh.pop %v4097
        %v4114 = vtanh.pop %v4098
        %v4115 = vtanh.pop %v4099
        %v4116 = vtanh.pop %v4100
        %4133 = vrot.lane.b32.xlu0 %v4101, 32
        %v4134 = vpop.permute.xlu0 %4133
        %4135 = vrot.lane.b32.xlu0 %v4102, 32
        %v4136 = vpop.permute.xlu0 %4135
        %4137 = vrot.lane.b32.xlu0 %v4103, 32
        %v4138 = vpop.permute.xlu0 %4137
        %4139 = vrot.lane.b32.xlu0 %v4104, 32
        %v4140 = vpop.permute.xlu0 %4139
        %4141 = vrot.lane.b32.xlu0 %v4105, 32
        %v4142 = vpop.permute.xlu0 %4141
        %4143 = vrot.lane.b32.xlu0 %v4106, 32
        %v4144 = vpop.permute.xlu0 %4143
        %4145 = vrot.lane.b32.xlu0 %v4107, 32
        %v4146 = vpop.permute.xlu0 %4145
        %4147 = vrot.lane.b32.xlu0 %v4108, 32
        %v4148 = vpop.permute.xlu0 %4147
        %4149 = vrot.lane.b32.xlu0 %v4109, 32
        %v4150 = vpop.permute.xlu0 %4149
        %4151 = vrot.lane.b32.xlu0 %v4110, 32
        %v4152 = vpop.permute.xlu0 %4151
        %4153 = vrot.lane.b32.xlu0 %v4111, 32
        %v4154 = vpop.permute.xlu0 %4153
        %4155 = vrot.lane.b32.xlu0 %v4112, 32
        %v4156 = vpop.permute.xlu0 %4155
        %4157 = vrot.lane.b32.xlu0 %v4113, 32
        %v4158 = vpop.permute.xlu0 %4157
        %4159 = vrot.lane.b32.xlu0 %v4114, 32
        %v4160 = vpop.permute.xlu0 %4159
        %4161 = vrot.lane.b32.xlu0 %v4115, 32
        %v4162 = vpop.permute.xlu0 %4161
        %4163 = vrot.lane.b32.xlu0 %v4116, 32
        %v4164 = vpop.permute.xlu0 %4163
        %v4181 = vmul.f32 %v3909, %v4134
        %v4182 = vmul.f32 %v3910, %v4136
        %v4183 = vmul.f32 %v3911, %v4138
        %v4184 = vmul.f32 %v3912, %v4140
        %v4185 = vmul.f32 %v3913, %v4142
        %v4186 = vmul.f32 %v3914, %v4144
        %v4187 = vmul.f32 %v3915, %v4146
        %v4188 = vmul.f32 %v3916, %v4148
        %v4189 = vmul.f32 %v3917, %v4150
        %v4190 = vmul.f32 %v3918, %v4152
        %v4191 = vmul.f32 %v3919, %v4154
        %v4192 = vmul.f32 %v3920, %v4156
        %v4193 = vmul.f32 %v3921, %v4158
        %v4194 = vmul.f32 %v3922, %v4160
        %v4195 = vmul.f32 %v3923, %v4162
        %v4196 = vmul.f32 %v3924, %v4164
        %4213 = vrot.lane.b32.xlu0 %v4181, 64
        %v4214 = vpop.permute.xlu0 %4213
        %4215 = vrot.lane.b32.xlu0 %v4182, 64
        %v4216 = vpop.permute.xlu0 %4215
        %4217 = vrot.lane.b32.xlu0 %v4183, 64
        %v4218 = vpop.permute.xlu0 %4217
        %4219 = vrot.lane.b32.xlu0 %v4184, 64
        %v4220 = vpop.permute.xlu0 %4219
        %4221 = vrot.lane.b32.xlu0 %v4185, 64
        %v4222 = vpop.permute.xlu0 %4221
        %4223 = vrot.lane.b32.xlu0 %v4186, 64
        %v4224 = vpop.permute.xlu0 %4223
        %4225 = vrot.lane.b32.xlu0 %v4187, 64
        %v4226 = vpop.permute.xlu0 %4225
        %4227 = vrot.lane.b32.xlu0 %v4188, 64
        %v4228 = vpop.permute.xlu0 %4227
        %4229 = vrot.lane.b32.xlu0 %v4189, 64
        %v4230 = vpop.permute.xlu0 %4229
        %4231 = vrot.lane.b32.xlu0 %v4190, 64
        %v4232 = vpop.permute.xlu0 %4231
        %4233 = vrot.lane.b32.xlu0 %v4191, 64
        %v4234 = vpop.permute.xlu0 %4233
        %4235 = vrot.lane.b32.xlu0 %v4192, 64
        %v4236 = vpop.permute.xlu0 %4235
        %4237 = vrot.lane.b32.xlu0 %v4193, 64
        %v4238 = vpop.permute.xlu0 %4237
        %4239 = vrot.lane.b32.xlu0 %v4194, 64
        %v4240 = vpop.permute.xlu0 %4239
        %4241 = vrot.lane.b32.xlu0 %v4195, 64
        %v4242 = vpop.permute.xlu0 %4241
        %4243 = vrot.lane.b32.xlu0 %v4196, 64
        %v4244 = vpop.permute.xlu0 %4243
        %v4245 = vsel %vm2029, %v4214, 0
        %v4247 = vsel %vm2029, %v4216, 0
        %v4249 = vsel %vm2029, %v4218, 0
        %v4251 = vsel %vm2029, %v4220, 0
        %v4253 = vsel %vm2029, %v4222, 0
        %v4255 = vsel %vm2029, %v4224, 0
        %v4257 = vsel %vm2029, %v4226, 0
        %v4259 = vsel %vm2029, %v4228, 0
        %v4261 = vsel %vm2029, %v4230, 0
        %v4263 = vsel %vm2029, %v4232, 0
        %v4265 = vsel %vm2029, %v4234, 0
        %v4267 = vsel %vm2029, %v4236, 0
        %v4269 = vsel %vm2029, %v4238, 0
        %v4271 = vsel %vm2029, %v4240, 0
        %v4273 = vsel %vm2029, %v4242, 0
        %v4275 = vsel %vm2029, %v4244, 0
        %4277 = vmatprep.subr.mxu0 0.0
        %4278 = vmatpush1.msra.mxu0 %v928
        %4279 = vmatprep.subr.mxu0 0.0
        %4280 = vmatpush1.msra.mxu0 %v929
        %4281 = vmatprep.subr.mxu0 0.0
        %4282 = vmatpush1.msra.mxu0 %v930
        %4283 = vmatprep.subr.mxu0 0.0
        %4284 = vmatpush1.msra.mxu0 %v931
        %4285 = vmatprep.subr.mxu0 0.0
        %4286 = vmatpush1.msra.mxu0 0.0
        %4287 = vmatprep.subr.mxu0 0.0
        %4288 = vmatpush1.msra.mxu0 0.0
        %4289 = vmatprep.subr.mxu0 0.0
        %4290 = vmatpush1.msra.mxu0 0.0
        %4291 = vmatprep.subr.mxu0 0.0
        %4292 = vmatpush1.msra.mxu0 0.0
        %4293 = vmatprep.subr.mxu0 0.0
        %4294 = vmatpush1.msra.mxu0 0.0
        %4295 = vmatprep.subr.mxu0 0.0
        %4296 = vmatpush1.msra.mxu0 0.0
        %4297 = vmatprep.subr.mxu0 0.0
        %4298 = vmatpush1.msra.mxu0 0.0
        %4299 = vmatprep.subr.mxu0 0.0
        %4300 = vmatpush1.msra.mxu0 0.0
        %4301 = vmatprep.subr.mxu0 0.0
        %4302 = vmatpush1.msra.mxu0 0.0
        %4303 = vmatprep.subr.mxu0 0.0
        %4304 = vmatpush1.msra.mxu0 0.0
        %4305 = vmatprep.subr.mxu0 0.0
        %4306 = vmatpush1.msra.mxu0 0.0
        %4307 = vmatprep.subr.mxu0 0.0
        %4308 = vmatpush1.msra.mxu0 0.0
        %4309 = vmatprep.subr.mxu0 0.0
        %4310 = vmatpush1.msra.mxu0 0.0
        %4311 = vmatprep.subr.mxu0 0.0
        %4312 = vmatpush1.msra.mxu0 0.0
        %4313 = vmatprep.subr.mxu0 0.0
        %4314 = vmatpush1.msra.mxu0 0.0
        %4315 = vmatprep.subr.mxu0 0.0
        %4316 = vmatpush1.msra.mxu0 0.0
        %4317 = vmatprep.subr.mxu0 0.0
        %4318 = vmatpush1.msra.mxu0 0.0
        %4319 = vmatprep.subr.mxu0 0.0
        %4320 = vmatpush1.msra.mxu0 0.0
        %4321 = vmatprep.subr.mxu0 0.0
        %4322 = vmatpush1.msra.mxu0 0.0
        %4323 = vmatprep.subr.mxu0 0.0
        %4324 = vmatpush1.msra.mxu0 0.0
        %4325 = vmatprep.subr.mxu0 0.0
        %4326 = vmatpush1.msra.mxu0 0.0
        %4327 = vmatprep.subr.mxu0 0.0
        %4328 = vmatpush1.msra.mxu0 0.0
        %4329 = vmatprep.subr.mxu0 0.0
        %4330 = vmatpush1.msra.mxu0 0.0
        %4331 = vmatprep.subr.mxu0 0.0
        %4332 = vmatpush1.msra.mxu0 0.0
        %4333 = vmatprep.subr.mxu0 0.0
        %4334 = vmatpush1.msra.mxu0 0.0
        %4335 = vmatprep.subr.mxu0 0.0
        %4336 = vmatpush1.msra.mxu0 0.0
        %4337 = vmatprep.subr.mxu0 0.0
        %4338 = vmatpush1.msra.mxu0 0.0
        %4339 = vmatprep.subr.mxu0 0.0
        %4340 = vmatpush1.msra.mxu0 0.0
        %4341 = vmatprep.mubr.f32.mxu0 0.0
        %4342 = vmatmul.mubr.f32.gmra.mrb[0].mxu0 %v4245
        %v4343 = vpop.f32.mrb[0].mxu0
        %v4344 = vadd.f32 0.0, %v4343
        %v4345 = vpop.f32.mrb[0].mxu0
        %4346 = vmatprep.mubr.f32.mxu0 0.0
        %4347 = vmatmul.mubr.f32.gmra.mrb[0].mxu0 %v4247
        %v4348 = vpop.f32.mrb[0].mxu0
        %v4349 = vadd.f32 0.0, %v4348
        %v4350 = vpop.f32.mrb[0].mxu0
        %4351 = vmatprep.mubr.f32.mxu0 0.0
        %4352 = vmatmul.mubr.f32.gmra.mrb[0].mxu0 %v4249
        %v4353 = vpop.f32.mrb[0].mxu0
        %v4354 = vadd.f32 0.0, %v4353
        %v4355 = vpop.f32.mrb[0].mxu0
        %4356 = vmatprep.mubr.f32.mxu0 0.0
        %4357 = vmatmul.mubr.f32.gmra.mrb[0].mxu0 %v4251
        %v4358 = vpop.f32.mrb[0].mxu0
        %v4359 = vadd.f32 0.0, %v4358
        %v4360 = vpop.f32.mrb[0].mxu0
        %4361 = vmatprep.mubr.f32.mxu0 0.0
        %4362 = vmatmul.mubr.f32.gmra.mrb[0].mxu0 %v4253
        %v4363 = vpop.f32.mrb[0].mxu0
        %v4364 = vadd.f32 0.0, %v4363
        %v4365 = vpop.f32.mrb[0].mxu0
        %4366 = vmatprep.mubr.f32.mxu0 0.0
        %4367 = vmatmul.mubr.f32.gmra.mrb[0].mxu0 %v4255
        %v4368 = vpop.f32.mrb[0].mxu0
        %v4369 = vadd.f32 0.0, %v4368
        %v4370 = vpop.f32.mrb[0].mxu0
        %4371 = vmatprep.mubr.f32.mxu0 0.0
        %4372 = vmatmul.mubr.f32.gmra.mrb[0].mxu0 %v4257
        %v4373 = vpop.f32.mrb[0].mxu0
        %v4374 = vadd.f32 0.0, %v4373
        %v4375 = vpop.f32.mrb[0].mxu0
        %4376 = vmatprep.mubr.f32.mxu0 0.0
        %4377 = vmatmul.mubr.f32.gmra.mrb[0].mxu0 %v4259
        %v4378 = vpop.f32.mrb[0].mxu0
        %v4379 = vadd.f32 0.0, %v4378
        %v4380 = vpop.f32.mrb[0].mxu0
        %4381 = vmatprep.mubr.f32.mxu0 0.0
        %4382 = vmatmul.mubr.f32.gmra.mrb[0].mxu0 %v4261
        %v4383 = vpop.f32.mrb[0].mxu0
        %v4384 = vadd.f32 0.0, %v4383
        %v4385 = vpop.f32.mrb[0].mxu0
        %4386 = vmatprep.mubr.f32.mxu0 0.0
        %4387 = vmatmul.mubr.f32.gmra.mrb[0].mxu0 %v4263
        %v4388 = vpop.f32.mrb[0].mxu0
        %v4389 = vadd.f32 0.0, %v4388
        %v4390 = vpop.f32.mrb[0].mxu0
        %4391 = vmatprep.mubr.f32.mxu0 0.0
        %4392 = vmatmul.mubr.f32.gmra.mrb[0].mxu0 %v4265
        %v4393 = vpop.f32.mrb[0].mxu0
        %v4394 = vadd.f32 0.0, %v4393
        %v4395 = vpop.f32.mrb[0].mxu0
        %4396 = vmatprep.mubr.f32.mxu0 0.0
        %4397 = vmatmul.mubr.f32.gmra.mrb[0].mxu0 %v4267
        %v4398 = vpop.f32.mrb[0].mxu0
        %v4399 = vadd.f32 0.0, %v4398
        %v4400 = vpop.f32.mrb[0].mxu0
        %4401 = vmatprep.mubr.f32.mxu0 0.0
        %4402 = vmatmul.mubr.f32.gmra.mrb[0].mxu0 %v4269
        %v4403 = vpop.f32.mrb[0].mxu0
        %v4404 = vadd.f32 0.0, %v4403
        %v4405 = vpop.f32.mrb[0].mxu0
        %4406 = vmatprep.mubr.f32.mxu0 0.0
        %4407 = vmatmul.mubr.f32.gmra.mrb[0].mxu0 %v4271
        %v4408 = vpop.f32.mrb[0].mxu0
        %v4409 = vadd.f32 0.0, %v4408
        %v4410 = vpop.f32.mrb[0].mxu0
        %4411 = vmatprep.mubr.f32.mxu0 0.0
        %4412 = vmatmul.mubr.f32.gmra.mrb[0].mxu0 %v4273
        %v4413 = vpop.f32.mrb[0].mxu0
        %v4414 = vadd.f32 0.0, %v4413
        %v4415 = vpop.f32.mrb[0].mxu0
        %4416 = vmatprep.mubr.f32.mxu0 0.0
        %4417 = vmatmul.mubr.f32.gmra.mrb[0].mxu0 %v4275
        %v4418 = vpop.f32.mrb[0].mxu0
        %v4419 = vadd.f32 0.0, %v4418
        %v4420 = vpop.f32.mrb[0].mxu0
        %4421 = vdwg.mxu0
        %v4422 = vadd.f32 %v1711, %v4344
        %v4423 = vadd.f32 %v1716, %v4349
        %v4424 = vadd.f32 %v1721, %v4354
        %v4425 = vadd.f32 %v1726, %v4359
        %v4426 = vadd.f32 %v1731, %v4364
        %v4427 = vadd.f32 %v1736, %v4369
        %v4428 = vadd.f32 %v1741, %v4374
        %v4429 = vadd.f32 %v1746, %v4379
        %v4430 = vadd.f32 %v1751, %v4384
        %v4431 = vadd.f32 %v1756, %v4389
        %v4432 = vadd.f32 %v1761, %v4394
        %v4433 = vadd.f32 %v1766, %v4399
        %v4434 = vadd.f32 %v1771, %v4404
        %v4435 = vadd.f32 %v1776, %v4409
        %v4436 = vadd.f32 %v1781, %v4414
        %v4437 = vadd.f32 %v1786, %v4419
        %v4438 = vtanh.pop %v4422
        %v4439 = vtanh.pop %v4423
        %v4440 = vtanh.pop %v4424
        %v4441 = vtanh.pop %v4425
        %v4442 = vtanh.pop %v4426
        %v4443 = vtanh.pop %v4427
        %v4444 = vtanh.pop %v4428
        %v4445 = vtanh.pop %v4429
        %v4446 = vtanh.pop %v4430
        %v4447 = vtanh.pop %v4431
        %v4448 = vtanh.pop %v4432
        %v4449 = vtanh.pop %v4433
        %v4450 = vtanh.pop %v4434
        %v4451 = vtanh.pop %v4435
        %v4452 = vtanh.pop %v4436
        %v4453 = vtanh.pop %v4437
        %v4454 = vadd.f32 %v4438, 1.0
        %v4455 = vadd.f32 %v4439, 1.0
        %v4456 = vadd.f32 %v4440, 1.0
        %v4457 = vadd.f32 %v4441, 1.0
        %v4458 = vadd.f32 %v4442, 1.0
        %v4459 = vadd.f32 %v4443, 1.0
        %v4460 = vadd.f32 %v4444, 1.0
        %v4461 = vadd.f32 %v4445, 1.0
        %v4462 = vadd.f32 %v4446, 1.0
        %v4463 = vadd.f32 %v4447, 1.0
        %v4464 = vadd.f32 %v4448, 1.0
        %v4465 = vadd.f32 %v4449, 1.0
        %v4466 = vadd.f32 %v4450, 1.0
        %v4467 = vadd.f32 %v4451, 1.0
        %v4468 = vadd.f32 %v4452, 1.0
        %v4469 = vadd.f32 %v4453, 1.0
        %v4470 = vmul.f32 %v4454, 0.5
        %v4471 = vmul.f32 %v4455, 0.5
        %v4472 = vmul.f32 %v4456, 0.5
        %v4473 = vmul.f32 %v4457, 0.5
        %v4474 = vmul.f32 %v4458, 0.5
        %v4475 = vmul.f32 %v4459, 0.5
        %v4476 = vmul.f32 %v4460, 0.5
        %v4477 = vmul.f32 %v4461, 0.5
        %v4478 = vmul.f32 %v4462, 0.5
        %v4479 = vmul.f32 %v4463, 0.5
        %v4480 = vmul.f32 %v4464, 0.5
        %v4481 = vmul.f32 %v4465, 0.5
        %v4482 = vmul.f32 %v4466, 0.5
        %v4483 = vmul.f32 %v4467, 0.5
        %v4484 = vmul.f32 %v4468, 0.5
        %v4485 = vmul.f32 %v4469, 0.5
        %v4486 = vmul.f32 %v4470, %v4085
        %v4487 = vmul.f32 %v4471, %v4086
        %v4488 = vmul.f32 %v4472, %v4087
        %v4489 = vmul.f32 %v4473, %v4088
        %v4490 = vmul.f32 %v4474, %v4089
        %v4491 = vmul.f32 %v4475, %v4090
        %v4492 = vmul.f32 %v4476, %v4091
        %v4493 = vmul.f32 %v4477, %v4092
        %v4494 = vmul.f32 %v4478, %v4093
        %v4495 = vmul.f32 %v4479, %v4094
        %v4496 = vmul.f32 %v4480, %v4095
        %v4497 = vmul.f32 %v4481, %v4096
        %v4498 = vmul.f32 %v4482, %v4097
        %v4499 = vmul.f32 %v4483, %v4098
        %v4500 = vmul.f32 %v4484, %v4099
        %v4501 = vmul.f32 %v4485, %v4100
        %4518 = vrot.lane.b32.xlu0 %v4438, 32
        %v4519 = vpop.permute.xlu0 %4518
        %4520 = vrot.lane.b32.xlu0 %v4439, 32
        %v4521 = vpop.permute.xlu0 %4520
        %4522 = vrot.lane.b32.xlu0 %v4440, 32
        %v4523 = vpop.permute.xlu0 %4522
        %4524 = vrot.lane.b32.xlu0 %v4441, 32
        %v4525 = vpop.permute.xlu0 %4524
        %4526 = vrot.lane.b32.xlu0 %v4442, 32
        %v4527 = vpop.permute.xlu0 %4526
        %4528 = vrot.lane.b32.xlu0 %v4443, 32
        %v4529 = vpop.permute.xlu0 %4528
        %4530 = vrot.lane.b32.xlu0 %v4444, 32
        %v4531 = vpop.permute.xlu0 %4530
        %4532 = vrot.lane.b32.xlu0 %v4445, 32
        %v4533 = vpop.permute.xlu0 %4532
        %4534 = vrot.lane.b32.xlu0 %v4446, 32
        %v4535 = vpop.permute.xlu0 %4534
        %4536 = vrot.lane.b32.xlu0 %v4447, 32
        %v4537 = vpop.permute.xlu0 %4536
        %4538 = vrot.lane.b32.xlu0 %v4448, 32
        %v4539 = vpop.permute.xlu0 %4538
        %4540 = vrot.lane.b32.xlu0 %v4449, 32
        %v4541 = vpop.permute.xlu0 %4540
        %4542 = vrot.lane.b32.xlu0 %v4450, 32
        %v4543 = vpop.permute.xlu0 %4542
        %4544 = vrot.lane.b32.xlu0 %v4451, 32
        %v4545 = vpop.permute.xlu0 %4544
        %4546 = vrot.lane.b32.xlu0 %v4452, 32
        %v4547 = vpop.permute.xlu0 %4546
        %4548 = vrot.lane.b32.xlu0 %v4453, 32
        %v4549 = vpop.permute.xlu0 %4548
        %v4566 = vmul.f32 %v4470, %v4519
        %v4567 = vmul.f32 %v4471, %v4521
        %v4568 = vmul.f32 %v4472, %v4523
        %v4569 = vmul.f32 %v4473, %v4525
        %v4570 = vmul.f32 %v4474, %v4527
        %v4571 = vmul.f32 %v4475, %v4529
        %v4572 = vmul.f32 %v4476, %v4531
        %v4573 = vmul.f32 %v4477, %v4533
        %v4574 = vmul.f32 %v4478, %v4535
        %v4575 = vmul.f32 %v4479, %v4537
        %v4576 = vmul.f32 %v4480, %v4539
        %v4577 = vmul.f32 %v4481, %v4541
        %v4578 = vmul.f32 %v4482, %v4543
        %v4579 = vmul.f32 %v4483, %v4545
        %v4580 = vmul.f32 %v4484, %v4547
        %v4581 = vmul.f32 %v4485, %v4549
        %4598 = vrot.lane.b32.xlu0 %v4566, 32
        %v4599 = vpop.permute.xlu0 %4598
        %4600 = vrot.lane.b32.xlu0 %v4567, 32
        %v4601 = vpop.permute.xlu0 %4600
        %4602 = vrot.lane.b32.xlu0 %v4568, 32
        %v4603 = vpop.permute.xlu0 %4602
        %4604 = vrot.lane.b32.xlu0 %v4569, 32
        %v4605 = vpop.permute.xlu0 %4604
        %4606 = vrot.lane.b32.xlu0 %v4570, 32
        %v4607 = vpop.permute.xlu0 %4606
        %4608 = vrot.lane.b32.xlu0 %v4571, 32
        %v4609 = vpop.permute.xlu0 %4608
        %4610 = vrot.lane.b32.xlu0 %v4572, 32
        %v4611 = vpop.permute.xlu0 %4610
        %4612 = vrot.lane.b32.xlu0 %v4573, 32
        %v4613 = vpop.permute.xlu0 %4612
        %4614 = vrot.lane.b32.xlu0 %v4574, 32
        %v4615 = vpop.permute.xlu0 %4614
        %4616 = vrot.lane.b32.xlu0 %v4575, 32
        %v4617 = vpop.permute.xlu0 %4616
        %4618 = vrot.lane.b32.xlu0 %v4576, 32
        %v4619 = vpop.permute.xlu0 %4618
        %4620 = vrot.lane.b32.xlu0 %v4577, 32
        %v4621 = vpop.permute.xlu0 %4620
        %4622 = vrot.lane.b32.xlu0 %v4578, 32
        %v4623 = vpop.permute.xlu0 %4622
        %4624 = vrot.lane.b32.xlu0 %v4579, 32
        %v4625 = vpop.permute.xlu0 %4624
        %4626 = vrot.lane.b32.xlu0 %v4580, 32
        %v4627 = vpop.permute.xlu0 %4626
        %4628 = vrot.lane.b32.xlu0 %v4581, 32
        %v4629 = vpop.permute.xlu0 %4628
        %v4646 = vadd.f32 %v4486, %v4599
        %v4647 = vadd.f32 %v4487, %v4601
        %v4648 = vadd.f32 %v4488, %v4603
        %v4649 = vadd.f32 %v4489, %v4605
        %v4650 = vadd.f32 %v4490, %v4607
        %v4651 = vadd.f32 %v4491, %v4609
        %v4652 = vadd.f32 %v4492, %v4611
        %v4653 = vadd.f32 %v4493, %v4613
        %v4654 = vadd.f32 %v4494, %v4615
        %v4655 = vadd.f32 %v4495, %v4617
        %v4656 = vadd.f32 %v4496, %v4619
        %v4657 = vadd.f32 %v4497, %v4621
        %v4658 = vadd.f32 %v4498, %v4623
        %v4659 = vadd.f32 %v4499, %v4625
        %v4660 = vadd.f32 %v4500, %v4627
        %v4661 = vadd.f32 %v4501, %v4629
        %v4662 = vtanh.pop %v4646
        %v4663 = vtanh.pop %v4647
        %v4664 = vtanh.pop %v4648
        %v4665 = vtanh.pop %v4649
        %v4666 = vtanh.pop %v4650
        %v4667 = vtanh.pop %v4651
        %v4668 = vtanh.pop %v4652
        %v4669 = vtanh.pop %v4653
        %v4670 = vtanh.pop %v4654
        %v4671 = vtanh.pop %v4655
        %v4672 = vtanh.pop %v4656
        %v4673 = vtanh.pop %v4657
        %v4674 = vtanh.pop %v4658
        %v4675 = vtanh.pop %v4659
        %v4676 = vtanh.pop %v4660
        %v4677 = vtanh.pop %v4661
        %4694 = vrot.lane.b32.xlu0 %v4662, 32
        %v4695 = vpop.permute.xlu0 %4694
        %4696 = vrot.lane.b32.xlu0 %v4663, 32
        %v4697 = vpop.permute.xlu0 %4696
        %4698 = vrot.lane.b32.xlu0 %v4664, 32
        %v4699 = vpop.permute.xlu0 %4698
        %4700 = vrot.lane.b32.xlu0 %v4665, 32
        %v4701 = vpop.permute.xlu0 %4700
        %4702 = vrot.lane.b32.xlu0 %v4666, 32
        %v4703 = vpop.permute.xlu0 %4702
        %4704 = vrot.lane.b32.xlu0 %v4667, 32
        %v4705 = vpop.permute.xlu0 %4704
        %4706 = vrot.lane.b32.xlu0 %v4668, 32
        %v4707 = vpop.permute.xlu0 %4706
        %4708 = vrot.lane.b32.xlu0 %v4669, 32
        %v4709 = vpop.permute.xlu0 %4708
        %4710 = vrot.lane.b32.xlu0 %v4670, 32
        %v4711 = vpop.permute.xlu0 %4710
        %4712 = vrot.lane.b32.xlu0 %v4671, 32
        %v4713 = vpop.permute.xlu0 %4712
        %4714 = vrot.lane.b32.xlu0 %v4672, 32
        %v4715 = vpop.permute.xlu0 %4714
        %4716 = vrot.lane.b32.xlu0 %v4673, 32
        %v4717 = vpop.permute.xlu0 %4716
        %4718 = vrot.lane.b32.xlu0 %v4674, 32
        %v4719 = vpop.permute.xlu0 %4718
        %4720 = vrot.lane.b32.xlu0 %v4675, 32
        %v4721 = vpop.permute.xlu0 %4720
        %4722 = vrot.lane.b32.xlu0 %v4676, 32
        %v4723 = vpop.permute.xlu0 %4722
        %4724 = vrot.lane.b32.xlu0 %v4677, 32
        %v4725 = vpop.permute.xlu0 %4724
        %v4742 = vmul.f32 %v4470, %v4695
        %v4743 = vmul.f32 %v4471, %v4697
        %v4744 = vmul.f32 %v4472, %v4699
        %v4745 = vmul.f32 %v4473, %v4701
        %v4746 = vmul.f32 %v4474, %v4703
        %v4747 = vmul.f32 %v4475, %v4705
        %v4748 = vmul.f32 %v4476, %v4707
        %v4749 = vmul.f32 %v4477, %v4709
        %v4750 = vmul.f32 %v4478, %v4711
        %v4751 = vmul.f32 %v4479, %v4713
        %v4752 = vmul.f32 %v4480, %v4715
        %v4753 = vmul.f32 %v4481, %v4717
        %v4754 = vmul.f32 %v4482, %v4719
        %v4755 = vmul.f32 %v4483, %v4721
        %v4756 = vmul.f32 %v4484, %v4723
        %v4757 = vmul.f32 %v4485, %v4725
        %4774 = vrot.lane.b32.xlu0 %v4742, 64
        %v4775 = vpop.permute.xlu0 %4774
        %4776 = vrot.lane.b32.xlu0 %v4743, 64
        %v4777 = vpop.permute.xlu0 %4776
        %4778 = vrot.lane.b32.xlu0 %v4744, 64
        %v4779 = vpop.permute.xlu0 %4778
        %4780 = vrot.lane.b32.xlu0 %v4745, 64
        %v4781 = vpop.permute.xlu0 %4780
        %4782 = vrot.lane.b32.xlu0 %v4746, 64
        %v4783 = vpop.permute.xlu0 %4782
        %4784 = vrot.lane.b32.xlu0 %v4747, 64
        %v4785 = vpop.permute.xlu0 %4784
        %4786 = vrot.lane.b32.xlu0 %v4748, 64
        %v4787 = vpop.permute.xlu0 %4786
        %4788 = vrot.lane.b32.xlu0 %v4749, 64
        %v4789 = vpop.permute.xlu0 %4788
        %4790 = vrot.lane.b32.xlu0 %v4750, 64
        %v4791 = vpop.permute.xlu0 %4790
        %4792 = vrot.lane.b32.xlu0 %v4751, 64
        %v4793 = vpop.permute.xlu0 %4792
        %4794 = vrot.lane.b32.xlu0 %v4752, 64
        %v4795 = vpop.permute.xlu0 %4794
        %4796 = vrot.lane.b32.xlu0 %v4753, 64
        %v4797 = vpop.permute.xlu0 %4796
        %4798 = vrot.lane.b32.xlu0 %v4754, 64
        %v4799 = vpop.permute.xlu0 %4798
        %4800 = vrot.lane.b32.xlu0 %v4755, 64
        %v4801 = vpop.permute.xlu0 %4800
        %4802 = vrot.lane.b32.xlu0 %v4756, 64
        %v4803 = vpop.permute.xlu0 %4802
        %4804 = vrot.lane.b32.xlu0 %v4757, 64
        %v4805 = vpop.permute.xlu0 %4804
        %v4806 = vsel %vm2029, %v4775, 0
        %v4808 = vsel %vm2029, %v4777, 0
        %v4810 = vsel %vm2029, %v4779, 0
        %v4812 = vsel %vm2029, %v4781, 0
        %v4814 = vsel %vm2029, %v4783, 0
        %v4816 = vsel %vm2029, %v4785, 0
        %v4818 = vsel %vm2029, %v4787, 0
        %v4820 = vsel %vm2029, %v4789, 0
        %v4822 = vsel %vm2029, %v4791, 0
        %v4824 = vsel %vm2029, %v4793, 0
        %v4826 = vsel %vm2029, %v4795, 0
        %v4828 = vsel %vm2029, %v4797, 0
        %v4830 = vsel %vm2029, %v4799, 0
        %v4832 = vsel %vm2029, %v4801, 0
        %v4834 = vsel %vm2029, %v4803, 0
        %v4836 = vsel %vm2029, %v4805, 0
        %4838 = vmatprep.subr.mxu0 0.0
        %4839 = vmatpush1.msra.mxu0 %v928
        %4840 = vmatprep.subr.mxu0 0.0
        %4841 = vmatpush1.msra.mxu0 %v929
        %4842 = vmatprep.subr.mxu0 0.0
        %4843 = vmatpush1.msra.mxu0 %v930
        %4844 = vmatprep.subr.mxu0 0.0
        %4845 = vmatpush1.msra.mxu0 %v931
        %4846 = vmatprep.subr.mxu0 0.0
        %4847 = vmatpush1.msra.mxu0 0.0
        %4848 = vmatprep.subr.mxu0 0.0
        %4849 = vmatpush1.msra.mxu0 0.0
        %4850 = vmatprep.subr.mxu0 0.0
        %4851 = vmatpush1.msra.mxu0 0.0
        %4852 = vmatprep.subr.mxu0 0.0
        %4853 = vmatpush1.msra.mxu0 0.0
        %4854 = vmatprep.subr.mxu0 0.0
        %4855 = vmatpush1.msra.mxu0 0.0
        %4856 = vmatprep.subr.mxu0 0.0
        %4857 = vmatpush1.msra.mxu0 0.0
        %4858 = vmatprep.subr.mxu0 0.0
        %4859 = vmatpush1.msra.mxu0 0.0
        %4860 = vmatprep.subr.mxu0 0.0
        %4861 = vmatpush1.msra.mxu0 0.0
        %4862 = vmatprep.subr.mxu0 0.0
        %4863 = vmatpush1.msra.mxu0 0.0
        %4864 = vmatprep.subr.mxu0 0.0
        %4865 = vmatpush1.msra.mxu0 0.0
        %4866 = vmatprep.subr.mxu0 0.0
        %4867 = vmatpush1.msra.mxu0 0.0
        %4868 = vmatprep.subr.mxu0 0.0
        %4869 = vmatpush1.msra.mxu0 0.0
        %4870 = vmatprep.subr.mxu0 0.0
        %4871 = vmatpush1.msra.mxu0 0.0
        %4872 = vmatprep.subr.mxu0 0.0
        %4873 = vmatpush1.msra.mxu0 0.0
        %4874 = vmatprep.subr.mxu0 0.0
        %4875 = vmatpush1.msra.mxu0 0.0
        %4876 = vmatprep.subr.mxu0 0.0
        %4877 = vmatpush1.msra.mxu0 0.0
        %4878 = vmatprep.subr.mxu0 0.0
        %4879 = vmatpush1.msra.mxu0 0.0
        %4880 = vmatprep.subr.mxu0 0.0
        %4881 = vmatpush1.msra.mxu0 0.0
        %4882 = vmatprep.subr.mxu0 0.0
        %4883 = vmatpush1.msra.mxu0 0.0
        %4884 = vmatprep.subr.mxu0 0.0
        %4885 = vmatpush1.msra.mxu0 0.0
        %4886 = vmatprep.subr.mxu0 0.0
        %4887 = vmatpush1.msra.mxu0 0.0
        %4888 = vmatprep.subr.mxu0 0.0
        %4889 = vmatpush1.msra.mxu0 0.0
        %4890 = vmatprep.subr.mxu0 0.0
        %4891 = vmatpush1.msra.mxu0 0.0
        %4892 = vmatprep.subr.mxu0 0.0
        %4893 = vmatpush1.msra.mxu0 0.0
        %4894 = vmatprep.subr.mxu0 0.0
        %4895 = vmatpush1.msra.mxu0 0.0
        %4896 = vmatprep.subr.mxu0 0.0
        %4897 = vmatpush1.msra.mxu0 0.0
        %4898 = vmatprep.subr.mxu0 0.0
        %4899 = vmatpush1.msra.mxu0 0.0
        %4900 = vmatprep.subr.mxu0 0.0
        %4901 = vmatpush1.msra.mxu0 0.0
        %4902 = vmatprep.mubr.f32.mxu0 0.0
        %4903 = vmatmul.mubr.f32.gmra.mrb[0].mxu0 %v4806
        %v4904 = vpop.f32.mrb[0].mxu0
        %v4905 = vadd.f32 0.0, %v4904
        %v4906 = vpop.f32.mrb[0].mxu0
        %4907 = vmatprep.mubr.f32.mxu0 0.0
        %4908 = vmatmul.mubr.f32.gmra.mrb[0].mxu0 %v4808
        %v4909 = vpop.f32.mrb[0].mxu0
        %v4910 = vadd.f32 0.0, %v4909
        %v4911 = vpop.f32.mrb[0].mxu0
        %4912 = vmatprep.mubr.f32.mxu0 0.0
        %4913 = vmatmul.mubr.f32.gmra.mrb[0].mxu0 %v4810
        %v4914 = vpop.f32.mrb[0].mxu0
        %v4915 = vadd.f32 0.0, %v4914
        %v4916 = vpop.f32.mrb[0].mxu0
        %4917 = vmatprep.mubr.f32.mxu0 0.0
        %4918 = vmatmul.mubr.f32.gmra.mrb[0].mxu0 %v4812
        %v4919 = vpop.f32.mrb[0].mxu0
        %v4920 = vadd.f32 0.0, %v4919
        %v4921 = vpop.f32.mrb[0].mxu0
        %4922 = vmatprep.mubr.f32.mxu0 0.0
        %4923 = vmatmul.mubr.f32.gmra.mrb[0].mxu0 %v4814
        %v4924 = vpop.f32.mrb[0].mxu0
        %v4925 = vadd.f32 0.0, %v4924
        %v4926 = vpop.f32.mrb[0].mxu0
        %4927 = vmatprep.mubr.f32.mxu0 0.0
        %4928 = vmatmul.mubr.f32.gmra.mrb[0].mxu0 %v4816
        %v4929 = vpop.f32.mrb[0].mxu0
        %v4930 = vadd.f32 0.0, %v4929
        %v4931 = vpop.f32.mrb[0].mxu0
        %4932 = vmatprep.mubr.f32.mxu0 0.0
        %4933 = vmatmul.mubr.f32.gmra.mrb[0].mxu0 %v4818
        %v4934 = vpop.f32.mrb[0].mxu0
        %v4935 = vadd.f32 0.0, %v4934
        %v4936 = vpop.f32.mrb[0].mxu0
        %4937 = vmatprep.mubr.f32.mxu0 0.0
        %4938 = vmatmul.mubr.f32.gmra.mrb[0].mxu0 %v4820
        %v4939 = vpop.f32.mrb[0].mxu0
        %v4940 = vadd.f32 0.0, %v4939
        %v4941 = vpop.f32.mrb[0].mxu0
        %4942 = vmatprep.mubr.f32.mxu0 0.0
        %4943 = vmatmul.mubr.f32.gmra.mrb[0].mxu0 %v4822
        %v4944 = vpop.f32.mrb[0].mxu0
        %v4945 = vadd.f32 0.0, %v4944
        %v4946 = vpop.f32.mrb[0].mxu0
        %4947 = vmatprep.mubr.f32.mxu0 0.0
        %4948 = vmatmul.mubr.f32.gmra.mrb[0].mxu0 %v4824
        %v4949 = vpop.f32.mrb[0].mxu0
        %v4950 = vadd.f32 0.0, %v4949
        %v4951 = vpop.f32.mrb[0].mxu0
        %4952 = vmatprep.mubr.f32.mxu0 0.0
        %4953 = vmatmul.mubr.f32.gmra.mrb[0].mxu0 %v4826
        %v4954 = vpop.f32.mrb[0].mxu0
        %v4955 = vadd.f32 0.0, %v4954
        %v4956 = vpop.f32.mrb[0].mxu0
        %4957 = vmatprep.mubr.f32.mxu0 0.0
        %4958 = vmatmul.mubr.f32.gmra.mrb[0].mxu0 %v4828
        %v4959 = vpop.f32.mrb[0].mxu0
        %v4960 = vadd.f32 0.0, %v4959
        %v4961 = vpop.f32.mrb[0].mxu0
        %4962 = vmatprep.mubr.f32.mxu0 0.0
        %4963 = vmatmul.mubr.f32.gmra.mrb[0].mxu0 %v4830
        %v4964 = vpop.f32.mrb[0].mxu0
        %v4965 = vadd.f32 0.0, %v4964
        %v4966 = vpop.f32.mrb[0].mxu0
        %4967 = vmatprep.mubr.f32.mxu0 0.0
        %4968 = vmatmul.mubr.f32.gmra.mrb[0].mxu0 %v4832
        %v4969 = vpop.f32.mrb[0].mxu0
        %v4970 = vadd.f32 0.0, %v4969
        %v4971 = vpop.f32.mrb[0].mxu0
        %4972 = vmatprep.mubr.f32.mxu0 0.0
        %4973 = vmatmul.mubr.f32.gmra.mrb[0].mxu0 %v4834
        %v4974 = vpop.f32.mrb[0].mxu0
        %v4975 = vadd.f32 0.0, %v4974
        %v4976 = vpop.f32.mrb[0].mxu0
        %4977 = vmatprep.mubr.f32.mxu0 0.0
        %4978 = vmatmul.mubr.f32.gmra.mrb[0].mxu0 %v4836
        %v4979 = vpop.f32.mrb[0].mxu0
        %v4980 = vadd.f32 0.0, %v4979
        %v4981 = vpop.f32.mrb[0].mxu0
        %4982 = vdwg.mxu0
        %v4983 = vadd.f32 %v1791, %v4905
        %v4984 = vadd.f32 %v1796, %v4910
        %v4985 = vadd.f32 %v1801, %v4915
        %v4986 = vadd.f32 %v1806, %v4920
        %v4987 = vadd.f32 %v1811, %v4925
        %v4988 = vadd.f32 %v1816, %v4930
        %v4989 = vadd.f32 %v1821, %v4935
        %v4990 = vadd.f32 %v1826, %v4940
        %v4991 = vadd.f32 %v1831, %v4945
        %v4992 = vadd.f32 %v1836, %v4950
        %v4993 = vadd.f32 %v1841, %v4955
        %v4994 = vadd.f32 %v1846, %v4960
        %v4995 = vadd.f32 %v1851, %v4965
        %v4996 = vadd.f32 %v1856, %v4970
        %v4997 = vadd.f32 %v1861, %v4975
        %v4998 = vadd.f32 %v1866, %v4980
        %v4999 = vtanh.pop %v4983
        %v5000 = vtanh.pop %v4984
        %v5001 = vtanh.pop %v4985
        %v5002 = vtanh.pop %v4986
        %v5003 = vtanh.pop %v4987
        %v5004 = vtanh.pop %v4988
        %v5005 = vtanh.pop %v4989
        %v5006 = vtanh.pop %v4990
        %v5007 = vtanh.pop %v4991
        %v5008 = vtanh.pop %v4992
        %v5009 = vtanh.pop %v4993
        %v5010 = vtanh.pop %v4994
        %v5011 = vtanh.pop %v4995
        %v5012 = vtanh.pop %v4996
        %v5013 = vtanh.pop %v4997
        %v5014 = vtanh.pop %v4998
        %v5015 = vadd.f32 %v4999, 1.0
        %v5016 = vadd.f32 %v5000, 1.0
        %v5017 = vadd.f32 %v5001, 1.0
        %v5018 = vadd.f32 %v5002, 1.0
        %v5019 = vadd.f32 %v5003, 1.0
        %v5020 = vadd.f32 %v5004, 1.0
        %v5021 = vadd.f32 %v5005, 1.0
        %v5022 = vadd.f32 %v5006, 1.0
        %v5023 = vadd.f32 %v5007, 1.0
        %v5024 = vadd.f32 %v5008, 1.0
        %v5025 = vadd.f32 %v5009, 1.0
        %v5026 = vadd.f32 %v5010, 1.0
        %v5027 = vadd.f32 %v5011, 1.0
        %v5028 = vadd.f32 %v5012, 1.0
        %v5029 = vadd.f32 %v5013, 1.0
        %v5030 = vadd.f32 %v5014, 1.0
        %v5031 = vmul.f32 %v5015, 0.5
        %v5032 = vmul.f32 %v5016, 0.5
        %v5033 = vmul.f32 %v5017, 0.5
        %v5034 = vmul.f32 %v5018, 0.5
        %v5035 = vmul.f32 %v5019, 0.5
        %v5036 = vmul.f32 %v5020, 0.5
        %v5037 = vmul.f32 %v5021, 0.5
        %v5038 = vmul.f32 %v5022, 0.5
        %v5039 = vmul.f32 %v5023, 0.5
        %v5040 = vmul.f32 %v5024, 0.5
        %v5041 = vmul.f32 %v5025, 0.5
        %v5042 = vmul.f32 %v5026, 0.5
        %v5043 = vmul.f32 %v5027, 0.5
        %v5044 = vmul.f32 %v5028, 0.5
        %v5045 = vmul.f32 %v5029, 0.5
        %v5046 = vmul.f32 %v5030, 0.5
        %v5047 = vmul.f32 %v5031, %v4646
        %v5048 = vmul.f32 %v5032, %v4647
        %v5049 = vmul.f32 %v5033, %v4648
        %v5050 = vmul.f32 %v5034, %v4649
        %v5051 = vmul.f32 %v5035, %v4650
        %v5052 = vmul.f32 %v5036, %v4651
        %v5053 = vmul.f32 %v5037, %v4652
        %v5054 = vmul.f32 %v5038, %v4653
        %v5055 = vmul.f32 %v5039, %v4654
        %v5056 = vmul.f32 %v5040, %v4655
        %v5057 = vmul.f32 %v5041, %v4656
        %v5058 = vmul.f32 %v5042, %v4657
        %v5059 = vmul.f32 %v5043, %v4658
        %v5060 = vmul.f32 %v5044, %v4659
        %v5061 = vmul.f32 %v5045, %v4660
        %v5062 = vmul.f32 %v5046, %v4661
        %5079 = vrot.lane.b32.xlu0 %v4999, 32
        %v5080 = vpop.permute.xlu0 %5079
        %5081 = vrot.lane.b32.xlu0 %v5000, 32
        %v5082 = vpop.permute.xlu0 %5081
        %5083 = vrot.lane.b32.xlu0 %v5001, 32
        %v5084 = vpop.permute.xlu0 %5083
        %5085 = vrot.lane.b32.xlu0 %v5002, 32
        %v5086 = vpop.permute.xlu0 %5085
        %5087 = vrot.lane.b32.xlu0 %v5003, 32
        %v5088 = vpop.permute.xlu0 %5087
        %5089 = vrot.lane.b32.xlu0 %v5004, 32
        %v5090 = vpop.permute.xlu0 %5089
        %5091 = vrot.lane.b32.xlu0 %v5005, 32
        %v5092 = vpop.permute.xlu0 %5091
        %5093 = vrot.lane.b32.xlu0 %v5006, 32
        %v5094 = vpop.permute.xlu0 %5093
        %5095 = vrot.lane.b32.xlu0 %v5007, 32
        %v5096 = vpop.permute.xlu0 %5095
        %5097 = vrot.lane.b32.xlu0 %v5008, 32
        %v5098 = vpop.permute.xlu0 %5097
        %5099 = vrot.lane.b32.xlu0 %v5009, 32
        %v5100 = vpop.permute.xlu0 %5099
        %5101 = vrot.lane.b32.xlu0 %v5010, 32
        %v5102 = vpop.permute.xlu0 %5101
        %5103 = vrot.lane.b32.xlu0 %v5011, 32
        %v5104 = vpop.permute.xlu0 %5103
        %5105 = vrot.lane.b32.xlu0 %v5012, 32
        %v5106 = vpop.permute.xlu0 %5105
        %5107 = vrot.lane.b32.xlu0 %v5013, 32
        %v5108 = vpop.permute.xlu0 %5107
        %5109 = vrot.lane.b32.xlu0 %v5014, 32
        %v5110 = vpop.permute.xlu0 %5109
        %v5127 = vmul.f32 %v5031, %v5080
        %v5128 = vmul.f32 %v5032, %v5082
        %v5129 = vmul.f32 %v5033, %v5084
        %v5130 = vmul.f32 %v5034, %v5086
        %v5131 = vmul.f32 %v5035, %v5088
        %v5132 = vmul.f32 %v5036, %v5090
        %v5133 = vmul.f32 %v5037, %v5092
        %v5134 = vmul.f32 %v5038, %v5094
        %v5135 = vmul.f32 %v5039, %v5096
        %v5136 = vmul.f32 %v5040, %v5098
        %v5137 = vmul.f32 %v5041, %v5100
        %v5138 = vmul.f32 %v5042, %v5102
        %v5139 = vmul.f32 %v5043, %v5104
        %v5140 = vmul.f32 %v5044, %v5106
        %v5141 = vmul.f32 %v5045, %v5108
        %v5142 = vmul.f32 %v5046, %v5110
        %5159 = vrot.lane.b32.xlu0 %v5127, 32
        %v5160 = vpop.permute.xlu0 %5159
        %5161 = vrot.lane.b32.xlu0 %v5128, 32
        %v5162 = vpop.permute.xlu0 %5161
        %5163 = vrot.lane.b32.xlu0 %v5129, 32
        %v5164 = vpop.permute.xlu0 %5163
        %5165 = vrot.lane.b32.xlu0 %v5130, 32
        %v5166 = vpop.permute.xlu0 %5165
        %5167 = vrot.lane.b32.xlu0 %v5131, 32
        %v5168 = vpop.permute.xlu0 %5167
        %5169 = vrot.lane.b32.xlu0 %v5132, 32
        %v5170 = vpop.permute.xlu0 %5169
        %5171 = vrot.lane.b32.xlu0 %v5133, 32
        %v5172 = vpop.permute.xlu0 %5171
        %5173 = vrot.lane.b32.xlu0 %v5134, 32
        %v5174 = vpop.permute.xlu0 %5173
        %5175 = vrot.lane.b32.xlu0 %v5135, 32
        %v5176 = vpop.permute.xlu0 %5175
        %5177 = vrot.lane.b32.xlu0 %v5136, 32
        %v5178 = vpop.permute.xlu0 %5177
        %5179 = vrot.lane.b32.xlu0 %v5137, 32
        %v5180 = vpop.permute.xlu0 %5179
        %5181 = vrot.lane.b32.xlu0 %v5138, 32
        %v5182 = vpop.permute.xlu0 %5181
        %5183 = vrot.lane.b32.xlu0 %v5139, 32
        %v5184 = vpop.permute.xlu0 %5183
        %5185 = vrot.lane.b32.xlu0 %v5140, 32
        %v5186 = vpop.permute.xlu0 %5185
        %5187 = vrot.lane.b32.xlu0 %v5141, 32
        %v5188 = vpop.permute.xlu0 %5187
        %5189 = vrot.lane.b32.xlu0 %v5142, 32
        %v5190 = vpop.permute.xlu0 %5189
        %v5207 = vadd.f32 %v5047, %v5160
        %v5208 = vadd.f32 %v5048, %v5162
        %v5209 = vadd.f32 %v5049, %v5164
        %v5210 = vadd.f32 %v5050, %v5166
        %v5211 = vadd.f32 %v5051, %v5168
        %v5212 = vadd.f32 %v5052, %v5170
        %v5213 = vadd.f32 %v5053, %v5172
        %v5214 = vadd.f32 %v5054, %v5174
        %v5215 = vadd.f32 %v5055, %v5176
        %v5216 = vadd.f32 %v5056, %v5178
        %v5217 = vadd.f32 %v5057, %v5180
        %v5218 = vadd.f32 %v5058, %v5182
        %v5219 = vadd.f32 %v5059, %v5184
        %v5220 = vadd.f32 %v5060, %v5186
        %v5221 = vadd.f32 %v5061, %v5188
        %v5222 = vadd.f32 %v5062, %v5190
        %v5223 = vtanh.pop %v5207
        %v5224 = vtanh.pop %v5208
        %v5225 = vtanh.pop %v5209
        %v5226 = vtanh.pop %v5210
        %v5227 = vtanh.pop %v5211
        %v5228 = vtanh.pop %v5212
        %v5229 = vtanh.pop %v5213
        %v5230 = vtanh.pop %v5214
        %v5231 = vtanh.pop %v5215
        %v5232 = vtanh.pop %v5216
        %v5233 = vtanh.pop %v5217
        %v5234 = vtanh.pop %v5218
        %v5235 = vtanh.pop %v5219
        %v5236 = vtanh.pop %v5220
        %v5237 = vtanh.pop %v5221
        %v5238 = vtanh.pop %v5222
        %5255 = vrot.lane.b32.xlu0 %v5223, 32
        %v5256 = vpop.permute.xlu0 %5255
        %5257 = vrot.lane.b32.xlu0 %v5224, 32
        %v5258 = vpop.permute.xlu0 %5257
        %5259 = vrot.lane.b32.xlu0 %v5225, 32
        %v5260 = vpop.permute.xlu0 %5259
        %5261 = vrot.lane.b32.xlu0 %v5226, 32
        %v5262 = vpop.permute.xlu0 %5261
        %5263 = vrot.lane.b32.xlu0 %v5227, 32
        %v5264 = vpop.permute.xlu0 %5263
        %5265 = vrot.lane.b32.xlu0 %v5228, 32
        %v5266 = vpop.permute.xlu0 %5265
        %5267 = vrot.lane.b32.xlu0 %v5229, 32
        %v5268 = vpop.permute.xlu0 %5267
        %5269 = vrot.lane.b32.xlu0 %v5230, 32
        %v5270 = vpop.permute.xlu0 %5269
        %5271 = vrot.lane.b32.xlu0 %v5231, 32
        %v5272 = vpop.permute.xlu0 %5271
        %5273 = vrot.lane.b32.xlu0 %v5232, 32
        %v5274 = vpop.permute.xlu0 %5273
        %5275 = vrot.lane.b32.xlu0 %v5233, 32
        %v5276 = vpop.permute.xlu0 %5275
        %5277 = vrot.lane.b32.xlu0 %v5234, 32
        %v5278 = vpop.permute.xlu0 %5277
        %5279 = vrot.lane.b32.xlu0 %v5235, 32
        %v5280 = vpop.permute.xlu0 %5279
        %5281 = vrot.lane.b32.xlu0 %v5236, 32
        %v5282 = vpop.permute.xlu0 %5281
        %5283 = vrot.lane.b32.xlu0 %v5237, 32
        %v5284 = vpop.permute.xlu0 %5283
        %5285 = vrot.lane.b32.xlu0 %v5238, 32
        %v5286 = vpop.permute.xlu0 %5285
        %v5303 = vmul.f32 %v5031, %v5256
        %v5304 = vmul.f32 %v5032, %v5258
        %v5305 = vmul.f32 %v5033, %v5260
        %v5306 = vmul.f32 %v5034, %v5262
        %v5307 = vmul.f32 %v5035, %v5264
        %v5308 = vmul.f32 %v5036, %v5266
        %v5309 = vmul.f32 %v5037, %v5268
        %v5310 = vmul.f32 %v5038, %v5270
        %v5311 = vmul.f32 %v5039, %v5272
        %v5312 = vmul.f32 %v5040, %v5274
        %v5313 = vmul.f32 %v5041, %v5276
        %v5314 = vmul.f32 %v5042, %v5278
        %v5315 = vmul.f32 %v5043, %v5280
        %v5316 = vmul.f32 %v5044, %v5282
        %v5317 = vmul.f32 %v5045, %v5284
        %v5318 = vmul.f32 %v5046, %v5286
        %5335 = vrot.lane.b32.xlu0 %v5303, 64
        %v5336 = vpop.permute.xlu0 %5335
        %5337 = vrot.lane.b32.xlu0 %v5304, 64
        %v5338 = vpop.permute.xlu0 %5337
        %5339 = vrot.lane.b32.xlu0 %v5305, 64
        %v5340 = vpop.permute.xlu0 %5339
        %5341 = vrot.lane.b32.xlu0 %v5306, 64
        %v5342 = vpop.permute.xlu0 %5341
        %5343 = vrot.lane.b32.xlu0 %v5307, 64
        %v5344 = vpop.permute.xlu0 %5343
        %5345 = vrot.lane.b32.xlu0 %v5308, 64
        %v5346 = vpop.permute.xlu0 %5345
        %5347 = vrot.lane.b32.xlu0 %v5309, 64
        %v5348 = vpop.permute.xlu0 %5347
        %5349 = vrot.lane.b32.xlu0 %v5310, 64
        %v5350 = vpop.permute.xlu0 %5349
        %5351 = vrot.lane.b32.xlu0 %v5311, 64
        %v5352 = vpop.permute.xlu0 %5351
        %5353 = vrot.lane.b32.xlu0 %v5312, 64
        %v5354 = vpop.permute.xlu0 %5353
        %5355 = vrot.lane.b32.xlu0 %v5313, 64
        %v5356 = vpop.permute.xlu0 %5355
        %5357 = vrot.lane.b32.xlu0 %v5314, 64
        %v5358 = vpop.permute.xlu0 %5357
        %5359 = vrot.lane.b32.xlu0 %v5315, 64
        %v5360 = vpop.permute.xlu0 %5359
        %5361 = vrot.lane.b32.xlu0 %v5316, 64
        %v5362 = vpop.permute.xlu0 %5361
        %5363 = vrot.lane.b32.xlu0 %v5317, 64
        %v5364 = vpop.permute.xlu0 %5363
        %5365 = vrot.lane.b32.xlu0 %v5318, 64
        %v5366 = vpop.permute.xlu0 %5365
        %v5367 = vsel %vm2029, %v5336, 0
        %v5369 = vsel %vm2029, %v5338, 0
        %v5371 = vsel %vm2029, %v5340, 0
        %v5373 = vsel %vm2029, %v5342, 0
        %v5375 = vsel %vm2029, %v5344, 0
        %v5377 = vsel %vm2029, %v5346, 0
        %v5379 = vsel %vm2029, %v5348, 0
        %v5381 = vsel %vm2029, %v5350, 0
        %v5383 = vsel %vm2029, %v5352, 0
        %v5385 = vsel %vm2029, %v5354, 0
        %v5387 = vsel %vm2029, %v5356, 0
        %v5389 = vsel %vm2029, %v5358, 0
        %v5391 = vsel %vm2029, %v5360, 0
        %v5393 = vsel %vm2029, %v5362, 0
        %v5395 = vsel %vm2029, %v5364, 0
        %v5397 = vsel %vm2029, %v5366, 0
        %5399 = vmatprep.subr.mxu0 0.0
        %5400 = vmatpush1.msra.mxu0 %v928
        %5401 = vmatprep.subr.mxu0 0.0
        %5402 = vmatpush1.msra.mxu0 %v929
        %5403 = vmatprep.subr.mxu0 0.0
        %5404 = vmatpush1.msra.mxu0 %v930
        %5405 = vmatprep.subr.mxu0 0.0
        %5406 = vmatpush1.msra.mxu0 %v931
        %5407 = vmatprep.subr.mxu0 0.0
        %5408 = vmatpush1.msra.mxu0 0.0
        %5409 = vmatprep.subr.mxu0 0.0
        %5410 = vmatpush1.msra.mxu0 0.0
        %5411 = vmatprep.subr.mxu0 0.0
        %5412 = vmatpush1.msra.mxu0 0.0
        %5413 = vmatprep.subr.mxu0 0.0
        %5414 = vmatpush1.msra.mxu0 0.0
        %5415 = vmatprep.subr.mxu0 0.0
        %5416 = vmatpush1.msra.mxu0 0.0
        %5417 = vmatprep.subr.mxu0 0.0
        %5418 = vmatpush1.msra.mxu0 0.0
        %5419 = vmatprep.subr.mxu0 0.0
        %5420 = vmatpush1.msra.mxu0 0.0
        %5421 = vmatprep.subr.mxu0 0.0
        %5422 = vmatpush1.msra.mxu0 0.0
        %5423 = vmatprep.subr.mxu0 0.0
        %5424 = vmatpush1.msra.mxu0 0.0
        %5425 = vmatprep.subr.mxu0 0.0
        %5426 = vmatpush1.msra.mxu0 0.0
        %5427 = vmatprep.subr.mxu0 0.0
        %5428 = vmatpush1.msra.mxu0 0.0
        %5429 = vmatprep.subr.mxu0 0.0
        %5430 = vmatpush1.msra.mxu0 0.0
        %5431 = vmatprep.subr.mxu0 0.0
        %5432 = vmatpush1.msra.mxu0 0.0
        %5433 = vmatprep.subr.mxu0 0.0
        %5434 = vmatpush1.msra.mxu0 0.0
        %5435 = vmatprep.subr.mxu0 0.0
        %5436 = vmatpush1.msra.mxu0 0.0
        %5437 = vmatprep.subr.mxu0 0.0
        %5438 = vmatpush1.msra.mxu0 0.0
        %5439 = vmatprep.subr.mxu0 0.0
        %5440 = vmatpush1.msra.mxu0 0.0
        %5441 = vmatprep.subr.mxu0 0.0
        %5442 = vmatpush1.msra.mxu0 0.0
        %5443 = vmatprep.subr.mxu0 0.0
        %5444 = vmatpush1.msra.mxu0 0.0
        %5445 = vmatprep.subr.mxu0 0.0
        %5446 = vmatpush1.msra.mxu0 0.0
        %5447 = vmatprep.subr.mxu0 0.0
        %5448 = vmatpush1.msra.mxu0 0.0
        %5449 = vmatprep.subr.mxu0 0.0
        %5450 = vmatpush1.msra.mxu0 0.0
        %5451 = vmatprep.subr.mxu0 0.0
        %5452 = vmatpush1.msra.mxu0 0.0
        %5453 = vmatprep.subr.mxu0 0.0
        %5454 = vmatpush1.msra.mxu0 0.0
        %5455 = vmatprep.subr.mxu0 0.0
        %5456 = vmatpush1.msra.mxu0 0.0
        %5457 = vmatprep.subr.mxu0 0.0
        %5458 = vmatpush1.msra.mxu0 0.0
        %5459 = vmatprep.subr.mxu0 0.0
        %5460 = vmatpush1.msra.mxu0 0.0
        %5461 = vmatprep.subr.mxu0 0.0
        %5462 = vmatpush1.msra.mxu0 0.0
        %5463 = vmatprep.mubr.f32.mxu0 0.0
        %5464 = vmatmul.mubr.f32.gmra.mrb[0].mxu0 %v5367
        %v5465 = vpop.f32.mrb[0].mxu0
        %v5466 = vadd.f32 0.0, %v5465
        %v5467 = vpop.f32.mrb[0].mxu0
        %5468 = vmatprep.mubr.f32.mxu0 0.0
        %5469 = vmatmul.mubr.f32.gmra.mrb[0].mxu0 %v5369
        %v5470 = vpop.f32.mrb[0].mxu0
        %v5471 = vadd.f32 0.0, %v5470
        %v5472 = vpop.f32.mrb[0].mxu0
        %5473 = vmatprep.mubr.f32.mxu0 0.0
        %5474 = vmatmul.mubr.f32.gmra.mrb[0].mxu0 %v5371
        %v5475 = vpop.f32.mrb[0].mxu0
        %v5476 = vadd.f32 0.0, %v5475
        %v5477 = vpop.f32.mrb[0].mxu0
        %5478 = vmatprep.mubr.f32.mxu0 0.0
        %5479 = vmatmul.mubr.f32.gmra.mrb[0].mxu0 %v5373
        %v5480 = vpop.f32.mrb[0].mxu0
        %v5481 = vadd.f32 0.0, %v5480
        %v5482 = vpop.f32.mrb[0].mxu0
        %5483 = vmatprep.mubr.f32.mxu0 0.0
        %5484 = vmatmul.mubr.f32.gmra.mrb[0].mxu0 %v5375
        %v5485 = vpop.f32.mrb[0].mxu0
        %v5486 = vadd.f32 0.0, %v5485
        %v5487 = vpop.f32.mrb[0].mxu0
        %5488 = vmatprep.mubr.f32.mxu0 0.0
        %5489 = vmatmul.mubr.f32.gmra.mrb[0].mxu0 %v5377
        %v5490 = vpop.f32.mrb[0].mxu0
        %v5491 = vadd.f32 0.0, %v5490
        %v5492 = vpop.f32.mrb[0].mxu0
        %5493 = vmatprep.mubr.f32.mxu0 0.0
        %5494 = vmatmul.mubr.f32.gmra.mrb[0].mxu0 %v5379
        %v5495 = vpop.f32.mrb[0].mxu0
        %v5496 = vadd.f32 0.0, %v5495
        %v5497 = vpop.f32.mrb[0].mxu0
        %5498 = vmatprep.mubr.f32.mxu0 0.0
        %5499 = vmatmul.mubr.f32.gmra.mrb[0].mxu0 %v5381
        %v5500 = vpop.f32.mrb[0].mxu0
        %v5501 = vadd.f32 0.0, %v5500
        %v5502 = vpop.f32.mrb[0].mxu0
        %5503 = vmatprep.mubr.f32.mxu0 0.0
        %5504 = vmatmul.mubr.f32.gmra.mrb[0].mxu0 %v5383
        %v5505 = vpop.f32.mrb[0].mxu0
        %v5506 = vadd.f32 0.0, %v5505
        %v5507 = vpop.f32.mrb[0].mxu0
        %5508 = vmatprep.mubr.f32.mxu0 0.0
        %5509 = vmatmul.mubr.f32.gmra.mrb[0].mxu0 %v5385
        %v5510 = vpop.f32.mrb[0].mxu0
        %v5511 = vadd.f32 0.0, %v5510
        %v5512 = vpop.f32.mrb[0].mxu0
        %5513 = vmatprep.mubr.f32.mxu0 0.0
        %5514 = vmatmul.mubr.f32.gmra.mrb[0].mxu0 %v5387
        %v5515 = vpop.f32.mrb[0].mxu0
        %v5516 = vadd.f32 0.0, %v5515
        %v5517 = vpop.f32.mrb[0].mxu0
        %5518 = vmatprep.mubr.f32.mxu0 0.0
        %5519 = vmatmul.mubr.f32.gmra.mrb[0].mxu0 %v5389
        %v5520 = vpop.f32.mrb[0].mxu0
        %v5521 = vadd.f32 0.0, %v5520
        %v5522 = vpop.f32.mrb[0].mxu0
        %5523 = vmatprep.mubr.f32.mxu0 0.0
        %5524 = vmatmul.mubr.f32.gmra.mrb[0].mxu0 %v5391
        %v5525 = vpop.f32.mrb[0].mxu0
        %v5526 = vadd.f32 0.0, %v5525
        %v5527 = vpop.f32.mrb[0].mxu0
        %5528 = vmatprep.mubr.f32.mxu0 0.0
        %5529 = vmatmul.mubr.f32.gmra.mrb[0].mxu0 %v5393
        %v5530 = vpop.f32.mrb[0].mxu0
        %v5531 = vadd.f32 0.0, %v5530
        %v5532 = vpop.f32.mrb[0].mxu0
        %5533 = vmatprep.mubr.f32.mxu0 0.0
        %5534 = vmatmul.mubr.f32.gmra.mrb[0].mxu0 %v5395
        %v5535 = vpop.f32.mrb[0].mxu0
        %v5536 = vadd.f32 0.0, %v5535
        %v5537 = vpop.f32.mrb[0].mxu0
        %5538 = vmatprep.mubr.f32.mxu0 0.0
        %5539 = vmatmul.mubr.f32.gmra.mrb[0].mxu0 %v5397
        %v5540 = vpop.f32.mrb[0].mxu0
        %v5541 = vadd.f32 0.0, %v5540
        %v5542 = vpop.f32.mrb[0].mxu0
        %5543 = vdwg.mxu0
        %v5544 = vadd.f32 %v1871, %v5466
        %v5545 = vadd.f32 %v1876, %v5471
        %v5546 = vadd.f32 %v1881, %v5476
        %v5547 = vadd.f32 %v1886, %v5481
        %v5548 = vadd.f32 %v1891, %v5486
        %v5549 = vadd.f32 %v1896, %v5491
        %v5550 = vadd.f32 %v1901, %v5496
        %v5551 = vadd.f32 %v1906, %v5501
        %v5552 = vadd.f32 %v1911, %v5506
        %v5553 = vadd.f32 %v1916, %v5511
        %v5554 = vadd.f32 %v1921, %v5516
        %v5555 = vadd.f32 %v1926, %v5521
        %v5556 = vadd.f32 %v1931, %v5526
        %v5557 = vadd.f32 %v1936, %v5531
        %v5558 = vadd.f32 %v1941, %v5536
        %v5559 = vadd.f32 %v1946, %v5541
        %v5560 = vtanh.pop %v5544
        %v5561 = vtanh.pop %v5545
        %v5562 = vtanh.pop %v5546
        %v5563 = vtanh.pop %v5547
        %v5564 = vtanh.pop %v5548
        %v5565 = vtanh.pop %v5549
        %v5566 = vtanh.pop %v5550
        %v5567 = vtanh.pop %v5551
        %v5568 = vtanh.pop %v5552
        %v5569 = vtanh.pop %v5553
        %v5570 = vtanh.pop %v5554
        %v5571 = vtanh.pop %v5555
        %v5572 = vtanh.pop %v5556
        %v5573 = vtanh.pop %v5557
        %v5574 = vtanh.pop %v5558
        %v5575 = vtanh.pop %v5559
        %v5576 = vadd.f32 %v5560, 1.0
        %v5577 = vadd.f32 %v5561, 1.0
        %v5578 = vadd.f32 %v5562, 1.0
        %v5579 = vadd.f32 %v5563, 1.0
        %v5580 = vadd.f32 %v5564, 1.0
        %v5581 = vadd.f32 %v5565, 1.0
        %v5582 = vadd.f32 %v5566, 1.0
        %v5583 = vadd.f32 %v5567, 1.0
        %v5584 = vadd.f32 %v5568, 1.0
        %v5585 = vadd.f32 %v5569, 1.0
        %v5586 = vadd.f32 %v5570, 1.0
        %v5587 = vadd.f32 %v5571, 1.0
        %v5588 = vadd.f32 %v5572, 1.0
        %v5589 = vadd.f32 %v5573, 1.0
        %v5590 = vadd.f32 %v5574, 1.0
        %v5591 = vadd.f32 %v5575, 1.0
        %v5592 = vmul.f32 %v5576, 0.5
        %v5593 = vmul.f32 %v5577, 0.5
        %v5594 = vmul.f32 %v5578, 0.5
        %v5595 = vmul.f32 %v5579, 0.5
        %v5596 = vmul.f32 %v5580, 0.5
        %v5597 = vmul.f32 %v5581, 0.5
        %v5598 = vmul.f32 %v5582, 0.5
        %v5599 = vmul.f32 %v5583, 0.5
        %v5600 = vmul.f32 %v5584, 0.5
        %v5601 = vmul.f32 %v5585, 0.5
        %v5602 = vmul.f32 %v5586, 0.5
        %v5603 = vmul.f32 %v5587, 0.5
        %v5604 = vmul.f32 %v5588, 0.5
        %v5605 = vmul.f32 %v5589, 0.5
        %v5606 = vmul.f32 %v5590, 0.5
        %v5607 = vmul.f32 %v5591, 0.5
        %v5608 = vmul.f32 %v5592, %v5207
        %v5609 = vmul.f32 %v5593, %v5208
        %v5610 = vmul.f32 %v5594, %v5209
        %v5611 = vmul.f32 %v5595, %v5210
        %v5612 = vmul.f32 %v5596, %v5211
        %v5613 = vmul.f32 %v5597, %v5212
        %v5614 = vmul.f32 %v5598, %v5213
        %v5615 = vmul.f32 %v5599, %v5214
        %v5616 = vmul.f32 %v5600, %v5215
        %v5617 = vmul.f32 %v5601, %v5216
        %v5618 = vmul.f32 %v5602, %v5217
        %v5619 = vmul.f32 %v5603, %v5218
        %v5620 = vmul.f32 %v5604, %v5219
        %v5621 = vmul.f32 %v5605, %v5220
        %v5622 = vmul.f32 %v5606, %v5221
        %v5623 = vmul.f32 %v5607, %v5222
        %5640 = vrot.lane.b32.xlu0 %v5560, 32
        %v5641 = vpop.permute.xlu0 %5640
        %5642 = vrot.lane.b32.xlu0 %v5561, 32
        %v5643 = vpop.permute.xlu0 %5642
        %5644 = vrot.lane.b32.xlu0 %v5562, 32
        %v5645 = vpop.permute.xlu0 %5644
        %5646 = vrot.lane.b32.xlu0 %v5563, 32
        %v5647 = vpop.permute.xlu0 %5646
        %5648 = vrot.lane.b32.xlu0 %v5564, 32
        %v5649 = vpop.permute.xlu0 %5648
        %5650 = vrot.lane.b32.xlu0 %v5565, 32
        %v5651 = vpop.permute.xlu0 %5650
        %5652 = vrot.lane.b32.xlu0 %v5566, 32
        %v5653 = vpop.permute.xlu0 %5652
        %5654 = vrot.lane.b32.xlu0 %v5567, 32
        %v5655 = vpop.permute.xlu0 %5654
        %5656 = vrot.lane.b32.xlu0 %v5568, 32
        %v5657 = vpop.permute.xlu0 %5656
        %5658 = vrot.lane.b32.xlu0 %v5569, 32
        %v5659 = vpop.permute.xlu0 %5658
        %5660 = vrot.lane.b32.xlu0 %v5570, 32
        %v5661 = vpop.permute.xlu0 %5660
        %5662 = vrot.lane.b32.xlu0 %v5571, 32
        %v5663 = vpop.permute.xlu0 %5662
        %5664 = vrot.lane.b32.xlu0 %v5572, 32
        %v5665 = vpop.permute.xlu0 %5664
        %5666 = vrot.lane.b32.xlu0 %v5573, 32
        %v5667 = vpop.permute.xlu0 %5666
        %5668 = vrot.lane.b32.xlu0 %v5574, 32
        %v5669 = vpop.permute.xlu0 %5668
        %5670 = vrot.lane.b32.xlu0 %v5575, 32
        %v5671 = vpop.permute.xlu0 %5670
        %v5688 = vmul.f32 %v5592, %v5641
        %v5689 = vmul.f32 %v5593, %v5643
        %v5690 = vmul.f32 %v5594, %v5645
        %v5691 = vmul.f32 %v5595, %v5647
        %v5692 = vmul.f32 %v5596, %v5649
        %v5693 = vmul.f32 %v5597, %v5651
        %v5694 = vmul.f32 %v5598, %v5653
        %v5695 = vmul.f32 %v5599, %v5655
        %v5696 = vmul.f32 %v5600, %v5657
        %v5697 = vmul.f32 %v5601, %v5659
        %v5698 = vmul.f32 %v5602, %v5661
        %v5699 = vmul.f32 %v5603, %v5663
        %v5700 = vmul.f32 %v5604, %v5665
        %v5701 = vmul.f32 %v5605, %v5667
        %v5702 = vmul.f32 %v5606, %v5669
        %v5703 = vmul.f32 %v5607, %v5671
        %5720 = vrot.lane.b32.xlu0 %v5688, 32
        %v5721 = vpop.permute.xlu0 %5720
        %5722 = vrot.lane.b32.xlu0 %v5689, 32
        %v5723 = vpop.permute.xlu0 %5722
        %5724 = vrot.lane.b32.xlu0 %v5690, 32
        %v5725 = vpop.permute.xlu0 %5724
        %5726 = vrot.lane.b32.xlu0 %v5691, 32
        %v5727 = vpop.permute.xlu0 %5726
        %5728 = vrot.lane.b32.xlu0 %v5692, 32
        %v5729 = vpop.permute.xlu0 %5728
        %5730 = vrot.lane.b32.xlu0 %v5693, 32
        %v5731 = vpop.permute.xlu0 %5730
        %5732 = vrot.lane.b32.xlu0 %v5694, 32
        %v5733 = vpop.permute.xlu0 %5732
        %5734 = vrot.lane.b32.xlu0 %v5695, 32
        %v5735 = vpop.permute.xlu0 %5734
        %5736 = vrot.lane.b32.xlu0 %v5696, 32
        %v5737 = vpop.permute.xlu0 %5736
        %5738 = vrot.lane.b32.xlu0 %v5697, 32
        %v5739 = vpop.permute.xlu0 %5738
        %5740 = vrot.lane.b32.xlu0 %v5698, 32
        %v5741 = vpop.permute.xlu0 %5740
        %5742 = vrot.lane.b32.xlu0 %v5699, 32
        %v5743 = vpop.permute.xlu0 %5742
        %5744 = vrot.lane.b32.xlu0 %v5700, 32
        %v5745 = vpop.permute.xlu0 %5744
        %5746 = vrot.lane.b32.xlu0 %v5701, 32
        %v5747 = vpop.permute.xlu0 %5746
        %5748 = vrot.lane.b32.xlu0 %v5702, 32
        %v5749 = vpop.permute.xlu0 %5748
        %5750 = vrot.lane.b32.xlu0 %v5703, 32
        %v5751 = vpop.permute.xlu0 %5750
        %v5768 = vadd.f32 %v5608, %v5721
        %v5769 = vadd.f32 %v5609, %v5723
        %v5770 = vadd.f32 %v5610, %v5725
        %v5771 = vadd.f32 %v5611, %v5727
        %v5772 = vadd.f32 %v5612, %v5729
        %v5773 = vadd.f32 %v5613, %v5731
        %v5774 = vadd.f32 %v5614, %v5733
        %v5775 = vadd.f32 %v5615, %v5735
        %v5776 = vadd.f32 %v5616, %v5737
        %v5777 = vadd.f32 %v5617, %v5739
        %v5778 = vadd.f32 %v5618, %v5741
        %v5779 = vadd.f32 %v5619, %v5743
        %v5780 = vadd.f32 %v5620, %v5745
        %v5781 = vadd.f32 %v5621, %v5747
        %v5782 = vadd.f32 %v5622, %v5749
        %v5783 = vadd.f32 %v5623, %v5751
        %v5784 = vtanh.pop %v5768
        %v5785 = vtanh.pop %v5769
        %v5786 = vtanh.pop %v5770
        %v5787 = vtanh.pop %v5771
        %v5788 = vtanh.pop %v5772
        %v5789 = vtanh.pop %v5773
        %v5790 = vtanh.pop %v5774
        %v5791 = vtanh.pop %v5775
        %v5792 = vtanh.pop %v5776
        %v5793 = vtanh.pop %v5777
        %v5794 = vtanh.pop %v5778
        %v5795 = vtanh.pop %v5779
        %v5796 = vtanh.pop %v5780
        %v5797 = vtanh.pop %v5781
        %v5798 = vtanh.pop %v5782
        %v5799 = vtanh.pop %v5783
        %5816 = vrot.lane.b32.xlu0 %v5784, 32
        %v5817 = vpop.permute.xlu0 %5816
        %5818 = vrot.lane.b32.xlu0 %v5785, 32
        %v5819 = vpop.permute.xlu0 %5818
        %5820 = vrot.lane.b32.xlu0 %v5786, 32
        %v5821 = vpop.permute.xlu0 %5820
        %5822 = vrot.lane.b32.xlu0 %v5787, 32
        %v5823 = vpop.permute.xlu0 %5822
        %5824 = vrot.lane.b32.xlu0 %v5788, 32
        %v5825 = vpop.permute.xlu0 %5824
        %5826 = vrot.lane.b32.xlu0 %v5789, 32
        %v5827 = vpop.permute.xlu0 %5826
        %5828 = vrot.lane.b32.xlu0 %v5790, 32
        %v5829 = vpop.permute.xlu0 %5828
        %5830 = vrot.lane.b32.xlu0 %v5791, 32
        %v5831 = vpop.permute.xlu0 %5830
        %5832 = vrot.lane.b32.xlu0 %v5792, 32
        %v5833 = vpop.permute.xlu0 %5832
        %5834 = vrot.lane.b32.xlu0 %v5793, 32
        %v5835 = vpop.permute.xlu0 %5834
        %5836 = vrot.lane.b32.xlu0 %v5794, 32
        %v5837 = vpop.permute.xlu0 %5836
        %5838 = vrot.lane.b32.xlu0 %v5795, 32
        %v5839 = vpop.permute.xlu0 %5838
        %5840 = vrot.lane.b32.xlu0 %v5796, 32
        %v5841 = vpop.permute.xlu0 %5840
        %5842 = vrot.lane.b32.xlu0 %v5797, 32
        %v5843 = vpop.permute.xlu0 %5842
        %5844 = vrot.lane.b32.xlu0 %v5798, 32
        %v5845 = vpop.permute.xlu0 %5844
        %5846 = vrot.lane.b32.xlu0 %v5799, 32
        %v5847 = vpop.permute.xlu0 %5846
        %v5864 = vmul.f32 %v5592, %v5817
        %v5865 = vmul.f32 %v5593, %v5819
        %v5866 = vmul.f32 %v5594, %v5821
        %v5867 = vmul.f32 %v5595, %v5823
        %v5868 = vmul.f32 %v5596, %v5825
        %v5869 = vmul.f32 %v5597, %v5827
        %v5870 = vmul.f32 %v5598, %v5829
        %v5871 = vmul.f32 %v5599, %v5831
        %v5872 = vmul.f32 %v5600, %v5833
        %v5873 = vmul.f32 %v5601, %v5835
        %v5874 = vmul.f32 %v5602, %v5837
        %v5875 = vmul.f32 %v5603, %v5839
        %v5876 = vmul.f32 %v5604, %v5841
        %v5877 = vmul.f32 %v5605, %v5843
        %v5878 = vmul.f32 %v5606, %v5845
        %v5879 = vmul.f32 %v5607, %v5847
        %5896 = vrot.lane.b32.xlu0 %v5864, 64
        %v5897 = vpop.permute.xlu0 %5896
        %5898 = vrot.lane.b32.xlu0 %v5865, 64
        %v5899 = vpop.permute.xlu0 %5898
        %5900 = vrot.lane.b32.xlu0 %v5866, 64
        %v5901 = vpop.permute.xlu0 %5900
        %5902 = vrot.lane.b32.xlu0 %v5867, 64
        %v5903 = vpop.permute.xlu0 %5902
        %5904 = vrot.lane.b32.xlu0 %v5868, 64
        %v5905 = vpop.permute.xlu0 %5904
        %5906 = vrot.lane.b32.xlu0 %v5869, 64
        %v5907 = vpop.permute.xlu0 %5906
        %5908 = vrot.lane.b32.xlu0 %v5870, 64
        %v5909 = vpop.permute.xlu0 %5908
        %5910 = vrot.lane.b32.xlu0 %v5871, 64
        %v5911 = vpop.permute.xlu0 %5910
        %5912 = vrot.lane.b32.xlu0 %v5872, 64
        %v5913 = vpop.permute.xlu0 %5912
        %5914 = vrot.lane.b32.xlu0 %v5873, 64
        %v5915 = vpop.permute.xlu0 %5914
        %5916 = vrot.lane.b32.xlu0 %v5874, 64
        %v5917 = vpop.permute.xlu0 %5916
        %5918 = vrot.lane.b32.xlu0 %v5875, 64
        %v5919 = vpop.permute.xlu0 %5918
        %5920 = vrot.lane.b32.xlu0 %v5876, 64
        %v5921 = vpop.permute.xlu0 %5920
        %5922 = vrot.lane.b32.xlu0 %v5877, 64
        %v5923 = vpop.permute.xlu0 %5922
        %5924 = vrot.lane.b32.xlu0 %v5878, 64
        %v5925 = vpop.permute.xlu0 %5924
        %5926 = vrot.lane.b32.xlu0 %v5879, 64
        %v5927 = vpop.permute.xlu0 %5926
        %v5928 = vsel %vm2029, %v5897, 0
        %v5930 = vsel %vm2029, %v5899, 0
        %v5932 = vsel %vm2029, %v5901, 0
        %v5934 = vsel %vm2029, %v5903, 0
        %v5936 = vsel %vm2029, %v5905, 0
        %v5938 = vsel %vm2029, %v5907, 0
        %v5940 = vsel %vm2029, %v5909, 0
        %v5942 = vsel %vm2029, %v5911, 0
        %v5944 = vsel %vm2029, %v5913, 0
        %v5946 = vsel %vm2029, %v5915, 0
        %v5948 = vsel %vm2029, %v5917, 0
        %v5950 = vsel %vm2029, %v5919, 0
        %v5952 = vsel %vm2029, %v5921, 0
        %v5954 = vsel %vm2029, %v5923, 0
        %v5956 = vsel %vm2029, %v5925, 0
        %v5958 = vsel %vm2029, %v5927, 0
        %5960 = vmatprep.subr.mxu0 0.0
        %5961 = vmatpush1.msra.mxu0 %v928
        %5962 = vmatprep.subr.mxu0 0.0
        %5963 = vmatpush1.msra.mxu0 %v929
        %5964 = vmatprep.subr.mxu0 0.0
        %5965 = vmatpush1.msra.mxu0 %v930
        %5966 = vmatprep.subr.mxu0 0.0
        %5967 = vmatpush1.msra.mxu0 %v931
        %5968 = vmatprep.subr.mxu0 0.0
        %5969 = vmatpush1.msra.mxu0 0.0
        %5970 = vmatprep.subr.mxu0 0.0
        %5971 = vmatpush1.msra.mxu0 0.0
        %5972 = vmatprep.subr.mxu0 0.0
        %5973 = vmatpush1.msra.mxu0 0.0
        %5974 = vmatprep.subr.mxu0 0.0
        %5975 = vmatpush1.msra.mxu0 0.0
        %5976 = vmatprep.subr.mxu0 0.0
        %5977 = vmatpush1.msra.mxu0 0.0
        %5978 = vmatprep.subr.mxu0 0.0
        %5979 = vmatpush1.msra.mxu0 0.0
        %5980 = vmatprep.subr.mxu0 0.0
        %5981 = vmatpush1.msra.mxu0 0.0
        %5982 = vmatprep.subr.mxu0 0.0
        %5983 = vmatpush1.msra.mxu0 0.0
        %5984 = vmatprep.subr.mxu0 0.0
        %5985 = vmatpush1.msra.mxu0 0.0
        %5986 = vmatprep.subr.mxu0 0.0
        %5987 = vmatpush1.msra.mxu0 0.0
        %5988 = vmatprep.subr.mxu0 0.0
        %5989 = vmatpush1.msra.mxu0 0.0
        %5990 = vmatprep.subr.mxu0 0.0
        %5991 = vmatpush1.msra.mxu0 0.0
        %5992 = vmatprep.subr.mxu0 0.0
        %5993 = vmatpush1.msra.mxu0 0.0
        %5994 = vmatprep.subr.mxu0 0.0
        %5995 = vmatpush1.msra.mxu0 0.0
        %5996 = vmatprep.subr.mxu0 0.0
        %5997 = vmatpush1.msra.mxu0 0.0
        %5998 = vmatprep.subr.mxu0 0.0
        %5999 = vmatpush1.msra.mxu0 0.0
        %6000 = vmatprep.subr.mxu0 0.0
        %6001 = vmatpush1.msra.mxu0 0.0
        %6002 = vmatprep.subr.mxu0 0.0
        %6003 = vmatpush1.msra.mxu0 0.0
        %6004 = vmatprep.subr.mxu0 0.0
        %6005 = vmatpush1.msra.mxu0 0.0
        %6006 = vmatprep.subr.mxu0 0.0
        %6007 = vmatpush1.msra.mxu0 0.0
        %6008 = vmatprep.subr.mxu0 0.0
        %6009 = vmatpush1.msra.mxu0 0.0
        %6010 = vmatprep.subr.mxu0 0.0
        %6011 = vmatpush1.msra.mxu0 0.0
        %6012 = vmatprep.subr.mxu0 0.0
        %6013 = vmatpush1.msra.mxu0 0.0
        %6014 = vmatprep.subr.mxu0 0.0
        %6015 = vmatpush1.msra.mxu0 0.0
        %6016 = vmatprep.subr.mxu0 0.0
        %6017 = vmatpush1.msra.mxu0 0.0
        %6018 = vmatprep.subr.mxu0 0.0
        %6019 = vmatpush1.msra.mxu0 0.0
        %6020 = vmatprep.subr.mxu0 0.0
        %6021 = vmatpush1.msra.mxu0 0.0
        %6022 = vmatprep.subr.mxu0 0.0
        %6023 = vmatpush1.msra.mxu0 0.0
        %6024 = vmatprep.mubr.f32.mxu0 0.0
        %6025 = vmatmul.mubr.f32.gmra.mrb[0].mxu0 %v5928
        %v6026 = vpop.f32.mrb[0].mxu0
        %v6027 = vadd.f32 0.0, %v6026
        %v6028 = vpop.f32.mrb[0].mxu0
        %6029 = vmatprep.mubr.f32.mxu0 0.0
        %6030 = vmatmul.mubr.f32.gmra.mrb[0].mxu0 %v5930
        %v6031 = vpop.f32.mrb[0].mxu0
        %v6032 = vadd.f32 0.0, %v6031
        %v6033 = vpop.f32.mrb[0].mxu0
        %6034 = vmatprep.mubr.f32.mxu0 0.0
        %6035 = vmatmul.mubr.f32.gmra.mrb[0].mxu0 %v5932
        %v6036 = vpop.f32.mrb[0].mxu0
        %v6037 = vadd.f32 0.0, %v6036
        %v6038 = vpop.f32.mrb[0].mxu0
        %6039 = vmatprep.mubr.f32.mxu0 0.0
        %6040 = vmatmul.mubr.f32.gmra.mrb[0].mxu0 %v5934
        %v6041 = vpop.f32.mrb[0].mxu0
        %v6042 = vadd.f32 0.0, %v6041
        %v6043 = vpop.f32.mrb[0].mxu0
        %6044 = vmatprep.mubr.f32.mxu0 0.0
        %6045 = vmatmul.mubr.f32.gmra.mrb[0].mxu0 %v5936
        %v6046 = vpop.f32.mrb[0].mxu0
        %v6047 = vadd.f32 0.0, %v6046
        %v6048 = vpop.f32.mrb[0].mxu0
        %6049 = vmatprep.mubr.f32.mxu0 0.0
        %6050 = vmatmul.mubr.f32.gmra.mrb[0].mxu0 %v5938
        %v6051 = vpop.f32.mrb[0].mxu0
        %v6052 = vadd.f32 0.0, %v6051
        %v6053 = vpop.f32.mrb[0].mxu0
        %6054 = vmatprep.mubr.f32.mxu0 0.0
        %6055 = vmatmul.mubr.f32.gmra.mrb[0].mxu0 %v5940
        %v6056 = vpop.f32.mrb[0].mxu0
        %v6057 = vadd.f32 0.0, %v6056
        %v6058 = vpop.f32.mrb[0].mxu0
        %6059 = vmatprep.mubr.f32.mxu0 0.0
        %6060 = vmatmul.mubr.f32.gmra.mrb[0].mxu0 %v5942
        %v6061 = vpop.f32.mrb[0].mxu0
        %v6062 = vadd.f32 0.0, %v6061
        %v6063 = vpop.f32.mrb[0].mxu0
        %6064 = vmatprep.mubr.f32.mxu0 0.0
        %6065 = vmatmul.mubr.f32.gmra.mrb[0].mxu0 %v5944
        %v6066 = vpop.f32.mrb[0].mxu0
        %v6067 = vadd.f32 0.0, %v6066
        %v6068 = vpop.f32.mrb[0].mxu0
        %6069 = vmatprep.mubr.f32.mxu0 0.0
        %6070 = vmatmul.mubr.f32.gmra.mrb[0].mxu0 %v5946
        %v6071 = vpop.f32.mrb[0].mxu0
        %v6072 = vadd.f32 0.0, %v6071
        %v6073 = vpop.f32.mrb[0].mxu0
        %6074 = vmatprep.mubr.f32.mxu0 0.0
        %6075 = vmatmul.mubr.f32.gmra.mrb[0].mxu0 %v5948
        %v6076 = vpop.f32.mrb[0].mxu0
        %v6077 = vadd.f32 0.0, %v6076
        %v6078 = vpop.f32.mrb[0].mxu0
        %6079 = vmatprep.mubr.f32.mxu0 0.0
        %6080 = vmatmul.mubr.f32.gmra.mrb[0].mxu0 %v5950
        %v6081 = vpop.f32.mrb[0].mxu0
        %v6082 = vadd.f32 0.0, %v6081
        %v6083 = vpop.f32.mrb[0].mxu0
        %6084 = vmatprep.mubr.f32.mxu0 0.0
        %6085 = vmatmul.mubr.f32.gmra.mrb[0].mxu0 %v5952
        %v6086 = vpop.f32.mrb[0].mxu0
        %v6087 = vadd.f32 0.0, %v6086
        %v6088 = vpop.f32.mrb[0].mxu0
        %6089 = vmatprep.mubr.f32.mxu0 0.0
        %6090 = vmatmul.mubr.f32.gmra.mrb[0].mxu0 %v5954
        %v6091 = vpop.f32.mrb[0].mxu0
        %v6092 = vadd.f32 0.0, %v6091
        %v6093 = vpop.f32.mrb[0].mxu0
        %6094 = vmatprep.mubr.f32.mxu0 0.0
        %6095 = vmatmul.mubr.f32.gmra.mrb[0].mxu0 %v5956
        %v6096 = vpop.f32.mrb[0].mxu0
        %v6097 = vadd.f32 0.0, %v6096
        %v6098 = vpop.f32.mrb[0].mxu0
        %6099 = vmatprep.mubr.f32.mxu0 0.0
        %6100 = vmatmul.mubr.f32.gmra.mrb[0].mxu0 %v5958
        %v6101 = vpop.f32.mrb[0].mxu0
        %v6102 = vadd.f32 0.0, %v6101
        %v6103 = vpop.f32.mrb[0].mxu0
        %6104 = vdwg.mxu0
        %v6105 = vadd.f32 %v1951, %v6027
        %v6106 = vadd.f32 %v1956, %v6032
        %v6107 = vadd.f32 %v1961, %v6037
        %v6108 = vadd.f32 %v1966, %v6042
        %v6109 = vadd.f32 %v1971, %v6047
        %v6110 = vadd.f32 %v1976, %v6052
        %v6111 = vadd.f32 %v1981, %v6057
        %v6112 = vadd.f32 %v1986, %v6062
        %v6113 = vadd.f32 %v1991, %v6067
        %v6114 = vadd.f32 %v1996, %v6072
        %v6115 = vadd.f32 %v2001, %v6077
        %v6116 = vadd.f32 %v2006, %v6082
        %v6117 = vadd.f32 %v2011, %v6087
        %v6118 = vadd.f32 %v2016, %v6092
        %v6119 = vadd.f32 %v2021, %v6097
        %v6120 = vadd.f32 %v2026, %v6102
        %v6121 = vtanh.pop %v6105
        %v6122 = vtanh.pop %v6106
        %v6123 = vtanh.pop %v6107
        %v6124 = vtanh.pop %v6108
        %v6125 = vtanh.pop %v6109
        %v6126 = vtanh.pop %v6110
        %v6127 = vtanh.pop %v6111
        %v6128 = vtanh.pop %v6112
        %v6129 = vtanh.pop %v6113
        %v6130 = vtanh.pop %v6114
        %v6131 = vtanh.pop %v6115
        %v6132 = vtanh.pop %v6116
        %v6133 = vtanh.pop %v6117
        %v6134 = vtanh.pop %v6118
        %v6135 = vtanh.pop %v6119
        %v6136 = vtanh.pop %v6120
        %v6137 = vadd.f32 %v6121, 1.0
        %v6138 = vadd.f32 %v6122, 1.0
        %v6139 = vadd.f32 %v6123, 1.0
        %v6140 = vadd.f32 %v6124, 1.0
        %v6141 = vadd.f32 %v6125, 1.0
        %v6142 = vadd.f32 %v6126, 1.0
        %v6143 = vadd.f32 %v6127, 1.0
        %v6144 = vadd.f32 %v6128, 1.0
        %v6145 = vadd.f32 %v6129, 1.0
        %v6146 = vadd.f32 %v6130, 1.0
        %v6147 = vadd.f32 %v6131, 1.0
        %v6148 = vadd.f32 %v6132, 1.0
        %v6149 = vadd.f32 %v6133, 1.0
        %v6150 = vadd.f32 %v6134, 1.0
        %v6151 = vadd.f32 %v6135, 1.0
        %v6152 = vadd.f32 %v6136, 1.0
        %v6153 = vmul.f32 %v6137, 0.5
        %v6154 = vmul.f32 %v6138, 0.5
        %v6155 = vmul.f32 %v6139, 0.5
        %v6156 = vmul.f32 %v6140, 0.5
        %v6157 = vmul.f32 %v6141, 0.5
        %v6158 = vmul.f32 %v6142, 0.5
        %v6159 = vmul.f32 %v6143, 0.5
        %v6160 = vmul.f32 %v6144, 0.5
        %v6161 = vmul.f32 %v6145, 0.5
        %v6162 = vmul.f32 %v6146, 0.5
        %v6163 = vmul.f32 %v6147, 0.5
        %v6164 = vmul.f32 %v6148, 0.5
        %v6165 = vmul.f32 %v6149, 0.5
        %v6166 = vmul.f32 %v6150, 0.5
        %v6167 = vmul.f32 %v6151, 0.5
        %v6168 = vmul.f32 %v6152, 0.5
        %v6169 = vmul.f32 %v6153, %v5768
        %v6170 = vmul.f32 %v6154, %v5769
        %v6171 = vmul.f32 %v6155, %v5770
        %v6172 = vmul.f32 %v6156, %v5771
        %v6173 = vmul.f32 %v6157, %v5772
        %v6174 = vmul.f32 %v6158, %v5773
        %v6175 = vmul.f32 %v6159, %v5774
        %v6176 = vmul.f32 %v6160, %v5775
        %v6177 = vmul.f32 %v6161, %v5776
        %v6178 = vmul.f32 %v6162, %v5777
        %v6179 = vmul.f32 %v6163, %v5778
        %v6180 = vmul.f32 %v6164, %v5779
        %v6181 = vmul.f32 %v6165, %v5780
        %v6182 = vmul.f32 %v6166, %v5781
        %v6183 = vmul.f32 %v6167, %v5782
        %v6184 = vmul.f32 %v6168, %v5783
        %6201 = vrot.lane.b32.xlu0 %v6121, 32
        %v6202 = vpop.permute.xlu0 %6201
        %6203 = vrot.lane.b32.xlu0 %v6122, 32
        %v6204 = vpop.permute.xlu0 %6203
        %6205 = vrot.lane.b32.xlu0 %v6123, 32
        %v6206 = vpop.permute.xlu0 %6205
        %6207 = vrot.lane.b32.xlu0 %v6124, 32
        %v6208 = vpop.permute.xlu0 %6207
        %6209 = vrot.lane.b32.xlu0 %v6125, 32
        %v6210 = vpop.permute.xlu0 %6209
        %6211 = vrot.lane.b32.xlu0 %v6126, 32
        %v6212 = vpop.permute.xlu0 %6211
        %6213 = vrot.lane.b32.xlu0 %v6127, 32
        %v6214 = vpop.permute.xlu0 %6213
        %6215 = vrot.lane.b32.xlu0 %v6128, 32
        %v6216 = vpop.permute.xlu0 %6215
        %6217 = vrot.lane.b32.xlu0 %v6129, 32
        %v6218 = vpop.permute.xlu0 %6217
        %6219 = vrot.lane.b32.xlu0 %v6130, 32
        %v6220 = vpop.permute.xlu0 %6219
        %6221 = vrot.lane.b32.xlu0 %v6131, 32
        %v6222 = vpop.permute.xlu0 %6221
        %6223 = vrot.lane.b32.xlu0 %v6132, 32
        %v6224 = vpop.permute.xlu0 %6223
        %6225 = vrot.lane.b32.xlu0 %v6133, 32
        %v6226 = vpop.permute.xlu0 %6225
        %6227 = vrot.lane.b32.xlu0 %v6134, 32
        %v6228 = vpop.permute.xlu0 %6227
        %6229 = vrot.lane.b32.xlu0 %v6135, 32
        %v6230 = vpop.permute.xlu0 %6229
        %6231 = vrot.lane.b32.xlu0 %v6136, 32
        %v6232 = vpop.permute.xlu0 %6231
        %v6249 = vmul.f32 %v6153, %v6202
        %v6250 = vmul.f32 %v6154, %v6204
        %v6251 = vmul.f32 %v6155, %v6206
        %v6252 = vmul.f32 %v6156, %v6208
        %v6253 = vmul.f32 %v6157, %v6210
        %v6254 = vmul.f32 %v6158, %v6212
        %v6255 = vmul.f32 %v6159, %v6214
        %v6256 = vmul.f32 %v6160, %v6216
        %v6257 = vmul.f32 %v6161, %v6218
        %v6258 = vmul.f32 %v6162, %v6220
        %v6259 = vmul.f32 %v6163, %v6222
        %v6260 = vmul.f32 %v6164, %v6224
        %v6261 = vmul.f32 %v6165, %v6226
        %v6262 = vmul.f32 %v6166, %v6228
        %v6263 = vmul.f32 %v6167, %v6230
        %v6264 = vmul.f32 %v6168, %v6232
        %6281 = vrot.lane.b32.xlu0 %v6249, 32
        %v6282 = vpop.permute.xlu0 %6281
        %6283 = vrot.lane.b32.xlu0 %v6250, 32
        %v6284 = vpop.permute.xlu0 %6283
        %6285 = vrot.lane.b32.xlu0 %v6251, 32
        %v6286 = vpop.permute.xlu0 %6285
        %6287 = vrot.lane.b32.xlu0 %v6252, 32
        %v6288 = vpop.permute.xlu0 %6287
        %6289 = vrot.lane.b32.xlu0 %v6253, 32
        %v6290 = vpop.permute.xlu0 %6289
        %6291 = vrot.lane.b32.xlu0 %v6254, 32
        %v6292 = vpop.permute.xlu0 %6291
        %6293 = vrot.lane.b32.xlu0 %v6255, 32
        %v6294 = vpop.permute.xlu0 %6293
        %6295 = vrot.lane.b32.xlu0 %v6256, 32
        %v6296 = vpop.permute.xlu0 %6295
        %6297 = vrot.lane.b32.xlu0 %v6257, 32
        %v6298 = vpop.permute.xlu0 %6297
        %6299 = vrot.lane.b32.xlu0 %v6258, 32
        %v6300 = vpop.permute.xlu0 %6299
        %6301 = vrot.lane.b32.xlu0 %v6259, 32
        %v6302 = vpop.permute.xlu0 %6301
        %6303 = vrot.lane.b32.xlu0 %v6260, 32
        %v6304 = vpop.permute.xlu0 %6303
        %6305 = vrot.lane.b32.xlu0 %v6261, 32
        %v6306 = vpop.permute.xlu0 %6305
        %6307 = vrot.lane.b32.xlu0 %v6262, 32
        %v6308 = vpop.permute.xlu0 %6307
        %6309 = vrot.lane.b32.xlu0 %v6263, 32
        %v6310 = vpop.permute.xlu0 %6309
        %6311 = vrot.lane.b32.xlu0 %v6264, 32
        %v6312 = vpop.permute.xlu0 %6311
        %v6329 = vadd.f32 %v6169, %v6282
        %v6330 = vadd.f32 %v6170, %v6284
        %v6331 = vadd.f32 %v6171, %v6286
        %v6332 = vadd.f32 %v6172, %v6288
        %v6333 = vadd.f32 %v6173, %v6290
        %v6334 = vadd.f32 %v6174, %v6292
        %v6335 = vadd.f32 %v6175, %v6294
        %v6336 = vadd.f32 %v6176, %v6296
        %v6337 = vadd.f32 %v6177, %v6298
        %v6338 = vadd.f32 %v6178, %v6300
        %v6339 = vadd.f32 %v6179, %v6302
        %v6340 = vadd.f32 %v6180, %v6304
        %v6341 = vadd.f32 %v6181, %v6306
        %v6342 = vadd.f32 %v6182, %v6308
        %v6343 = vadd.f32 %v6183, %v6310
        %v6344 = vadd.f32 %v6184, %v6312
        %v6345 = vtanh.pop %v6329
        %v6346 = vtanh.pop %v6330
        %v6347 = vtanh.pop %v6331
        %v6348 = vtanh.pop %v6332
        %v6349 = vtanh.pop %v6333
        %v6350 = vtanh.pop %v6334
        %v6351 = vtanh.pop %v6335
        %v6352 = vtanh.pop %v6336
        %v6353 = vtanh.pop %v6337
        %v6354 = vtanh.pop %v6338
        %v6355 = vtanh.pop %v6339
        %v6356 = vtanh.pop %v6340
        %v6357 = vtanh.pop %v6341
        %v6358 = vtanh.pop %v6342
        %v6359 = vtanh.pop %v6343
        %v6360 = vtanh.pop %v6344
        %6377 = vrot.lane.b32.xlu0 %v6345, 32
        %v6378 = vpop.permute.xlu0 %6377
        %6379 = vrot.lane.b32.xlu0 %v6346, 32
        %v6380 = vpop.permute.xlu0 %6379
        %6381 = vrot.lane.b32.xlu0 %v6347, 32
        %v6382 = vpop.permute.xlu0 %6381
        %6383 = vrot.lane.b32.xlu0 %v6348, 32
        %v6384 = vpop.permute.xlu0 %6383
        %6385 = vrot.lane.b32.xlu0 %v6349, 32
        %v6386 = vpop.permute.xlu0 %6385
        %6387 = vrot.lane.b32.xlu0 %v6350, 32
        %v6388 = vpop.permute.xlu0 %6387
        %6389 = vrot.lane.b32.xlu0 %v6351, 32
        %v6390 = vpop.permute.xlu0 %6389
        %6391 = vrot.lane.b32.xlu0 %v6352, 32
        %v6392 = vpop.permute.xlu0 %6391
        %6393 = vrot.lane.b32.xlu0 %v6353, 32
        %v6394 = vpop.permute.xlu0 %6393
        %6395 = vrot.lane.b32.xlu0 %v6354, 32
        %v6396 = vpop.permute.xlu0 %6395
        %6397 = vrot.lane.b32.xlu0 %v6355, 32
        %v6398 = vpop.permute.xlu0 %6397
        %6399 = vrot.lane.b32.xlu0 %v6356, 32
        %v6400 = vpop.permute.xlu0 %6399
        %6401 = vrot.lane.b32.xlu0 %v6357, 32
        %v6402 = vpop.permute.xlu0 %6401
        %6403 = vrot.lane.b32.xlu0 %v6358, 32
        %v6404 = vpop.permute.xlu0 %6403
        %6405 = vrot.lane.b32.xlu0 %v6359, 32
        %v6406 = vpop.permute.xlu0 %6405
        %6407 = vrot.lane.b32.xlu0 %v6360, 32
        %v6408 = vpop.permute.xlu0 %6407
        %v6425 = vmul.f32 %v6153, %v6378
        %v6426 = vmul.f32 %v6154, %v6380
        %v6427 = vmul.f32 %v6155, %v6382
        %v6428 = vmul.f32 %v6156, %v6384
        %v6429 = vmul.f32 %v6157, %v6386
        %v6430 = vmul.f32 %v6158, %v6388
        %v6431 = vmul.f32 %v6159, %v6390
        %v6432 = vmul.f32 %v6160, %v6392
        %v6433 = vmul.f32 %v6161, %v6394
        %v6434 = vmul.f32 %v6162, %v6396
        %v6435 = vmul.f32 %v6163, %v6398
        %v6436 = vmul.f32 %v6164, %v6400
        %v6437 = vmul.f32 %v6165, %v6402
        %v6438 = vmul.f32 %v6166, %v6404
        %v6439 = vmul.f32 %v6167, %v6406
        %v6440 = vmul.f32 %v6168, %v6408
        %v6441 = vld [vmem:[%s4] sm:$0x1]
        %v6443 = vlaneseq
        %v6444 = vshrl.u32 %v6443, 7
        %v6445 = vsub.s32 0, %v6444
        %v6446 = vrot.slane %v6441, %v6445
        %6447 = vrot.lane.b32.xlu0 %v6446, 64
        %v6448 = vpop.permute.xlu0 %6447
        %v6450 = vmul.f32 %v6425, %v6448
        %v6451 = vmul.f32 %v6426, %v6448
        %v6452 = vmul.f32 %v6427, %v6448
        %v6453 = vmul.f32 %v6428, %v6448
        %v6454 = vmul.f32 %v6429, %v6448
        %v6455 = vmul.f32 %v6430, %v6448
        %v6456 = vmul.f32 %v6431, %v6448
        %v6457 = vmul.f32 %v6432, %v6448
        %v6458 = vmul.f32 %v6433, %v6448
        %v6459 = vmul.f32 %v6434, %v6448
        %v6460 = vmul.f32 %v6435, %v6448
        %v6461 = vmul.f32 %v6436, %v6448
        %v6462 = vmul.f32 %v6437, %v6448
        %v6463 = vmul.f32 %v6438, %v6448
        %v6464 = vmul.f32 %v6439, %v6448
        %v6465 = vmul.f32 %v6440, %v6448
        %6482 = vrot.lane.b32.xlu0 %v6450, 64
        %v6483 = vpop.permute.xlu0 %6482
        %6484 = vrot.lane.b32.xlu0 %v6451, 64
        %v6485 = vpop.permute.xlu0 %6484
        %6486 = vrot.lane.b32.xlu0 %v6452, 64
        %v6487 = vpop.permute.xlu0 %6486
        %6488 = vrot.lane.b32.xlu0 %v6453, 64
        %v6489 = vpop.permute.xlu0 %6488
        %6490 = vrot.lane.b32.xlu0 %v6454, 64
        %v6491 = vpop.permute.xlu0 %6490
        %6492 = vrot.lane.b32.xlu0 %v6455, 64
        %v6493 = vpop.permute.xlu0 %6492
        %6494 = vrot.lane.b32.xlu0 %v6456, 64
        %v6495 = vpop.permute.xlu0 %6494
        %6496 = vrot.lane.b32.xlu0 %v6457, 64
        %v6497 = vpop.permute.xlu0 %6496
        %6498 = vrot.lane.b32.xlu0 %v6458, 64
        %v6499 = vpop.permute.xlu0 %6498
        %6500 = vrot.lane.b32.xlu0 %v6459, 64
        %v6501 = vpop.permute.xlu0 %6500
        %6502 = vrot.lane.b32.xlu0 %v6460, 64
        %v6503 = vpop.permute.xlu0 %6502
        %6504 = vrot.lane.b32.xlu0 %v6461, 64
        %v6505 = vpop.permute.xlu0 %6504
        %6506 = vrot.lane.b32.xlu0 %v6462, 64
        %v6507 = vpop.permute.xlu0 %6506
        %6508 = vrot.lane.b32.xlu0 %v6463, 64
        %v6509 = vpop.permute.xlu0 %6508
        %6510 = vrot.lane.b32.xlu0 %v6464, 64
        %v6511 = vpop.permute.xlu0 %6510
        %6512 = vrot.lane.b32.xlu0 %v6465, 64
        %v6513 = vpop.permute.xlu0 %6512
        %v6530 = vsel %vm2029, %v6483, 0.0
        %6531 = vadd.xlane.f32.xlu0 %v6530
        %v6532 = vpop.xlane.xlu0 %6531
        %v6533 = vsel %vm2029, %v6485, 0.0
        %6534 = vadd.xlane.f32.xlu0 %v6533
        %v6535 = vpop.xlane.xlu0 %6534
        %v6536 = vsel %vm2029, %v6487, 0.0
        %6537 = vadd.xlane.f32.xlu0 %v6536
        %v6538 = vpop.xlane.xlu0 %6537
        %v6539 = vsel %vm2029, %v6489, 0.0
        %6540 = vadd.xlane.f32.xlu0 %v6539
        %v6541 = vpop.xlane.xlu0 %6540
        %v6542 = vsel %vm2029, %v6491, 0.0
        %6543 = vadd.xlane.f32.xlu0 %v6542
        %v6544 = vpop.xlane.xlu0 %6543
        %v6545 = vsel %vm2029, %v6493, 0.0
        %6546 = vadd.xlane.f32.xlu0 %v6545
        %v6547 = vpop.xlane.xlu0 %6546
        %v6548 = vsel %vm2029, %v6495, 0.0
        %6549 = vadd.xlane.f32.xlu0 %v6548
        %v6550 = vpop.xlane.xlu0 %6549
        %v6551 = vsel %vm2029, %v6497, 0.0
        %6552 = vadd.xlane.f32.xlu0 %v6551
        %v6553 = vpop.xlane.xlu0 %6552
        %v6554 = vsel %vm2029, %v6499, 0.0
        %6555 = vadd.xlane.f32.xlu0 %v6554
        %v6556 = vpop.xlane.xlu0 %6555
        %v6557 = vsel %vm2029, %v6501, 0.0
        %6558 = vadd.xlane.f32.xlu0 %v6557
        %v6559 = vpop.xlane.xlu0 %6558
        %v6560 = vsel %vm2029, %v6503, 0.0
        %6561 = vadd.xlane.f32.xlu0 %v6560
        %v6562 = vpop.xlane.xlu0 %6561
        %v6563 = vsel %vm2029, %v6505, 0.0
        %6564 = vadd.xlane.f32.xlu0 %v6563
        %v6565 = vpop.xlane.xlu0 %6564
        %v6566 = vsel %vm2029, %v6507, 0.0
        %6567 = vadd.xlane.f32.xlu0 %v6566
        %v6568 = vpop.xlane.xlu0 %6567
        %v6569 = vsel %vm2029, %v6509, 0.0
        %6570 = vadd.xlane.f32.xlu0 %v6569
        %v6571 = vpop.xlane.xlu0 %6570
        %v6572 = vsel %vm2029, %v6511, 0.0
        %6573 = vadd.xlane.f32.xlu0 %v6572
        %v6574 = vpop.xlane.xlu0 %6573
        %v6575 = vsel %vm2029, %v6513, 0.0
        %6576 = vadd.xlane.f32.xlu0 %v6575
        %v6577 = vpop.xlane.xlu0 %6576
        %s6578 = sld [smem:[#allocation2]]
        %v6579 = vstv %s6578
        %v6580 = vadd.f32 %v6532, %v6579
        %v6581 = vadd.f32 %v6535, %v6579
        %v6582 = vadd.f32 %v6538, %v6579
        %v6583 = vadd.f32 %v6541, %v6579
        %v6584 = vadd.f32 %v6544, %v6579
        %v6585 = vadd.f32 %v6547, %v6579
        %v6586 = vadd.f32 %v6550, %v6579
        %v6587 = vadd.f32 %v6553, %v6579
        %v6588 = vadd.f32 %v6556, %v6579
        %v6589 = vadd.f32 %v6559, %v6579
        %v6590 = vadd.f32 %v6562, %v6579
        %v6591 = vadd.f32 %v6565, %v6579
        %v6592 = vadd.f32 %v6568, %v6579
        %v6593 = vadd.f32 %v6571, %v6579
        %v6594 = vadd.f32 %v6574, %v6579
        %v6595 = vadd.f32 %v6577, %v6579
        %vm6596 = vcmask 7168
        %6597 = vst.msk [vmem:[%s796] sm:$0xff] %vm6596, %v6580
        %6598 = vst.msk [vmem:[%s796 + $0x8] sm:$0xff] %vm6596, %v6581
        %6599 = vst.msk [vmem:[%s796 + $0x10] sm:$0xff] %vm6596, %v6582
        %6600 = vst.msk [vmem:[%s796 + $0x18] sm:$0xff] %vm6596, %v6583
        %6601 = vst.msk [vmem:[%s796 + $0x20] sm:$0xff] %vm6596, %v6584
        %6602 = vst.msk [vmem:[%s796 + $0x28] sm:$0xff] %vm6596, %v6585
        %6603 = vst.msk [vmem:[%s796 + $0x30] sm:$0xff] %vm6596, %v6586
        %6604 = vst.msk [vmem:[%s796 + $0x38] sm:$0xff] %vm6596, %v6587
        %6605 = vst.msk [vmem:[%s796 + $0x40] sm:$0xff] %vm6596, %v6588
        %6606 = vst.msk [vmem:[%s796 + $0x48] sm:$0xff] %vm6596, %v6589
        %6607 = vst.msk [vmem:[%s796 + $0x50] sm:$0xff] %vm6596, %v6590
        %6608 = vst.msk [vmem:[%s796 + $0x58] sm:$0xff] %vm6596, %v6591
        %6609 = vst.msk [vmem:[%s796 + $0x60] sm:$0xff] %vm6596, %v6592
        %6610 = vst.msk [vmem:[%s796 + $0x68] sm:$0xff] %vm6596, %v6593
        %6611 = vst.msk [vmem:[%s796 + $0x70] sm:$0xff] %vm6596, %v6594
        %6612 = vst.msk [vmem:[%s796 + $0x78] sm:$0xff] %vm6596, %v6595
        %s6613 = smul.u32 16, %s18
        %p6614 = scmp.lt.s32.totalorder %s6613, 31
        %s6615 = scalar_select %p6614, %s6613, 31
        %s6616 = smul.addr %s6615, 8
        %s6617 = scalar_lea.vmem %s6, %s6616
        // Predicated region
        $region83: #{tpu_custom_call.1} parent=77 // pred_check
          %p6618 = pneg %p167
        $region84: #{tpu_custom_call.1} parent=77 // pred_check_branch
          %6620 = sbr.rel (%p6618) target = $region86
        $region85: #{tpu_custom_call.1} parent=77 // pred_region
          %s6621 = smul.u32 16, %s18
        $region86: #{tpu_custom_call.1} parent=77 // pred_fallthru
          _
      $region78: #{tpu_custom_call.1} parent=5 // pred_fallthru
        _
      %p6622 = scmp.le.s32.totalorder 2, %s13
      // Predicated region
      $region87: #{tpu_custom_call.1} parent=5 // pred_check
        %p6623 = pneg %p6622
      $region88: #{tpu_custom_call.1} parent=5 // pred_check_branch
        %6625 = sbr.rel (%p6623) target = $region90
      $region89: #{tpu_custom_call.1} parent=5 // pred_region
        %s6626 = ssub.s32 %s13, 2
        // Predicated region
        $region91: #{tpu_custom_call.1} parent=89 // pred_check
          %p6627 = pneg %p173
        $region92: #{tpu_custom_call.1} parent=89 // pred_check_branch
          %6629 = sbr.rel (%p6627) target = $region94
        $region93: #{tpu_custom_call.1} parent=89 // pred_region
          %s6630 = smul.u32 16, %s19
          %p6631 = scmp.lt.s32.totalorder %s6630, 31
          %s6632 = scalar_select %p6631, %s6630, 31
          %s6633 = smul.addr %s6632, 8
          %s6634 = scalar_lea.vmem %s6, %s6633
        $region94: #{tpu_custom_call.1} parent=89 // pred_fallthru
          _
      $region90: #{tpu_custom_call.1} parent=5 // pred_fallthru
        _
    $region6: #{tpu_custom_call.1} parent=1 // loop_footer
      %s17 = sadd.s32 1, %s13
    $region7: #{tpu_custom_call.1} parent=1 // loop_footer_branch
      %12 = sbr.rel target = $region3
    $region8: #{tpu_custom_call.1} parent=1 // loop_exit
      _

</llo_original>
